<compile_context>
chip_gen: v7x
topology: tpu7x:2x2x1
jax: 0.10.0
libtpu: 0.0.40
codegen_flags: <defaults>
</compile_context>

<pallas_src>
import math

import jax
import jax.numpy as jnp
from jax import lax
from jax.experimental import pallas as pl
from jax.experimental.pallas import tpu as pltpu


def _round_up(x, m):
    return ((x + m - 1) // m) * m


# ------------------------------ fused Pallas kernel ------------------------------

def _make_cbr_kernel(kH, kW, stride, dil, th, Wo, Cin, tn):
    """Builds the fused conv+BN+PReLU kernel for static geometry.

    Kernel refs:
      x_ref: (Hp, Wp, Cin)   f32  whole padded image for the current batch element;
                                  resident across the Cout / row-tile grid axes.
      w_ref: (kH*kW*Cin, tn) f32  HWIO-flattened weights with BN scale folded in.
      b_ref: (1, tn)         f32  folded BN bias.
      p_ref: (1, tn)         f32  PReLU per-channel slope.
      o_ref: (th, Wo, tn)         output tile (th output rows x full W x tn channels).
    """
    taps = [(i, j) for i in range(kH) for j in range(kW)]

    def kernel(x_ref, w_ref, b_ref, p_ref, o_ref):
        h = pl.program_id(2)                                    # output-row tile index
        row0 = pl.multiple_of(h * (th * stride), th * stride)   # first input row of tile

        acc = jnp.zeros((th * Wo, tn), jnp.float32)
        for t, (i, j) in enumerate(taps):
            # Shifted (and strided, if stride > 1) window of the resident input image:
            # the in-VMEM equivalent of one im2col column block (never hits HBM).
            if stride == 1:
                sl = x_ref[pl.ds(row0 + i * dil, th), pl.ds(j * dil, Wo), :]
            else:
                sl = x_ref[pl.ds(row0 + i * dil, th, stride=stride),
                           pl.ds(j * dil, Wo, stride=stride), :]
            a = sl.reshape(th * Wo, Cin).astype(jnp.bfloat16)
            w_tap = w_ref[t * Cin:(t + 1) * Cin, :].astype(jnp.bfloat16)
            acc = acc + jnp.dot(a, w_tap, preferred_element_type=jnp.float32)

        y = acc + b_ref[...]                                    # folded BatchNorm bias
        y = jnp.where(y >= 0.0, y, p_ref[...] * y)              # PReLU (per-channel)
        o_ref[...] = y.reshape(th, Wo, tn).astype(o_ref.dtype)

    return kernel


# ------------------------------------ wrapper ------------------------------------

def cbr_forward(params, x_nchw, stride=1, *, out_dtype=jnp.float32):
    """CBR.forward: Conv2d(bias=False, pad=(k-1)//2, stride) -> BN(eps, eval) -> PReLU."""
    w = params['conv_w']                                        # (Cout, Cin, kH, kW) OIHW
    Cout, Cin, kH, kW = w.shape
    dil = 1
    pad = ((kH - 1) // 2) * dil                                 # PyTorch padding=(k-1)//2

    # Fold inference BatchNorm into per-channel scale/bias; scale goes into the weights.
    inv = params['bn_weight'] * lax.rsqrt(params['bn_running_var'] + params['bn_eps'])
    bias = params['bn_bias'] - params['bn_running_mean'] * inv
    slope = params['prelu_weight']

    B, _, H, W = x_nchw.shape
    Ho = (H + 2 * pad - dil * (kH - 1) - 1) // stride + 1
    Wo = (W + 2 * pad - dil * (kW - 1) - 1) // stride + 1

    # ----------------------------------- tiling -----------------------------------
    tn = 256 if Cout > 128 else 128          # fill the 256-wide MXU on v6e/v7x
    Cout_p = _round_up(Cout, tn)
    n_co = Cout_p // tn
    th = max(1, min(Ho, -(-512 // Wo)))      # ~512 output pixels per MXU call
    Ho_p = _round_up(Ho, th)
    n_h = Ho_p // th

    # ----------------------------- operand preparation ----------------------------
    # NCHW -> NHWC (channels on lanes) + spatial zero-pad: one fused XLA pass, and no
    # 9x im2col materialization in HBM any more.
    x = jnp.transpose(x_nchw, (0, 2, 3, 1)).astype(jnp.float32)
    Hp_need = (Ho_p - 1) * stride + dil * (kH - 1) + 1          # rows the kernel reads
    Wp_need = (Wo - 1) * stride + dil * (kW - 1) + 1
    pad_b = max(0, Hp_need - pad - H)
    pad_r = max(0, Wp_need - pad - W)
    x_p = jnp.pad(x, ((0, 0), (pad, pad_b), (pad, pad_r), (0, 0)))
    Hp, Wp = x_p.shape[1], x_p.shape[2]

    # OIHW -> (kH*kW*Cin, Cout) with BN scale folded in; pad Cout to the tile width.
    w2 = jnp.transpose(w, (2, 3, 1, 0)).reshape(kH * kW * Cin, Cout) * inv[None, :]
    w2 = jnp.pad(w2.astype(jnp.float32), ((0, 0), (0, Cout_p - Cout)))
    b2 = jnp.pad(bias.astype(jnp.float32), (0, Cout_p - Cout)).reshape(1, Cout_p)
    p2 = jnp.pad(slope.astype(jnp.float32), (0, Cout_p - Cout)).reshape(1, Cout_p)

    kernel = _make_cbr_kernel(kH, kW, stride, dil, th, Wo, Cin, tn)

    # TODO(synk): for feature maps too large to keep one whole padded image per batch
    # element resident in VMEM, additionally tile W (manual halo DMA) instead.
    out = pl.pallas_call(
        kernel,
        out_shape=jax.ShapeDtypeStruct((B, Ho_p, Wo, Cout_p), out_dtype),
        grid_spec=pltpu.PrefetchScalarGridSpec(
            num_scalar_prefetch=0,
            grid=(B, n_co, n_h),
            in_specs=[
                # Whole padded image: block index is constant across the co/h axes, so
                # Pallas DMAs it from HBM exactly once per batch element.
                pl.BlockSpec((None, Hp, Wp, Cin), lambda b, c, h: (b, 0, 0, 0)),
                pl.BlockSpec((kH * kW * Cin, tn), lambda b, c, h: (0, c)),
                pl.BlockSpec((1, tn), lambda b, c, h: (0, c)),
                pl.BlockSpec((1, tn), lambda b, c, h: (0, c)),
            ],
            out_specs=pl.BlockSpec((None, th, Wo, tn), lambda b, c, h: (b, h, 0, c)),
        ),
        compiler_params=pltpu.CompilerParams(
            dimension_semantics=("parallel", "parallel", "parallel"),
            vmem_limit_bytes=32 * 1024 * 1024),
    )(x_p, w2, b2, p2)

    if Ho_p != Ho or Cout_p != Cout:
        out = out[:, :Ho, :, :Cout]
    # TODO(synk): keep NHWC end-to-end across layers to drop this transpose pass.
    return jnp.transpose(out, (0, 3, 1, 2))                     # -> NCHW


# --------------------------- params + plain-JAX reference -------------------------

def init_cbr_params(key, n_in, n_out, k_size):
    fan_in = n_in * k_size * k_size
    conv_w = jax.random.normal(key, (n_out, n_in, k_size, k_size),
                               jnp.float32) / math.sqrt(fan_in)
    return {
        'conv_w': conv_w,
        # torch BatchNorm2d(eval) defaults: weight=1, bias=0, mean=0, var=1, eps=1e-3.
        'bn_weight': jnp.ones((n_out,), jnp.float32),
        'bn_bias': jnp.zeros((n_out,), jnp.float32),
        'bn_running_mean': jnp.zeros((n_out,), jnp.float32),
        'bn_running_var': jnp.ones((n_out,), jnp.float32),
        'bn_eps': jnp.float32(1e-3),
        # CBR uses nn.PReLU(nOut): per-channel slope, torch default 0.25.
        'prelu_weight': jnp.full((n_out,), 0.25, jnp.float32),
    }


def cbr_reference(params, x_nchw, stride=1):
    """Plain-JAX f32 reference of the same forward pass (sanity check)."""
    w = params['conv_w']
    kH = w.shape[2]
    pad = (kH - 1) // 2
    x = jnp.transpose(x_nchw, (0, 2, 3, 1)).astype(jnp.float32)
    w_hwio = jnp.transpose(w, (2, 3, 1, 0))
    y = lax.conv_general_dilated(
        x, w_hwio, window_strides=(stride, stride),
        padding=[(pad, pad), (pad, pad)],
        dimension_numbers=('NHWC', 'HWIO', 'NHWC'),
        precision=lax.Precision.HIGHEST)
    inv = params['bn_weight'] / jnp.sqrt(params['bn_running_var'] + params['bn_eps'])
    y = (y - params['bn_running_mean']) * inv + params['bn_bias']
    y = jnp.where(y >= 0.0, y, params['prelu_weight'] * y)
    return jnp.transpose(y, (0, 3, 1, 2))


# ---------------------------------------- main ------------------------------------

if __name__ == "__main__":
    key = jax.random.PRNGKey(0)
    k_x, k_w = jax.random.split(key)

    B, Cin, H, W = 2, 4, 16, 16
    Cout, kSize = 32, 3
    x = jax.random.normal(k_x, (B, Cin, H, W), jnp.float32)    # NCHW, PyTorch layout
    params = init_cbr_params(k_w, Cin, Cout, kSize)

    for stride in (1, 2):                                      # CBR supports stride >= 1
        fwd = jax.jit(lambda p, xx, s=stride: cbr_forward(p, xx, stride=s))
        out = fwd(params, x)
        jax.block_until_ready(out)

        pad = (kSize - 1) // 2
        Ho = (H + 2 * pad - kSize) // stride + 1
        Wo = (W + 2 * pad - kSize) // stride + 1
        assert out.shape == (B, Cout, Ho, Wo), out.shape
        assert out.dtype == jnp.float32

        ref = cbr_reference(params, x, stride=stride)
        max_err = float(jnp.max(jnp.abs(out - ref)))
        # bf16 MXU operands with f32 accumulation -> ~1e-3 level error expected.
        assert max_err < 5e-2, max_err

    print("KERNEL_OK")
</pallas_src>

<mosaic_0001>
module attributes {stable_mosaic.version = 11 : i64} {
  func.func @kernel(%arg0: i32, %arg1: i32, %arg2: i32, %arg3: memref<1x18x18x4xf32, #tpu.memory_space<vmem>>, %arg4: memref<36x128xf32, #tpu.memory_space<vmem>>, %arg5: memref<1x128xf32, #tpu.memory_space<vmem>>, %arg6: memref<1x128xf32, #tpu.memory_space<vmem>>, %arg7: memref<1x16x16x128xf32, #tpu.memory_space<vmem>>) attributes {dimension_semantics = [#tpu.dimension_semantics<parallel>, #tpu.dimension_semantics<parallel>, #tpu.dimension_semantics<parallel>], iteration_bounds = array<i64: 2, 1, 1>, scalar_prefetch = 0 : i64, scratch_operands = 0 : i64, tpu.core_type = #tpu.core_type<tc>, window_params = [{transform_indices = @transform_0, window_bounds = array<i64: 1, 18, 18, 4>}, {transform_indices = @transform_1, window_bounds = array<i64: 36, 128>}, {transform_indices = @transform_2, window_bounds = array<i64: 1, 128>}, {transform_indices = @transform_3, window_bounds = array<i64: 1, 128>}, {transform_indices = @transform_4, window_bounds = array<i64: 1, 16, 16, 128>}]} {
    %c16_i32 = arith.constant 16 : i32
    %0 = arith.muli %arg2, %c16_i32 : i32
    %1 = tpu.assume_multiple %0, 16 : i32
    %cst = arith.constant 0.000000e+00 : f32
    %2 = vector.broadcast %cst : f32 to vector<256x128xf32>
    %c0_i32 = arith.constant 0 : i32
    %3 = arith.addi %1, %c0_i32 : i32
    %c0 = arith.constant 0 : index
    %4 = arith.index_cast %3 : i32 to index
    %c0_0 = arith.constant 0 : index
    %c0_1 = arith.constant 0 : index
    %5 = vector.load %arg3[%c0, %4, %c0_0, %c0_1] : memref<1x18x18x4xf32, #tpu.memory_space<vmem>>, vector<1x16x16x4xf32>
    %6 = vector.shape_cast %5 : vector<1x16x16x4xf32> to vector<16x16x4xf32>
    %7 = vector.shape_cast %6 : vector<16x16x4xf32> to vector<256x4xf32>
    %8 = arith.truncf %7 : vector<256x4xf32> to vector<256x4xbf16>
    %c0_2 = arith.constant 0 : index
    %c0_3 = arith.constant 0 : index
    %9 = vector.load %arg4[%c0_2, %c0_3] : memref<36x128xf32, #tpu.memory_space<vmem>>, vector<4x128xf32>
    %10 = arith.truncf %9 : vector<4x128xf32> to vector<4x128xbf16>
    %cst_4 = arith.constant dense<0.000000e+00> : vector<256x128xf32>
    %11 = tpu.matmul %8, %10, %cst_4 {dimension_numbers = #tpu.dot_dimension_numbers<[1], [0], [0], [1], [0, 0, 1, 1], [], []>} : vector<256x4xbf16>, vector<4x128xbf16>, vector<256x128xf32> -> vector<256x128xf32>
    %12 = arith.addf %2, %11 : vector<256x128xf32>
    %c0_i32_5 = arith.constant 0 : i32
    %13 = arith.addi %1, %c0_i32_5 : i32
    %c0_6 = arith.constant 0 : index
    %14 = arith.index_cast %13 : i32 to index
    %c1 = arith.constant 1 : index
    %c0_7 = arith.constant 0 : index
    %15 = vector.load %arg3[%c0_6, %14, %c1, %c0_7] : memref<1x18x18x4xf32, #tpu.memory_space<vmem>>, vector<1x16x16x4xf32>
    %16 = vector.shape_cast %15 : vector<1x16x16x4xf32> to vector<16x16x4xf32>
    %17 = vector.shape_cast %16 : vector<16x16x4xf32> to vector<256x4xf32>
    %18 = arith.truncf %17 : vector<256x4xf32> to vector<256x4xbf16>
    %c4 = arith.constant 4 : index
    %c0_8 = arith.constant 0 : index
    %19 = vector.load %arg4[%c4, %c0_8] : memref<36x128xf32, #tpu.memory_space<vmem>>, vector<4x128xf32>
    %20 = arith.truncf %19 : vector<4x128xf32> to vector<4x128xbf16>
    %cst_9 = arith.constant dense<0.000000e+00> : vector<256x128xf32>
    %21 = tpu.matmul %18, %20, %cst_9 {dimension_numbers = #tpu.dot_dimension_numbers<[1], [0], [0], [1], [0, 0, 1, 1], [], []>} : vector<256x4xbf16>, vector<4x128xbf16>, vector<256x128xf32> -> vector<256x128xf32>
    %22 = arith.addf %12, %21 : vector<256x128xf32>
    %c0_i32_10 = arith.constant 0 : i32
    %23 = arith.addi %1, %c0_i32_10 : i32
    %c0_11 = arith.constant 0 : index
    %24 = arith.index_cast %23 : i32 to index
    %c2 = arith.constant 2 : index
    %c0_12 = arith.constant 0 : index
    %25 = vector.load %arg3[%c0_11, %24, %c2, %c0_12] : memref<1x18x18x4xf32, #tpu.memory_space<vmem>>, vector<1x16x16x4xf32>
    %26 = vector.shape_cast %25 : vector<1x16x16x4xf32> to vector<16x16x4xf32>
    %27 = vector.shape_cast %26 : vector<16x16x4xf32> to vector<256x4xf32>
    %28 = arith.truncf %27 : vector<256x4xf32> to vector<256x4xbf16>
    %c8 = arith.constant 8 : index
    %c0_13 = arith.constant 0 : index
    %29 = vector.load %arg4[%c8, %c0_13] : memref<36x128xf32, #tpu.memory_space<vmem>>, vector<4x128xf32>
    %30 = arith.truncf %29 : vector<4x128xf32> to vector<4x128xbf16>
    %cst_14 = arith.constant dense<0.000000e+00> : vector<256x128xf32>
    %31 = tpu.matmul %28, %30, %cst_14 {dimension_numbers = #tpu.dot_dimension_numbers<[1], [0], [0], [1], [0, 0, 1, 1], [], []>} : vector<256x4xbf16>, vector<4x128xbf16>, vector<256x128xf32> -> vector<256x128xf32>
    %32 = arith.addf %22, %31 : vector<256x128xf32>
    %c1_i32 = arith.constant 1 : i32
    %33 = arith.addi %1, %c1_i32 : i32
    %c0_15 = arith.constant 0 : index
    %34 = arith.index_cast %33 : i32 to index
    %c0_16 = arith.constant 0 : index
    %c0_17 = arith.constant 0 : index
    %35 = vector.load %arg3[%c0_15, %34, %c0_16, %c0_17] : memref<1x18x18x4xf32, #tpu.memory_space<vmem>>, vector<1x16x16x4xf32>
    %36 = vector.shape_cast %35 : vector<1x16x16x4xf32> to vector<16x16x4xf32>
    %37 = vector.shape_cast %36 : vector<16x16x4xf32> to vector<256x4xf32>
    %38 = arith.truncf %37 : vector<256x4xf32> to vector<256x4xbf16>
    %c12 = arith.constant 12 : index
    %c0_18 = arith.constant 0 : index
    %39 = vector.load %arg4[%c12, %c0_18] : memref<36x128xf32, #tpu.memory_space<vmem>>, vector<4x128xf32>
    %40 = arith.truncf %39 : vector<4x128xf32> to vector<4x128xbf16>
    %cst_19 = arith.constant dense<0.000000e+00> : vector<256x128xf32>
    %41 = tpu.matmul %38, %40, %cst_19 {dimension_numbers = #tpu.dot_dimension_numbers<[1], [0], [0], [1], [0, 0, 1, 1], [], []>} : vector<256x4xbf16>, vector<4x128xbf16>, vector<256x128xf32> -> vector<256x128xf32>
    %42 = arith.addf %32, %41 : vector<256x128xf32>
    %c1_i32_20 = arith.constant 1 : i32
    %43 = arith.addi %1, %c1_i32_20 : i32
    %c0_21 = arith.constant 0 : index
    %44 = arith.index_cast %43 : i32 to index
    %c1_22 = arith.constant 1 : index
    %c0_23 = arith.constant 0 : index
    %45 = vector.load %arg3[%c0_21, %44, %c1_22, %c0_23] : memref<1x18x18x4xf32, #tpu.memory_space<vmem>>, vector<1x16x16x4xf32>
    %46 = vector.shape_cast %45 : vector<1x16x16x4xf32> to vector<16x16x4xf32>
    %47 = vector.shape_cast %46 : vector<16x16x4xf32> to vector<256x4xf32>
    %48 = arith.truncf %47 : vector<256x4xf32> to vector<256x4xbf16>
    %c16 = arith.constant 16 : index
    %c0_24 = arith.constant 0 : index
    %49 = vector.load %arg4[%c16, %c0_24] : memref<36x128xf32, #tpu.memory_space<vmem>>, vector<4x128xf32>
    %50 = arith.truncf %49 : vector<4x128xf32> to vector<4x128xbf16>
    %cst_25 = arith.constant dense<0.000000e+00> : vector<256x128xf32>
    %51 = tpu.matmul %48, %50, %cst_25 {dimension_numbers = #tpu.dot_dimension_numbers<[1], [0], [0], [1], [0, 0, 1, 1], [], []>} : vector<256x4xbf16>, vector<4x128xbf16>, vector<256x128xf32> -> vector<256x128xf32>
    %52 = arith.addf %42, %51 : vector<256x128xf32>
    %c1_i32_26 = arith.constant 1 : i32
    %53 = arith.addi %1, %c1_i32_26 : i32
    %c0_27 = arith.constant 0 : index
    %54 = arith.index_cast %53 : i32 to index
    %c2_28 = arith.constant 2 : index
    %c0_29 = arith.constant 0 : index
    %55 = vector.load %arg3[%c0_27, %54, %c2_28, %c0_29] : memref<1x18x18x4xf32, #tpu.memory_space<vmem>>, vector<1x16x16x4xf32>
    %56 = vector.shape_cast %55 : vector<1x16x16x4xf32> to vector<16x16x4xf32>
    %57 = vector.shape_cast %56 : vector<16x16x4xf32> to vector<256x4xf32>
    %58 = arith.truncf %57 : vector<256x4xf32> to vector<256x4xbf16>
    %c20 = arith.constant 20 : index
    %c0_30 = arith.constant 0 : index
    %59 = vector.load %arg4[%c20, %c0_30] : memref<36x128xf32, #tpu.memory_space<vmem>>, vector<4x128xf32>
    %60 = arith.truncf %59 : vector<4x128xf32> to vector<4x128xbf16>
    %cst_31 = arith.constant dense<0.000000e+00> : vector<256x128xf32>
    %61 = tpu.matmul %58, %60, %cst_31 {dimension_numbers = #tpu.dot_dimension_numbers<[1], [0], [0], [1], [0, 0, 1, 1], [], []>} : vector<256x4xbf16>, vector<4x128xbf16>, vector<256x128xf32> -> vector<256x128xf32>
    %62 = arith.addf %52, %61 : vector<256x128xf32>
    %c2_i32 = arith.constant 2 : i32
    %63 = arith.addi %1, %c2_i32 : i32
    %c0_32 = arith.constant 0 : index
    %64 = arith.index_cast %63 : i32 to index
    %c0_33 = arith.constant 0 : index
    %c0_34 = arith.constant 0 : index
    %65 = vector.load %arg3[%c0_32, %64, %c0_33, %c0_34] : memref<1x18x18x4xf32, #tpu.memory_space<vmem>>, vector<1x16x16x4xf32>
    %66 = vector.shape_cast %65 : vector<1x16x16x4xf32> to vector<16x16x4xf32>
    %67 = vector.shape_cast %66 : vector<16x16x4xf32> to vector<256x4xf32>
    %68 = arith.truncf %67 : vector<256x4xf32> to vector<256x4xbf16>
    %c24 = arith.constant 24 : index
    %c0_35 = arith.constant 0 : index
    %69 = vector.load %arg4[%c24, %c0_35] : memref<36x128xf32, #tpu.memory_space<vmem>>, vector<4x128xf32>
    %70 = arith.truncf %69 : vector<4x128xf32> to vector<4x128xbf16>
    %cst_36 = arith.constant dense<0.000000e+00> : vector<256x128xf32>
    %71 = tpu.matmul %68, %70, %cst_36 {dimension_numbers = #tpu.dot_dimension_numbers<[1], [0], [0], [1], [0, 0, 1, 1], [], []>} : vector<256x4xbf16>, vector<4x128xbf16>, vector<256x128xf32> -> vector<256x128xf32>
    %72 = arith.addf %62, %71 : vector<256x128xf32>
    %c2_i32_37 = arith.constant 2 : i32
    %73 = arith.addi %1, %c2_i32_37 : i32
    %c0_38 = arith.constant 0 : index
    %74 = arith.index_cast %73 : i32 to index
    %c1_39 = arith.constant 1 : index
    %c0_40 = arith.constant 0 : index
    %75 = vector.load %arg3[%c0_38, %74, %c1_39, %c0_40] : memref<1x18x18x4xf32, #tpu.memory_space<vmem>>, vector<1x16x16x4xf32>
    %76 = vector.shape_cast %75 : vector<1x16x16x4xf32> to vector<16x16x4xf32>
    %77 = vector.shape_cast %76 : vector<16x16x4xf32> to vector<256x4xf32>
    %78 = arith.truncf %77 : vector<256x4xf32> to vector<256x4xbf16>
    %c28 = arith.constant 28 : index
    %c0_41 = arith.constant 0 : index
    %79 = vector.load %arg4[%c28, %c0_41] : memref<36x128xf32, #tpu.memory_space<vmem>>, vector<4x128xf32>
    %80 = arith.truncf %79 : vector<4x128xf32> to vector<4x128xbf16>
    %cst_42 = arith.constant dense<0.000000e+00> : vector<256x128xf32>
    %81 = tpu.matmul %78, %80, %cst_42 {dimension_numbers = #tpu.dot_dimension_numbers<[1], [0], [0], [1], [0, 0, 1, 1], [], []>} : vector<256x4xbf16>, vector<4x128xbf16>, vector<256x128xf32> -> vector<256x128xf32>
    %82 = arith.addf %72, %81 : vector<256x128xf32>
    %c2_i32_43 = arith.constant 2 : i32
    %83 = arith.addi %1, %c2_i32_43 : i32
    %c0_44 = arith.constant 0 : index
    %84 = arith.index_cast %83 : i32 to index
    %c2_45 = arith.constant 2 : index
    %c0_46 = arith.constant 0 : index
    %85 = vector.load %arg3[%c0_44, %84, %c2_45, %c0_46] : memref<1x18x18x4xf32, #tpu.memory_space<vmem>>, vector<1x16x16x4xf32>
    %86 = vector.shape_cast %85 : vector<1x16x16x4xf32> to vector<16x16x4xf32>
    %87 = vector.shape_cast %86 : vector<16x16x4xf32> to vector<256x4xf32>
    %88 = arith.truncf %87 : vector<256x4xf32> to vector<256x4xbf16>
    %c32 = arith.constant 32 : index
    %c0_47 = arith.constant 0 : index
    %89 = vector.load %arg4[%c32, %c0_47] : memref<36x128xf32, #tpu.memory_space<vmem>>, vector<4x128xf32>
    %90 = arith.truncf %89 : vector<4x128xf32> to vector<4x128xbf16>
    %cst_48 = arith.constant dense<0.000000e+00> : vector<256x128xf32>
    %91 = tpu.matmul %88, %90, %cst_48 {dimension_numbers = #tpu.dot_dimension_numbers<[1], [0], [0], [1], [0, 0, 1, 1], [], []>} : vector<256x4xbf16>, vector<4x128xbf16>, vector<256x128xf32> -> vector<256x128xf32>
    %92 = arith.addf %82, %91 : vector<256x128xf32>
    %c0_49 = arith.constant 0 : index
    %c0_50 = arith.constant 0 : index
    %93 = vector.load %arg5[%c0_49, %c0_50] : memref<1x128xf32, #tpu.memory_space<vmem>>, vector<1x128xf32>
    %94 = vector.broadcast %93 : vector<1x128xf32> to vector<256x128xf32>
    %95 = arith.addf %92, %94 : vector<256x128xf32>
    %cst_51 = arith.constant 0.000000e+00 : f32
    %96 = vector.broadcast %cst_51 : f32 to vector<256x128xf32>
    %97 = arith.cmpf oge, %95, %96 : vector<256x128xf32>
    %c0_52 = arith.constant 0 : index
    %c0_53 = arith.constant 0 : index
    %98 = vector.load %arg6[%c0_52, %c0_53] : memref<1x128xf32, #tpu.memory_space<vmem>>, vector<1x128xf32>
    %99 = vector.broadcast %98 : vector<1x128xf32> to vector<256x128xf32>
    %100 = arith.mulf %99, %95 : vector<256x128xf32>
    %101 = arith.select %97, %95, %100 : vector<256x128xi1>, vector<256x128xf32>
    %102 = vector.shape_cast %101 : vector<256x128xf32> to vector<16x16x128xf32>
    %c0_54 = arith.constant 0 : index
    %c0_55 = arith.constant 0 : index
    %c0_56 = arith.constant 0 : index
    %c0_57 = arith.constant 0 : index
    %103 = vector.load %arg7[%c0_54, %c0_55, %c0_56, %c0_57] : memref<1x16x16x128xf32, #tpu.memory_space<vmem>>, vector<1x16x16x128xf32>
    %104 = vector.shape_cast %103 : vector<1x16x16x128xf32> to vector<16x16x128xf32>
    %105 = vector.shape_cast %102 : vector<16x16x128xf32> to vector<1x16x16x128xf32>
    tpu.vector_store %arg7[%c0_54, %c0_55, %c0_56, %c0_57], %105 {strides = array<i32>} : memref<1x16x16x128xf32, #tpu.memory_space<vmem>>, vector<1x16x16x128xf32>,
    return
  }
  func.func @transform_0(%arg0: i32, %arg1: i32, %arg2: i32) -> (i32, i32, i32, i32) {
    %c0_i32 = arith.constant 0 : i32
    %c0_i32_0 = arith.constant 0 : i32
    %c0_i32_1 = arith.constant 0 : i32
    %c0_i32_2 = arith.constant 0 : i32
    return %arg0, %c0_i32, %c0_i32_0, %c0_i32_1 : i32, i32, i32, i32
  }
  func.func @transform_1(%arg0: i32, %arg1: i32, %arg2: i32) -> (i32, i32) {
    %c0_i32 = arith.constant 0 : i32
    %c0_i32_0 = arith.constant 0 : i32
    return %c0_i32, %arg1 : i32, i32
  }
  func.func @transform_2(%arg0: i32, %arg1: i32, %arg2: i32) -> (i32, i32) {
    %c0_i32 = arith.constant 0 : i32
    %c0_i32_0 = arith.constant 0 : i32
    return %c0_i32, %arg1 : i32, i32
  }
  func.func @transform_3(%arg0: i32, %arg1: i32, %arg2: i32) -> (i32, i32) {
    %c0_i32 = arith.constant 0 : i32
    %c0_i32_0 = arith.constant 0 : i32
    return %c0_i32, %arg1 : i32, i32
  }
  func.func @transform_4(%arg0: i32, %arg1: i32, %arg2: i32) -> (i32, i32, i32, i32) {
    %c0_i32 = arith.constant 0 : i32
    %c0_i32_0 = arith.constant 0 : i32
    return %arg0, %arg2, %c0_i32, %arg1 : i32, i32, i32, i32
  }
}

</mosaic_0001>

<llo_original>
// kernel: _lambda_.1
$region0: #{_lambda_.1}
  #allocation0 [shape = 'u32[]', space=smem, size = 0x4, offset = 0x4, fixed_abs, tag = 'smem constant byte address 0x4 - core index']
  #allocation1 [shape = 'u32[144,128]{1,0:T(1,128)}', space=vmem, size = 0x12000, scoped, tag = 'internal scratch']
  %s0 = inlined_call_operand.vmem [shape: f32[2,18,18,4], index: 0, kind: input, shape index: {}]
  %s1 = inlined_call_operand.vmem [shape: f32[36,128], index: 1, kind: input, shape index: {}]
  %s2 = inlined_call_operand.vmem [shape: f32[1,128], index: 2, kind: input, shape index: {}]
  %s3 = inlined_call_operand.vmem [shape: f32[1,128], index: 3, kind: input, shape index: {}]
  %s4 = inlined_call_operand.vmem [shape: f32[2,16,16,128], index: 4, kind: output, shape index: {}]
  %s5 = sld [smem:[#allocation0]]
  $region49: #{_lambda_.1} parent=0
    _
  %s7 = ssub.s32 1, %s5
  %s8 = scalar_select 0, %s7, %s5
  loop: start=0, step=1, limit=4
  $region2: #{_lambda_.1} parent=0 // loop_pre_header
    _
  $region3: #{_lambda_.1} parent=0 // loop_header
    %s10 = sphi 0, %s14
    %p11 = scmp.ge.s32.totalorder %s10, 4
    %s17 = sphi 0, %s36
    %s18 = sphi 0, %s32
    %s19 = sphi 0, %s28
    %s20 = sphi 0, %s17
    %s21 = sphi 0, %s18
    %s22 = sphi 0, %s19
    %s23 = sphi 0, %s20
    %s24 = sphi 0, %s21
    %s25 = sphi 0, %s22
    %s39 = sphi 0, %s41
    %s42 = sphi 0, %s39
    %s43 = sphi 0, %s42
    %s59 = sphi 0, %s43
    %s65 = sphi 0, %s67
    %s68 = sphi 0, %s65
    %s69 = sphi 0, %s68
    %s85 = sphi 0, %s69
    %s91 = sphi 0, %s93
    %s94 = sphi 0, %s91
    %s95 = sphi 0, %s94
    %s111 = sphi 0, %s95
    %s117 = sphi 0, %s119
    %s120 = sphi 0, %s117
    %s121 = sphi 0, %s120
    %s137 = sphi 0, %s121
    %s147 = sphi 0, %s149
    %s150 = sphi 0, %s147
    %s151 = sphi 0, %s150
    %s167 = sphi 0, %s151
  $region4: #{_lambda_.1} parent=0 // loop_header_branch
    %13 = sbr.rel (%p11) target = $region8
  $region5: #{_lambda_.1} parent=0 // loop_body
    %s15 = ssub.s32 %s10, 1
    %s16 = ssub.s32 %s10, 2
    %s26 = sadd.s32 1, %s19
    %p27 = scmp.ge.s32.totalorder %s26, 1
    %s28 = scalar_select %p27, 0, %s26
    %s29 = sadd.s32 1, %s18
    %s30 = scalar_select %p27, %s29, %s18
    %p31 = scmp.ge.s32.totalorder %s30, 1
    %s32 = scalar_select %p31, 0, %s30
    %s33 = sadd.s32 1, %s17
    %s34 = scalar_select %p31, %s33, %s17
    %p35 = scmp.ge.s32.totalorder %s34, 2
    %s36 = scalar_select %p35, 0, %s34
    %s37 = ssub.s32 %s17, %s36
    %p38 = scmp.eq.s32.totalorder %s37, 0
    %s40 = sadd.s32 %s39, 1
    %s41 = scalar_select %p38, %s39, %s40
    %p44 = pneg %p38
    %p45 = scmp.eq.s32.totalorder %s10, 1
    %p46 = por %p44, %p45
    %p47 = scmp.ne.s32.totalorder %s39, %s42
    %p48 = scmp.eq.s32.totalorder %s10, 0
    %p49 = por %p47, %p48
    %p50 = scmp.ne.s32.totalorder %s39, %s42
    %p51 = scmp.eq.s32.totalorder %s15, 1
    %p52 = por %p50, %p51
    %p53 = scmp.ne.s32.totalorder %s42, %s43
    %p54 = scmp.eq.s32.totalorder %s15, 0
    %p55 = por %p53, %p54
    %p56 = scmp.ne.s32.totalorder %s42, %s43
    %p57 = scmp.eq.s32.totalorder %s16, 1
    %p58 = por %p56, %p57
    %p60 = scmp.ne.s32.totalorder %s43, %s59
    %p61 = scmp.eq.s32.totalorder %s16, 0
    %p62 = por %p60, %p61
    %s63 = ssub.s32 %s18, %s32
    %p64 = scmp.eq.s32.totalorder %s63, 0
    %s66 = sadd.s32 %s65, 1
    %s67 = scalar_select %p64, %s65, %s66
    %p70 = pneg %p64
    %p71 = scmp.eq.s32.totalorder %s10, 1
    %p72 = por %p70, %p71
    %p73 = scmp.ne.s32.totalorder %s65, %s68
    %p74 = scmp.eq.s32.totalorder %s10, 0
    %p75 = por %p73, %p74
    %p76 = scmp.ne.s32.totalorder %s65, %s68
    %p77 = scmp.eq.s32.totalorder %s15, 1
    %p78 = por %p76, %p77
    %p79 = scmp.ne.s32.totalorder %s68, %s69
    %p80 = scmp.eq.s32.totalorder %s15, 0
    %p81 = por %p79, %p80
    %p82 = scmp.ne.s32.totalorder %s68, %s69
    %p83 = scmp.eq.s32.totalorder %s16, 1
    %p84 = por %p82, %p83
    %p86 = scmp.ne.s32.totalorder %s69, %s85
    %p87 = scmp.eq.s32.totalorder %s16, 0
    %p88 = por %p86, %p87
    %s89 = ssub.s32 %s18, %s32
    %p90 = scmp.eq.s32.totalorder %s89, 0
    %s92 = sadd.s32 %s91, 1
    %s93 = scalar_select %p90, %s91, %s92
    %p96 = pneg %p90
    %p97 = scmp.eq.s32.totalorder %s10, 1
    %p98 = por %p96, %p97
    %p99 = scmp.ne.s32.totalorder %s91, %s94
    %p100 = scmp.eq.s32.totalorder %s10, 0
    %p101 = por %p99, %p100
    %p102 = scmp.ne.s32.totalorder %s91, %s94
    %p103 = scmp.eq.s32.totalorder %s15, 1
    %p104 = por %p102, %p103
    %p105 = scmp.ne.s32.totalorder %s94, %s95
    %p106 = scmp.eq.s32.totalorder %s15, 0
    %p107 = por %p105, %p106
    %p108 = scmp.ne.s32.totalorder %s94, %s95
    %p109 = scmp.eq.s32.totalorder %s16, 1
    %p110 = por %p108, %p109
    %p112 = scmp.ne.s32.totalorder %s95, %s111
    %p113 = scmp.eq.s32.totalorder %s16, 0
    %p114 = por %p112, %p113
    %s115 = ssub.s32 %s18, %s32
    %p116 = scmp.eq.s32.totalorder %s115, 0
    %s118 = sadd.s32 %s117, 1
    %s119 = scalar_select %p116, %s117, %s118
    %p122 = pneg %p116
    %p123 = scmp.eq.s32.totalorder %s10, 1
    %p124 = por %p122, %p123
    %p125 = scmp.ne.s32.totalorder %s117, %s120
    %p126 = scmp.eq.s32.totalorder %s10, 0
    %p127 = por %p125, %p126
    %p128 = scmp.ne.s32.totalorder %s117, %s120
    %p129 = scmp.eq.s32.totalorder %s15, 1
    %p130 = por %p128, %p129
    %p131 = scmp.ne.s32.totalorder %s120, %s121
    %p132 = scmp.eq.s32.totalorder %s15, 0
    %p133 = por %p131, %p132
    %p134 = scmp.ne.s32.totalorder %s120, %s121
    %p135 = scmp.eq.s32.totalorder %s16, 1
    %p136 = por %p134, %p135
    %p138 = scmp.ne.s32.totalorder %s121, %s137
    %p139 = scmp.eq.s32.totalorder %s16, 0
    %p140 = por %p138, %p139
    %s141 = ssub.s32 %s17, %s36
    %s142 = ssub.s32 %s19, %s28
    %s143 = sor.u32 %s141, %s142
    %s144 = ssub.s32 %s18, %s32
    %s145 = sor.u32 %s143, %s144
    %p146 = scmp.eq.s32.totalorder %s145, 0
    %s148 = sadd.s32 %s147, 1
    %s149 = scalar_select %p146, %s147, %s148
    %p152 = pneg %p146
    %p153 = scmp.eq.s32.totalorder %s10, 1
    %p154 = por %p152, %p153
    %p155 = scmp.ne.s32.totalorder %s147, %s150
    %p156 = scmp.eq.s32.totalorder %s10, 0
    %p157 = por %p155, %p156
    %p158 = scmp.ne.s32.totalorder %s147, %s150
    %p159 = scmp.eq.s32.totalorder %s15, 1
    %p160 = por %p158, %p159
    %p161 = scmp.ne.s32.totalorder %s150, %s151
    %p162 = scmp.eq.s32.totalorder %s15, 0
    %p163 = por %p161, %p162
    %p164 = scmp.ne.s32.totalorder %s150, %s151
    %p165 = scmp.eq.s32.totalorder %s16, 1
    %p166 = por %p164, %p165
    %p168 = scmp.ne.s32.totalorder %s151, %s167
    %p169 = scmp.eq.s32.totalorder %s16, 0
    %p170 = por %p168, %p169
    %p171 = scmp.le.s32.totalorder 1, %s10
    %p172 = scmp.lt.s32.totalorder %s10, 3
    %p173 = pnand %p171, %p172
    %p174 = pneg %p173
    // Predicated region
    $region9: #{_lambda_.1} parent=5 // pred_check
      _
    $region10: #{_lambda_.1} parent=5 // pred_check_branch
      %176 = sbr.rel (%p173) target = $region12
    $region11: #{_lambda_.1} parent=5 // pred_region
      %s177 = ssub.s32 %s10, 1
      // Predicated region
      $region13: #{_lambda_.1} parent=11 // pred_check
        %p178 = pneg %p81
      $region14: #{_lambda_.1} parent=11 // pred_check_branch
        %180 = sbr.rel (%p178) target = $region16
      $region15: #{_lambda_.1} parent=11 // pred_region
        %p181 = scmp.lt.s32.totalorder %s21, 0
        %s182 = scalar_select %p181, %s21, 0
        %s183 = smul.addr %s182, 8
        %s184 = scalar_lea.vmem %s1, %s183
      $region16: #{_lambda_.1} parent=11 // pred_fallthru
        _
      // Predicated region
      $region17: #{_lambda_.1} parent=11 // pred_check
        %p185 = pneg %p107
      $region18: #{_lambda_.1} parent=11 // pred_check_branch
        %187 = sbr.rel (%p185) target = $region20
      $region19: #{_lambda_.1} parent=11 // pred_region
        %p188 = scmp.lt.s32.totalorder %s21, 0
        %s189 = scalar_select %p188, %s21, 0
        %s190 = scalar_lea.vmem %s2, %s189
      $region20: #{_lambda_.1} parent=11 // pred_fallthru
        _
      // Predicated region
      $region21: #{_lambda_.1} parent=11 // pred_check
        %p191 = pneg %p133
      $region22: #{_lambda_.1} parent=11 // pred_check_branch
        %193 = sbr.rel (%p191) target = $region24
      $region23: #{_lambda_.1} parent=11 // pred_region
        %p194 = scmp.lt.s32.totalorder %s21, 0
        %s195 = scalar_select %p194, %s21, 0
        %s196 = scalar_lea.vmem %s3, %s195
      $region24: #{_lambda_.1} parent=11 // pred_fallthru
        _
    $region12: #{_lambda_.1} parent=5 // pred_fallthru
      _
    %p197 = scmp.lt.s32.totalorder %s10, 2
    // Predicated region
    $region25: #{_lambda_.1} parent=5 // pred_check
      %p198 = pneg %p197
    $region26: #{_lambda_.1} parent=5 // pred_check_branch
      %200 = sbr.rel (%p198) target = $region28
    $region27: #{_lambda_.1} parent=5 // pred_region
      // Predicated region
      $region29: #{_lambda_.1} parent=27 // pred_check
        %p201 = pneg %p49
      $region30: #{_lambda_.1} parent=27 // pred_check_branch
        %203 = sbr.rel (%p201) target = $region32
      $region31: #{_lambda_.1} parent=27 // pred_region
        %p204 = scmp.lt.s32.totalorder %s17, 1
        %s205 = scalar_select %p204, %s17, 1
        %s206 = smul.addr %s205, 54
        %s207 = smul.addr %s206, 8
        %s208 = scalar_lea.vmem %s0, %s207
      $region32: #{_lambda_.1} parent=27 // pred_fallthru
        _
    $region28: #{_lambda_.1} parent=5 // pred_fallthru
      _
    %p209 = scmp.le.s32.totalorder 1, %s10
    %p210 = scmp.lt.s32.totalorder %s10, 3
    %p211 = pnand %p209, %p210
    %p212 = pneg %p211
    // Predicated region
    $region33: #{_lambda_.1} parent=5 // pred_check
      _
    $region34: #{_lambda_.1} parent=5 // pred_check_branch
      %214 = sbr.rel (%p211) target = $region36
    $region35: #{_lambda_.1} parent=5 // pred_region
      %s215 = ssub.s32 %s10, 1
      %p216 = scmp.lt.s32.totalorder %s20, 1
      %s217 = scalar_select %p216, %s20, 1
      %s218 = smul.addr %s217, 54
      %s219 = smul.addr %s218, 8
      %s220 = scalar_lea.vmem %s0, %s219
      %p221 = pneg %p55
      %p222 = pneg %p52
      %p223 = scmp.lt.s32.totalorder %s21, 0
      %s224 = scalar_select %p223, %s21, 0
      %s225 = smul.addr %s224, 8
      %s226 = scalar_lea.vmem %s1, %s225
      %p227 = pneg %p81
      %p228 = pneg %p78
      %p229 = scmp.lt.s32.totalorder %s21, 0
      %s230 = scalar_select %p229, %s21, 0
      %s231 = scalar_lea.vmem %s2, %s230
      %p232 = pneg %p107
      %p233 = pneg %p104
      %p234 = scmp.lt.s32.totalorder %s21, 0
      %s235 = scalar_select %p234, %s21, 0
      %s236 = scalar_lea.vmem %s3, %s235
      %p237 = pneg %p133
      %p238 = pneg %p130
      %p239 = pneg %p163
      %p240 = pneg %p160
      %s241 = smul.u32 16, %s22
      %p242 = scmp.lt.s32.totalorder %s20, 1
      %s243 = scalar_select %p242, %s20, 1
      %p244 = scmp.lt.s32.totalorder %s241, 15
      %s245 = scalar_select %p244, %s241, 15
      %p246 = scmp.lt.s32.totalorder %s21, 0
      %s247 = scalar_select %p246, %s21, 0
      %s248 = smul.addr %s245, 2
      %s249 = sadd.s32 %s247, %s248
      %s250 = smul.addr %s243, 32
      %s251 = sadd.s32 %s249, %s250
      %s252 = smul.addr %s251, 8
      %s253 = scalar_lea.vmem %s4, %s252
      %p254 = scmp.lt.s32.totalorder %s20, 1
      %s255 = scalar_select %p254, %s20, 1
      %s256 = smul.addr %s255, 54
      %s257 = smul.addr %s256, 8
      %s258 = scalar_lea.vmem %s0, %s257
      %p259 = scmp.lt.s32.totalorder %s21, 0
      %s260 = scalar_select %p259, %s21, 0
      %s261 = smul.addr %s260, 8
      %s262 = scalar_lea.vmem %s1, %s261
      %p263 = scmp.lt.s32.totalorder %s21, 0
      %s264 = scalar_select %p263, %s21, 0
      %s265 = scalar_lea.vmem %s2, %s264
      %p266 = scmp.lt.s32.totalorder %s21, 0
      %s267 = scalar_select %p266, %s21, 0
      %s268 = scalar_lea.vmem %s3, %s267
      %s269 = smul.u32 16, %s22
      %p270 = scmp.lt.s32.totalorder %s20, 1
      %s271 = scalar_select %p270, %s20, 1
      %p272 = scmp.lt.s32.totalorder %s269, 15
      %s273 = scalar_select %p272, %s269, 15
      %p274 = scmp.lt.s32.totalorder %s21, 0
      %s275 = scalar_select %p274, %s21, 0
      %s276 = smul.addr %s273, 2
      %s277 = sadd.s32 %s275, %s276
      %s278 = smul.addr %s271, 32
      %s279 = sadd.s32 %s277, %s278
      %s280 = smul.addr %s279, 8
      %s281 = scalar_lea.vmem %s4, %s280
      %s282 = smul.u32 16, %s22
      %s284 = smul.u32 %s22, 16
      %s285 = smul.u32 %s284, 24
      %s286 = scalar_lea.vmem %s258, %s285
      %v287 = vld [vmem:[%s286] sm:$0xff]
      %v288 = vld [vmem:[%s286 + $0x8] sm:$0xff]
      %v289 = vld [vmem:[%s286 + $0x18] sm:$0xff]
      %v290 = vld [vmem:[%s286 + $0x20] sm:$0xff]
      %v291 = vld [vmem:[%s286 + $0x30] sm:$0xff]
      %v292 = vld [vmem:[%s286 + $0x38] sm:$0xff]
      %v293 = vld [vmem:[%s286 + $0x48] sm:$0xff]
      %v294 = vld [vmem:[%s286 + $0x50] sm:$0xff]
      %v295 = vld [vmem:[%s286 + $0x60] sm:$0xff]
      %v296 = vld [vmem:[%s286 + $0x68] sm:$0xff]
      %v297 = vld [vmem:[%s286 + $0x78] sm:$0xff]
      %v298 = vld [vmem:[%s286 + $0x80] sm:$0xff]
      %v299 = vld [vmem:[%s286 + $0x90] sm:$0xff]
      %v300 = vld [vmem:[%s286 + $0x98] sm:$0xff]
      %v301 = vld [vmem:[%s286 + $0xa8] sm:$0xff]
      %v302 = vld [vmem:[%s286 + $0xb0] sm:$0xff]
      %v303 = vld [vmem:[%s286 + $0xc0] sm:$0xff]
      %v304 = vld [vmem:[%s286 + $0xc8] sm:$0xff]
      %v305 = vld [vmem:[%s286 + $0xd8] sm:$0xff]
      %v306 = vld [vmem:[%s286 + $0xe0] sm:$0xff]
      %v307 = vld [vmem:[%s286 + $0xf0] sm:$0xff]
      %v308 = vld [vmem:[%s286 + $0xf8] sm:$0xff]
      %v309 = vld [vmem:[%s286 + $0x108] sm:$0xff]
      %v310 = vld [vmem:[%s286 + $0x110] sm:$0xff]
      %v311 = vld [vmem:[%s286 + $0x120] sm:$0xff]
      %v312 = vld [vmem:[%s286 + $0x128] sm:$0xff]
      %v313 = vld [vmem:[%s286 + $0x138] sm:$0xff]
      %v314 = vld [vmem:[%s286 + $0x140] sm:$0xff]
      %v315 = vld [vmem:[%s286 + $0x150] sm:$0xff]
      %v316 = vld [vmem:[%s286 + $0x158] sm:$0xff]
      %v317 = vld [vmem:[%s286 + $0x168] sm:$0xff]
      %v318 = vld [vmem:[%s286 + $0x170] sm:$0xff]
      %v319 = vpack.c.bf16 %v288, %v287
      %v320 = vpack.c.bf16 %v290, %v289
      %v321 = vpack.c.bf16 %v292, %v291
      %v322 = vpack.c.bf16 %v294, %v293
      %v323 = vpack.c.bf16 %v296, %v295
      %v324 = vpack.c.bf16 %v298, %v297
      %v325 = vpack.c.bf16 %v300, %v299
      %v326 = vpack.c.bf16 %v302, %v301
      %v327 = vpack.c.bf16 %v304, %v303
      %v328 = vpack.c.bf16 %v306, %v305
      %v329 = vpack.c.bf16 %v308, %v307
      %v330 = vpack.c.bf16 %v310, %v309
      %v331 = vpack.c.bf16 %v312, %v311
      %v332 = vpack.c.bf16 %v314, %v313
      %v333 = vpack.c.bf16 %v316, %v315
      %v334 = vpack.c.bf16 %v318, %v317
      %v335 = vld [vmem:[%s262] sm:$0xf]
      %v336 = vpack.c.bf16 %v335, %v335
      %v337 = vld [vmem:[%s286 + $0x1] sm:$0xff]
      %v338 = vld [vmem:[%s286 + $0x9] sm:$0xff]
      %v339 = vld [vmem:[%s286 + $0x19] sm:$0xff]
      %v340 = vld [vmem:[%s286 + $0x21] sm:$0xff]
      %v341 = vld [vmem:[%s286 + $0x31] sm:$0xff]
      %v342 = vld [vmem:[%s286 + $0x39] sm:$0xff]
      %v343 = vld [vmem:[%s286 + $0x49] sm:$0xff]
      %v344 = vld [vmem:[%s286 + $0x51] sm:$0xff]
      %v345 = vld [vmem:[%s286 + $0x61] sm:$0xff]
      %v346 = vld [vmem:[%s286 + $0x69] sm:$0xff]
      %v347 = vld [vmem:[%s286 + $0x79] sm:$0xff]
      %v348 = vld [vmem:[%s286 + $0x81] sm:$0xff]
      %v349 = vld [vmem:[%s286 + $0x91] sm:$0xff]
      %v350 = vld [vmem:[%s286 + $0x99] sm:$0xff]
      %v351 = vld [vmem:[%s286 + $0xa9] sm:$0xff]
      %v352 = vld [vmem:[%s286 + $0xb1] sm:$0xff]
      %v353 = vld [vmem:[%s286 + $0xc1] sm:$0xff]
      %v354 = vld [vmem:[%s286 + $0xc9] sm:$0xff]
      %v355 = vld [vmem:[%s286 + $0xd9] sm:$0xff]
      %v356 = vld [vmem:[%s286 + $0xe1] sm:$0xff]
      %v357 = vld [vmem:[%s286 + $0xf1] sm:$0xff]
      %v358 = vld [vmem:[%s286 + $0xf9] sm:$0xff]
      %v359 = vld [vmem:[%s286 + $0x109] sm:$0xff]
      %v360 = vld [vmem:[%s286 + $0x111] sm:$0xff]
      %v361 = vld [vmem:[%s286 + $0x121] sm:$0xff]
      %v362 = vld [vmem:[%s286 + $0x129] sm:$0xff]
      %v363 = vld [vmem:[%s286 + $0x139] sm:$0xff]
      %v364 = vld [vmem:[%s286 + $0x141] sm:$0xff]
      %v365 = vld [vmem:[%s286 + $0x151] sm:$0xff]
      %v366 = vld [vmem:[%s286 + $0x159] sm:$0xff]
      %v367 = vld [vmem:[%s286 + $0x169] sm:$0xff]
      %v368 = vld [vmem:[%s286 + $0x171] sm:$0xff]
      %v369 = vpack.c.bf16 %v338, %v337
      %v370 = vpack.c.bf16 %v340, %v339
      %v371 = vpack.c.bf16 %v342, %v341
      %v372 = vpack.c.bf16 %v344, %v343
      %v373 = vpack.c.bf16 %v346, %v345
      %v374 = vpack.c.bf16 %v348, %v347
      %v375 = vpack.c.bf16 %v350, %v349
      %v376 = vpack.c.bf16 %v352, %v351
      %v377 = vpack.c.bf16 %v354, %v353
      %v378 = vpack.c.bf16 %v356, %v355
      %v379 = vpack.c.bf16 %v358, %v357
      %v380 = vpack.c.bf16 %v360, %v359
      %v381 = vpack.c.bf16 %v362, %v361
      %v382 = vpack.c.bf16 %v364, %v363
      %v383 = vpack.c.bf16 %v366, %v365
      %v384 = vpack.c.bf16 %v368, %v367
      %v385 = vld [vmem:[%s262 + $0x4] sm:$0xf]
      %v386 = vpack.c.bf16 %v385, %v385
      %vm387 = vcmask 31744
      %v389 = vsel %vm387, %v369, 0
      %v392 = vsel %vm387, %v370, 0
      %v395 = vsel %vm387, %v371, 0
      %v398 = vsel %vm387, %v372, 0
      %v401 = vsel %vm387, %v373, 0
      %v404 = vsel %vm387, %v374, 0
      %v407 = vsel %vm387, %v375, 0
      %v410 = vsel %vm387, %v376, 0
      %v413 = vsel %vm387, %v377, 0
      %v416 = vsel %vm387, %v378, 0
      %v419 = vsel %vm387, %v379, 0
      %v422 = vsel %vm387, %v380, 0
      %v425 = vsel %vm387, %v381, 0
      %v428 = vsel %vm387, %v382, 0
      %v431 = vsel %vm387, %v383, 0
      %v434 = vsel %vm387, %v384, 0
      %vm436 = vcmask 1041408
      %v438 = vsel %vm436, %v386, 0
      %440 = vmatprep.subr.bf16.mxu0 0
      %441 = vmatpush1.bf16.msra.mxu0 %v438
      %442 = vmatprep.subr.bf16.mxu0 0
      %443 = vmatpush1.bf16.msra.mxu0 0
      %444 = vmatprep.subr.bf16.mxu0 0
      %445 = vmatpush1.bf16.msra.mxu0 0
      %446 = vmatprep.subr.bf16.mxu0 0
      %447 = vmatpush1.bf16.msra.mxu0 0
      %448 = vmatprep.subr.bf16.mxu0 0
      %449 = vmatpush1.bf16.msra.mxu0 0
      %450 = vmatprep.subr.bf16.mxu0 0
      %451 = vmatpush1.bf16.msra.mxu0 0
      %452 = vmatprep.subr.bf16.mxu0 0
      %453 = vmatpush1.bf16.msra.mxu0 0
      %454 = vmatprep.subr.bf16.mxu0 0
      %455 = vmatpush1.bf16.msra.mxu0 0
      %456 = vmatprep.subr.bf16.mxu0 0
      %457 = vmatpush1.bf16.msra.mxu0 0
      %458 = vmatprep.subr.bf16.mxu0 0
      %459 = vmatpush1.bf16.msra.mxu0 0
      %460 = vmatprep.subr.bf16.mxu0 0
      %461 = vmatpush1.bf16.msra.mxu0 0
      %462 = vmatprep.subr.bf16.mxu0 0
      %463 = vmatpush1.bf16.msra.mxu0 0
      %464 = vmatprep.subr.bf16.mxu0 0
      %465 = vmatpush1.bf16.msra.mxu0 0
      %466 = vmatprep.subr.bf16.mxu0 0
      %467 = vmatpush1.bf16.msra.mxu0 0
      %468 = vmatprep.subr.bf16.mxu0 0
      %469 = vmatpush1.bf16.msra.mxu0 0
      %470 = vmatprep.subr.bf16.mxu0 0
      %471 = vmatpush1.bf16.msra.mxu0 0
      %472 = vmatprep.mubr.bf16.mxu0 0
      %473 = vmatmul.mubr.bf16.gmra.mrb[0].mxu0 %v389
      %v474 = vpop.f32.mrb[0].mxu0
      %v475 = vadd.f32 0.0, %v474
      %v476 = vpop.f32.mrb[0].mxu0
      %v477 = vpop.f32.mrb[0].mxu0
      %v478 = vadd.f32 0.0, %v477
      %v479 = vpop.f32.mrb[0].mxu0
      %480 = vmatprep.mubr.bf16.mxu0 0
      %481 = vmatmul.mubr.bf16.gmra.mrb[0].mxu0 %v392
      %v482 = vpop.f32.mrb[0].mxu0
      %v483 = vadd.f32 0.0, %v482
      %v484 = vpop.f32.mrb[0].mxu0
      %v485 = vpop.f32.mrb[0].mxu0
      %v486 = vadd.f32 0.0, %v485
      %v487 = vpop.f32.mrb[0].mxu0
      %488 = vmatprep.mubr.bf16.mxu0 0
      %489 = vmatmul.mubr.bf16.gmra.mrb[0].mxu0 %v395
      %v490 = vpop.f32.mrb[0].mxu0
      %v491 = vadd.f32 0.0, %v490
      %v492 = vpop.f32.mrb[0].mxu0
      %v493 = vpop.f32.mrb[0].mxu0
      %v494 = vadd.f32 0.0, %v493
      %v495 = vpop.f32.mrb[0].mxu0
      %496 = vmatprep.mubr.bf16.mxu0 0
      %497 = vmatmul.mubr.bf16.gmra.mrb[0].mxu0 %v398
      %v498 = vpop.f32.mrb[0].mxu0
      %v499 = vadd.f32 0.0, %v498
      %v500 = vpop.f32.mrb[0].mxu0
      %v501 = vpop.f32.mrb[0].mxu0
      %v502 = vadd.f32 0.0, %v501
      %v503 = vpop.f32.mrb[0].mxu0
      %504 = vmatprep.mubr.bf16.mxu0 0
      %505 = vmatmul.mubr.bf16.gmra.mrb[0].mxu0 %v401
      %v506 = vpop.f32.mrb[0].mxu0
      %v507 = vadd.f32 0.0, %v506
      %v508 = vpop.f32.mrb[0].mxu0
      %v509 = vpop.f32.mrb[0].mxu0
      %v510 = vadd.f32 0.0, %v509
      %v511 = vpop.f32.mrb[0].mxu0
      %512 = vmatprep.mubr.bf16.mxu0 0
      %513 = vmatmul.mubr.bf16.gmra.mrb[0].mxu0 %v404
      %v514 = vpop.f32.mrb[0].mxu0
      %v515 = vadd.f32 0.0, %v514
      %v516 = vpop.f32.mrb[0].mxu0
      %v517 = vpop.f32.mrb[0].mxu0
      %v518 = vadd.f32 0.0, %v517
      %v519 = vpop.f32.mrb[0].mxu0
      %520 = vmatprep.mubr.bf16.mxu0 0
      %521 = vmatmul.mubr.bf16.gmra.mrb[0].mxu0 %v407
      %v522 = vpop.f32.mrb[0].mxu0
      %v523 = vadd.f32 0.0, %v522
      %v524 = vpop.f32.mrb[0].mxu0
      %v525 = vpop.f32.mrb[0].mxu0
      %v526 = vadd.f32 0.0, %v525
      %v527 = vpop.f32.mrb[0].mxu0
      %528 = vmatprep.mubr.bf16.mxu0 0
      %529 = vmatmul.mubr.bf16.gmra.mrb[0].mxu0 %v410
      %v530 = vpop.f32.mrb[0].mxu0
      %v531 = vadd.f32 0.0, %v530
      %v532 = vpop.f32.mrb[0].mxu0
      %v533 = vpop.f32.mrb[0].mxu0
      %v534 = vadd.f32 0.0, %v533
      %v535 = vpop.f32.mrb[0].mxu0
      %536 = vmatprep.mubr.bf16.mxu0 0
      %537 = vmatmul.mubr.bf16.gmra.mrb[0].mxu0 %v413
      %v538 = vpop.f32.mrb[0].mxu0
      %v539 = vadd.f32 0.0, %v538
      %v540 = vpop.f32.mrb[0].mxu0
      %v541 = vpop.f32.mrb[0].mxu0
      %v542 = vadd.f32 0.0, %v541
      %v543 = vpop.f32.mrb[0].mxu0
      %544 = vmatprep.mubr.bf16.mxu0 0
      %545 = vmatmul.mubr.bf16.gmra.mrb[0].mxu0 %v416
      %v546 = vpop.f32.mrb[0].mxu0
      %v547 = vadd.f32 0.0, %v546
      %v548 = vpop.f32.mrb[0].mxu0
      %v549 = vpop.f32.mrb[0].mxu0
      %v550 = vadd.f32 0.0, %v549
      %v551 = vpop.f32.mrb[0].mxu0
      %552 = vmatprep.mubr.bf16.mxu0 0
      %553 = vmatmul.mubr.bf16.gmra.mrb[0].mxu0 %v419
      %v554 = vpop.f32.mrb[0].mxu0
      %v555 = vadd.f32 0.0, %v554
      %v556 = vpop.f32.mrb[0].mxu0
      %v557 = vpop.f32.mrb[0].mxu0
      %v558 = vadd.f32 0.0, %v557
      %v559 = vpop.f32.mrb[0].mxu0
      %560 = vmatprep.mubr.bf16.mxu0 0
      %561 = vmatmul.mubr.bf16.gmra.mrb[0].mxu0 %v422
      %v562 = vpop.f32.mrb[0].mxu0
      %v563 = vadd.f32 0.0, %v562
      %v564 = vpop.f32.mrb[0].mxu0
      %v565 = vpop.f32.mrb[0].mxu0
      %v566 = vadd.f32 0.0, %v565
      %v567 = vpop.f32.mrb[0].mxu0
      %568 = vmatprep.mubr.bf16.mxu0 0
      %569 = vmatmul.mubr.bf16.gmra.mrb[0].mxu0 %v425
      %v570 = vpop.f32.mrb[0].mxu0
      %v571 = vadd.f32 0.0, %v570
      %v572 = vpop.f32.mrb[0].mxu0
      %v573 = vpop.f32.mrb[0].mxu0
      %v574 = vadd.f32 0.0, %v573
      %v575 = vpop.f32.mrb[0].mxu0
      %576 = vmatprep.mubr.bf16.mxu0 0
      %577 = vmatmul.mubr.bf16.gmra.mrb[0].mxu0 %v428
      %v578 = vpop.f32.mrb[0].mxu0
      %v579 = vadd.f32 0.0, %v578
      %v580 = vpop.f32.mrb[0].mxu0
      %v581 = vpop.f32.mrb[0].mxu0
      %v582 = vadd.f32 0.0, %v581
      %v583 = vpop.f32.mrb[0].mxu0
      %584 = vmatprep.mubr.bf16.mxu0 0
      %585 = vmatmul.mubr.bf16.gmra.mrb[0].mxu0 %v431
      %v586 = vpop.f32.mrb[0].mxu0
      %v587 = vadd.f32 0.0, %v586
      %v588 = vpop.f32.mrb[0].mxu0
      %v589 = vpop.f32.mrb[0].mxu0
      %v590 = vadd.f32 0.0, %v589
      %v591 = vpop.f32.mrb[0].mxu0
      %592 = vmatprep.mubr.bf16.mxu0 0
      %593 = vmatmul.mubr.bf16.gmra.mrb[0].mxu0 %v434
      %v594 = vpop.f32.mrb[0].mxu0
      %v595 = vadd.f32 0.0, %v594
      %v596 = vpop.f32.mrb[0].mxu0
      %v597 = vpop.f32.mrb[0].mxu0
      %v598 = vadd.f32 0.0, %v597
      %v599 = vpop.f32.mrb[0].mxu0
      %600 = vdwg.mxu0
      %v602 = vsel %vm387, %v319, 0
      %v605 = vsel %vm387, %v320, 0
      %v608 = vsel %vm387, %v321, 0
      %v611 = vsel %vm387, %v322, 0
      %v614 = vsel %vm387, %v323, 0
      %v617 = vsel %vm387, %v324, 0
      %v620 = vsel %vm387, %v325, 0
      %v623 = vsel %vm387, %v326, 0
      %v626 = vsel %vm387, %v327, 0
      %v629 = vsel %vm387, %v328, 0
      %v632 = vsel %vm387, %v329, 0
      %v635 = vsel %vm387, %v330, 0
      %v638 = vsel %vm387, %v331, 0
      %v641 = vsel %vm387, %v332, 0
      %v644 = vsel %vm387, %v333, 0
      %v647 = vsel %vm387, %v334, 0
      %v650 = vsel %vm436, %v336, 0
      %652 = vmatprep.subr.bf16.mxu0 0
      %653 = vmatpush1.bf16.msra.mxu0 %v650
      %654 = vmatprep.subr.bf16.mxu0 0
      %655 = vmatpush1.bf16.msra.mxu0 0
      %656 = vmatprep.subr.bf16.mxu0 0
      %657 = vmatpush1.bf16.msra.mxu0 0
      %658 = vmatprep.subr.bf16.mxu0 0
      %659 = vmatpush1.bf16.msra.mxu0 0
      %660 = vmatprep.subr.bf16.mxu0 0
      %661 = vmatpush1.bf16.msra.mxu0 0
      %662 = vmatprep.subr.bf16.mxu0 0
      %663 = vmatpush1.bf16.msra.mxu0 0
      %664 = vmatprep.subr.bf16.mxu0 0
      %665 = vmatpush1.bf16.msra.mxu0 0
      %666 = vmatprep.subr.bf16.mxu0 0
      %667 = vmatpush1.bf16.msra.mxu0 0
      %668 = vmatprep.subr.bf16.mxu0 0
      %669 = vmatpush1.bf16.msra.mxu0 0
      %670 = vmatprep.subr.bf16.mxu0 0
      %671 = vmatpush1.bf16.msra.mxu0 0
      %672 = vmatprep.subr.bf16.mxu0 0
      %673 = vmatpush1.bf16.msra.mxu0 0
      %674 = vmatprep.subr.bf16.mxu0 0
      %675 = vmatpush1.bf16.msra.mxu0 0
      %676 = vmatprep.subr.bf16.mxu0 0
      %677 = vmatpush1.bf16.msra.mxu0 0
      %678 = vmatprep.subr.bf16.mxu0 0
      %679 = vmatpush1.bf16.msra.mxu0 0
      %680 = vmatprep.subr.bf16.mxu0 0
      %681 = vmatpush1.bf16.msra.mxu0 0
      %682 = vmatprep.subr.bf16.mxu0 0
      %683 = vmatpush1.bf16.msra.mxu0 0
      %684 = vmatprep.mubr.bf16.mxu0 0
      %685 = vmatmul.mubr.bf16.gmra.mrb[0].mxu0 %v602
      %v686 = vpop.f32.mrb[0].mxu0
      %v687 = vadd.f32 %v475, %v686
      %v688 = vpop.f32.mrb[0].mxu0
      %v689 = vpop.f32.mrb[0].mxu0
      %v690 = vadd.f32 %v478, %v689
      %v691 = vpop.f32.mrb[0].mxu0
      %692 = vmatprep.mubr.bf16.mxu0 0
      %693 = vmatmul.mubr.bf16.gmra.mrb[0].mxu0 %v605
      %v694 = vpop.f32.mrb[0].mxu0
      %v695 = vadd.f32 %v483, %v694
      %v696 = vpop.f32.mrb[0].mxu0
      %v697 = vpop.f32.mrb[0].mxu0
      %v698 = vadd.f32 %v486, %v697
      %v699 = vpop.f32.mrb[0].mxu0
      %700 = vmatprep.mubr.bf16.mxu0 0
      %701 = vmatmul.mubr.bf16.gmra.mrb[0].mxu0 %v608
      %v702 = vpop.f32.mrb[0].mxu0
      %v703 = vadd.f32 %v491, %v702
      %v704 = vpop.f32.mrb[0].mxu0
      %v705 = vpop.f32.mrb[0].mxu0
      %v706 = vadd.f32 %v494, %v705
      %v707 = vpop.f32.mrb[0].mxu0
      %708 = vmatprep.mubr.bf16.mxu0 0
      %709 = vmatmul.mubr.bf16.gmra.mrb[0].mxu0 %v611
      %v710 = vpop.f32.mrb[0].mxu0
      %v711 = vadd.f32 %v499, %v710
      %v712 = vpop.f32.mrb[0].mxu0
      %v713 = vpop.f32.mrb[0].mxu0
      %v714 = vadd.f32 %v502, %v713
      %v715 = vpop.f32.mrb[0].mxu0
      %716 = vmatprep.mubr.bf16.mxu0 0
      %717 = vmatmul.mubr.bf16.gmra.mrb[0].mxu0 %v614
      %v718 = vpop.f32.mrb[0].mxu0
      %v719 = vadd.f32 %v507, %v718
      %v720 = vpop.f32.mrb[0].mxu0
      %v721 = vpop.f32.mrb[0].mxu0
      %v722 = vadd.f32 %v510, %v721
      %v723 = vpop.f32.mrb[0].mxu0
      %724 = vmatprep.mubr.bf16.mxu0 0
      %725 = vmatmul.mubr.bf16.gmra.mrb[0].mxu0 %v617
      %v726 = vpop.f32.mrb[0].mxu0
      %v727 = vadd.f32 %v515, %v726
      %v728 = vpop.f32.mrb[0].mxu0
      %v729 = vpop.f32.mrb[0].mxu0
      %v730 = vadd.f32 %v518, %v729
      %v731 = vpop.f32.mrb[0].mxu0
      %732 = vmatprep.mubr.bf16.mxu0 0
      %733 = vmatmul.mubr.bf16.gmra.mrb[0].mxu0 %v620
      %v734 = vpop.f32.mrb[0].mxu0
      %v735 = vadd.f32 %v523, %v734
      %v736 = vpop.f32.mrb[0].mxu0
      %v737 = vpop.f32.mrb[0].mxu0
      %v738 = vadd.f32 %v526, %v737
      %v739 = vpop.f32.mrb[0].mxu0
      %740 = vmatprep.mubr.bf16.mxu0 0
      %741 = vmatmul.mubr.bf16.gmra.mrb[0].mxu0 %v623
      %v742 = vpop.f32.mrb[0].mxu0
      %v743 = vadd.f32 %v531, %v742
      %v744 = vpop.f32.mrb[0].mxu0
      %v745 = vpop.f32.mrb[0].mxu0
      %v746 = vadd.f32 %v534, %v745
      %v747 = vpop.f32.mrb[0].mxu0
      %748 = vmatprep.mubr.bf16.mxu0 0
      %749 = vmatmul.mubr.bf16.gmra.mrb[0].mxu0 %v626
      %v750 = vpop.f32.mrb[0].mxu0
      %v751 = vadd.f32 %v539, %v750
      %v752 = vpop.f32.mrb[0].mxu0
      %v753 = vpop.f32.mrb[0].mxu0
      %v754 = vadd.f32 %v542, %v753
      %v755 = vpop.f32.mrb[0].mxu0
      %756 = vmatprep.mubr.bf16.mxu0 0
      %757 = vmatmul.mubr.bf16.gmra.mrb[0].mxu0 %v629
      %v758 = vpop.f32.mrb[0].mxu0
      %v759 = vadd.f32 %v547, %v758
      %v760 = vpop.f32.mrb[0].mxu0
      %v761 = vpop.f32.mrb[0].mxu0
      %v762 = vadd.f32 %v550, %v761
      %v763 = vpop.f32.mrb[0].mxu0
      %764 = vmatprep.mubr.bf16.mxu0 0
      %765 = vmatmul.mubr.bf16.gmra.mrb[0].mxu0 %v632
      %v766 = vpop.f32.mrb[0].mxu0
      %v767 = vadd.f32 %v555, %v766
      %v768 = vpop.f32.mrb[0].mxu0
      %v769 = vpop.f32.mrb[0].mxu0
      %v770 = vadd.f32 %v558, %v769
      %v771 = vpop.f32.mrb[0].mxu0
      %772 = vmatprep.mubr.bf16.mxu0 0
      %773 = vmatmul.mubr.bf16.gmra.mrb[0].mxu0 %v635
      %v774 = vpop.f32.mrb[0].mxu0
      %v775 = vadd.f32 %v563, %v774
      %v776 = vpop.f32.mrb[0].mxu0
      %v777 = vpop.f32.mrb[0].mxu0
      %v778 = vadd.f32 %v566, %v777
      %v779 = vpop.f32.mrb[0].mxu0
      %780 = vmatprep.mubr.bf16.mxu0 0
      %781 = vmatmul.mubr.bf16.gmra.mrb[0].mxu0 %v638
      %v782 = vpop.f32.mrb[0].mxu0
      %v783 = vadd.f32 %v571, %v782
      %v784 = vpop.f32.mrb[0].mxu0
      %v785 = vpop.f32.mrb[0].mxu0
      %v786 = vadd.f32 %v574, %v785
      %v787 = vpop.f32.mrb[0].mxu0
      %788 = vmatprep.mubr.bf16.mxu0 0
      %789 = vmatmul.mubr.bf16.gmra.mrb[0].mxu0 %v641
      %v790 = vpop.f32.mrb[0].mxu0
      %v791 = vadd.f32 %v579, %v790
      %v792 = vpop.f32.mrb[0].mxu0
      %v793 = vpop.f32.mrb[0].mxu0
      %v794 = vadd.f32 %v582, %v793
      %v795 = vpop.f32.mrb[0].mxu0
      %796 = vmatprep.mubr.bf16.mxu0 0
      %797 = vmatmul.mubr.bf16.gmra.mrb[0].mxu0 %v644
      %v798 = vpop.f32.mrb[0].mxu0
      %v799 = vadd.f32 %v587, %v798
      %v800 = vpop.f32.mrb[0].mxu0
      %v801 = vpop.f32.mrb[0].mxu0
      %v802 = vadd.f32 %v590, %v801
      %v803 = vpop.f32.mrb[0].mxu0
      %804 = vmatprep.mubr.bf16.mxu0 0
      %805 = vmatmul.mubr.bf16.gmra.mrb[0].mxu0 %v647
      %v806 = vpop.f32.mrb[0].mxu0
      %v807 = vadd.f32 %v595, %v806
      %v808 = vpop.f32.mrb[0].mxu0
      %v809 = vpop.f32.mrb[0].mxu0
      %v810 = vadd.f32 %v598, %v809
      %v811 = vpop.f32.mrb[0].mxu0
      %812 = vdwg.mxu0
      %v813 = vld [vmem:[%s286 + $0x2] sm:$0xff]
      %v814 = vld [vmem:[%s286 + $0xa] sm:$0xff]
      %v815 = vld [vmem:[%s286 + $0x1a] sm:$0xff]
      %v816 = vld [vmem:[%s286 + $0x22] sm:$0xff]
      %v817 = vld [vmem:[%s286 + $0x32] sm:$0xff]
      %v818 = vld [vmem:[%s286 + $0x3a] sm:$0xff]
      %v819 = vld [vmem:[%s286 + $0x4a] sm:$0xff]
      %v820 = vld [vmem:[%s286 + $0x52] sm:$0xff]
      %v821 = vld [vmem:[%s286 + $0x62] sm:$0xff]
      %v822 = vld [vmem:[%s286 + $0x6a] sm:$0xff]
      %v823 = vld [vmem:[%s286 + $0x7a] sm:$0xff]
      %v824 = vld [vmem:[%s286 + $0x82] sm:$0xff]
      %v825 = vld [vmem:[%s286 + $0x92] sm:$0xff]
      %v826 = vld [vmem:[%s286 + $0x9a] sm:$0xff]
      %v827 = vld [vmem:[%s286 + $0xaa] sm:$0xff]
      %v828 = vld [vmem:[%s286 + $0xb2] sm:$0xff]
      %v829 = vld [vmem:[%s286 + $0xc2] sm:$0xff]
      %v830 = vld [vmem:[%s286 + $0xca] sm:$0xff]
      %v831 = vld [vmem:[%s286 + $0xda] sm:$0xff]
      %v832 = vld [vmem:[%s286 + $0xe2] sm:$0xff]
      %v833 = vld [vmem:[%s286 + $0xf2] sm:$0xff]
      %v834 = vld [vmem:[%s286 + $0xfa] sm:$0xff]
      %v835 = vld [vmem:[%s286 + $0x10a] sm:$0xff]
      %v836 = vld [vmem:[%s286 + $0x112] sm:$0xff]
      %v837 = vld [vmem:[%s286 + $0x122] sm:$0xff]
      %v838 = vld [vmem:[%s286 + $0x12a] sm:$0xff]
      %v839 = vld [vmem:[%s286 + $0x13a] sm:$0xff]
      %v840 = vld [vmem:[%s286 + $0x142] sm:$0xff]
      %v841 = vld [vmem:[%s286 + $0x152] sm:$0xff]
      %v842 = vld [vmem:[%s286 + $0x15a] sm:$0xff]
      %v843 = vld [vmem:[%s286 + $0x16a] sm:$0xff]
      %v844 = vld [vmem:[%s286 + $0x172] sm:$0xff]
      %v845 = vpack.c.bf16 %v814, %v813
      %v846 = vpack.c.bf16 %v816, %v815
      %v847 = vpack.c.bf16 %v818, %v817
      %v848 = vpack.c.bf16 %v820, %v819
      %v849 = vpack.c.bf16 %v822, %v821
      %v850 = vpack.c.bf16 %v824, %v823
      %v851 = vpack.c.bf16 %v826, %v825
      %v852 = vpack.c.bf16 %v828, %v827
      %v853 = vpack.c.bf16 %v830, %v829
      %v854 = vpack.c.bf16 %v832, %v831
      %v855 = vpack.c.bf16 %v834, %v833
      %v856 = vpack.c.bf16 %v836, %v835
      %v857 = vpack.c.bf16 %v838, %v837
      %v858 = vpack.c.bf16 %v840, %v839
      %v859 = vpack.c.bf16 %v842, %v841
      %v860 = vpack.c.bf16 %v844, %v843
      %v861 = vld [vmem:[%s262 + $0x8] sm:$0xf]
      %v862 = vpack.c.bf16 %v861, %v861
      %v864 = vsel %vm387, %v845, 0
      %v867 = vsel %vm387, %v846, 0
      %v870 = vsel %vm387, %v847, 0
      %v873 = vsel %vm387, %v848, 0
      %v876 = vsel %vm387, %v849, 0
      %v879 = vsel %vm387, %v850, 0
      %v882 = vsel %vm387, %v851, 0
      %v885 = vsel %vm387, %v852, 0
      %v888 = vsel %vm387, %v853, 0
      %v891 = vsel %vm387, %v854, 0
      %v894 = vsel %vm387, %v855, 0
      %v897 = vsel %vm387, %v856, 0
      %v900 = vsel %vm387, %v857, 0
      %v903 = vsel %vm387, %v858, 0
      %v906 = vsel %vm387, %v859, 0
      %v909 = vsel %vm387, %v860, 0
      %v912 = vsel %vm436, %v862, 0
      %914 = vmatprep.subr.bf16.mxu0 0
      %915 = vmatpush1.bf16.msra.mxu0 %v912
      %916 = vmatprep.subr.bf16.mxu0 0
      %917 = vmatpush1.bf16.msra.mxu0 0
      %918 = vmatprep.subr.bf16.mxu0 0
      %919 = vmatpush1.bf16.msra.mxu0 0
      %920 = vmatprep.subr.bf16.mxu0 0
      %921 = vmatpush1.bf16.msra.mxu0 0
      %922 = vmatprep.subr.bf16.mxu0 0
      %923 = vmatpush1.bf16.msra.mxu0 0
      %924 = vmatprep.subr.bf16.mxu0 0
      %925 = vmatpush1.bf16.msra.mxu0 0
      %926 = vmatprep.subr.bf16.mxu0 0
      %927 = vmatpush1.bf16.msra.mxu0 0
      %928 = vmatprep.subr.bf16.mxu0 0
      %929 = vmatpush1.bf16.msra.mxu0 0
      %930 = vmatprep.subr.bf16.mxu0 0
      %931 = vmatpush1.bf16.msra.mxu0 0
      %932 = vmatprep.subr.bf16.mxu0 0
      %933 = vmatpush1.bf16.msra.mxu0 0
      %934 = vmatprep.subr.bf16.mxu0 0
      %935 = vmatpush1.bf16.msra.mxu0 0
      %936 = vmatprep.subr.bf16.mxu0 0
      %937 = vmatpush1.bf16.msra.mxu0 0
      %938 = vmatprep.subr.bf16.mxu0 0
      %939 = vmatpush1.bf16.msra.mxu0 0
      %940 = vmatprep.subr.bf16.mxu0 0
      %941 = vmatpush1.bf16.msra.mxu0 0
      %942 = vmatprep.subr.bf16.mxu0 0
      %943 = vmatpush1.bf16.msra.mxu0 0
      %944 = vmatprep.subr.bf16.mxu0 0
      %945 = vmatpush1.bf16.msra.mxu0 0
      %946 = vmatprep.mubr.bf16.mxu0 0
      %947 = vmatmul.mubr.bf16.gmra.mrb[0].mxu0 %v864
      %v948 = vpop.f32.mrb[0].mxu0
      %v949 = vadd.f32 0.0, %v948
      %v950 = vpop.f32.mrb[0].mxu0
      %v951 = vpop.f32.mrb[0].mxu0
      %v952 = vadd.f32 0.0, %v951
      %v953 = vpop.f32.mrb[0].mxu0
      %954 = vmatprep.mubr.bf16.mxu0 0
      %955 = vmatmul.mubr.bf16.gmra.mrb[0].mxu0 %v867
      %v956 = vpop.f32.mrb[0].mxu0
      %v957 = vadd.f32 0.0, %v956
      %v958 = vpop.f32.mrb[0].mxu0
      %v959 = vpop.f32.mrb[0].mxu0
      %v960 = vadd.f32 0.0, %v959
      %v961 = vpop.f32.mrb[0].mxu0
      %962 = vmatprep.mubr.bf16.mxu0 0
      %963 = vmatmul.mubr.bf16.gmra.mrb[0].mxu0 %v870
      %v964 = vpop.f32.mrb[0].mxu0
      %v965 = vadd.f32 0.0, %v964
      %v966 = vpop.f32.mrb[0].mxu0
      %v967 = vpop.f32.mrb[0].mxu0
      %v968 = vadd.f32 0.0, %v967
      %v969 = vpop.f32.mrb[0].mxu0
      %970 = vmatprep.mubr.bf16.mxu0 0
      %971 = vmatmul.mubr.bf16.gmra.mrb[0].mxu0 %v873
      %v972 = vpop.f32.mrb[0].mxu0
      %v973 = vadd.f32 0.0, %v972
      %v974 = vpop.f32.mrb[0].mxu0
      %v975 = vpop.f32.mrb[0].mxu0
      %v976 = vadd.f32 0.0, %v975
      %v977 = vpop.f32.mrb[0].mxu0
      %978 = vmatprep.mubr.bf16.mxu0 0
      %979 = vmatmul.mubr.bf16.gmra.mrb[0].mxu0 %v876
      %v980 = vpop.f32.mrb[0].mxu0
      %v981 = vadd.f32 0.0, %v980
      %v982 = vpop.f32.mrb[0].mxu0
      %v983 = vpop.f32.mrb[0].mxu0
      %v984 = vadd.f32 0.0, %v983
      %v985 = vpop.f32.mrb[0].mxu0
      %986 = vmatprep.mubr.bf16.mxu0 0
      %987 = vmatmul.mubr.bf16.gmra.mrb[0].mxu0 %v879
      %v988 = vpop.f32.mrb[0].mxu0
      %v989 = vadd.f32 0.0, %v988
      %v990 = vpop.f32.mrb[0].mxu0
      %v991 = vpop.f32.mrb[0].mxu0
      %v992 = vadd.f32 0.0, %v991
      %v993 = vpop.f32.mrb[0].mxu0
      %994 = vmatprep.mubr.bf16.mxu0 0
      %995 = vmatmul.mubr.bf16.gmra.mrb[0].mxu0 %v882
      %v996 = vpop.f32.mrb[0].mxu0
      %v997 = vadd.f32 0.0, %v996
      %v998 = vpop.f32.mrb[0].mxu0
      %v999 = vpop.f32.mrb[0].mxu0
      %v1000 = vadd.f32 0.0, %v999
      %v1001 = vpop.f32.mrb[0].mxu0
      %1002 = vmatprep.mubr.bf16.mxu0 0
      %1003 = vmatmul.mubr.bf16.gmra.mrb[0].mxu0 %v885
      %v1004 = vpop.f32.mrb[0].mxu0
      %v1005 = vadd.f32 0.0, %v1004
      %v1006 = vpop.f32.mrb[0].mxu0
      %v1007 = vpop.f32.mrb[0].mxu0
      %v1008 = vadd.f32 0.0, %v1007
      %v1009 = vpop.f32.mrb[0].mxu0
      %1010 = vmatprep.mubr.bf16.mxu0 0
      %1011 = vmatmul.mubr.bf16.gmra.mrb[0].mxu0 %v888
      %v1012 = vpop.f32.mrb[0].mxu0
      %v1013 = vadd.f32 0.0, %v1012
      %v1014 = vpop.f32.mrb[0].mxu0
      %v1015 = vpop.f32.mrb[0].mxu0
      %v1016 = vadd.f32 0.0, %v1015
      %v1017 = vpop.f32.mrb[0].mxu0
      %1018 = vmatprep.mubr.bf16.mxu0 0
      %1019 = vmatmul.mubr.bf16.gmra.mrb[0].mxu0 %v891
      %v1020 = vpop.f32.mrb[0].mxu0
      %v1021 = vadd.f32 0.0, %v1020
      %v1022 = vpop.f32.mrb[0].mxu0
      %v1023 = vpop.f32.mrb[0].mxu0
      %v1024 = vadd.f32 0.0, %v1023
      %v1025 = vpop.f32.mrb[0].mxu0
      %1026 = vmatprep.mubr.bf16.mxu0 0
      %1027 = vmatmul.mubr.bf16.gmra.mrb[0].mxu0 %v894
      %v1028 = vpop.f32.mrb[0].mxu0
      %v1029 = vadd.f32 0.0, %v1028
      %v1030 = vpop.f32.mrb[0].mxu0
      %v1031 = vpop.f32.mrb[0].mxu0
      %v1032 = vadd.f32 0.0, %v1031
      %v1033 = vpop.f32.mrb[0].mxu0
      %1034 = vmatprep.mubr.bf16.mxu0 0
      %1035 = vmatmul.mubr.bf16.gmra.mrb[0].mxu0 %v897
      %v1036 = vpop.f32.mrb[0].mxu0
      %v1037 = vadd.f32 0.0, %v1036
      %v1038 = vpop.f32.mrb[0].mxu0
      %v1039 = vpop.f32.mrb[0].mxu0
      %v1040 = vadd.f32 0.0, %v1039
      %v1041 = vpop.f32.mrb[0].mxu0
      %1042 = vmatprep.mubr.bf16.mxu0 0
      %1043 = vmatmul.mubr.bf16.gmra.mrb[0].mxu0 %v900
      %v1044 = vpop.f32.mrb[0].mxu0
      %v1045 = vadd.f32 0.0, %v1044
      %v1046 = vpop.f32.mrb[0].mxu0
      %v1047 = vpop.f32.mrb[0].mxu0
      %v1048 = vadd.f32 0.0, %v1047
      %v1049 = vpop.f32.mrb[0].mxu0
      %1050 = vmatprep.mubr.bf16.mxu0 0
      %1051 = vmatmul.mubr.bf16.gmra.mrb[0].mxu0 %v903
      %v1052 = vpop.f32.mrb[0].mxu0
      %v1053 = vadd.f32 0.0, %v1052
      %v1054 = vpop.f32.mrb[0].mxu0
      %v1055 = vpop.f32.mrb[0].mxu0
      %v1056 = vadd.f32 0.0, %v1055
      %v1057 = vpop.f32.mrb[0].mxu0
      %1058 = vmatprep.mubr.bf16.mxu0 0
      %1059 = vmatmul.mubr.bf16.gmra.mrb[0].mxu0 %v906
      %v1060 = vpop.f32.mrb[0].mxu0
      %v1061 = vadd.f32 0.0, %v1060
      %v1062 = vpop.f32.mrb[0].mxu0
      %v1063 = vpop.f32.mrb[0].mxu0
      %v1064 = vadd.f32 0.0, %v1063
      %v1065 = vpop.f32.mrb[0].mxu0
      %1066 = vmatprep.mubr.bf16.mxu0 0
      %1067 = vmatmul.mubr.bf16.gmra.mrb[0].mxu0 %v909
      %v1068 = vpop.f32.mrb[0].mxu0
      %v1069 = vadd.f32 0.0, %v1068
      %v1070 = vpop.f32.mrb[0].mxu0
      %v1071 = vpop.f32.mrb[0].mxu0
      %v1072 = vadd.f32 0.0, %v1071
      %v1073 = vpop.f32.mrb[0].mxu0
      %1074 = vdwg.mxu0
      %v1075 = vadd.f32 %v687, %v949
      %v1076 = vadd.f32 %v690, %v952
      %v1077 = vadd.f32 %v695, %v957
      %v1078 = vadd.f32 %v698, %v960
      %v1079 = vadd.f32 %v703, %v965
      %v1080 = vadd.f32 %v706, %v968
      %v1081 = vadd.f32 %v711, %v973
      %v1082 = vadd.f32 %v714, %v976
      %v1083 = vadd.f32 %v719, %v981
      %v1084 = vadd.f32 %v722, %v984
      %v1085 = vadd.f32 %v727, %v989
      %v1086 = vadd.f32 %v730, %v992
      %v1087 = vadd.f32 %v735, %v997
      %v1088 = vadd.f32 %v738, %v1000
      %v1089 = vadd.f32 %v743, %v1005
      %v1090 = vadd.f32 %v746, %v1008
      %v1091 = vadd.f32 %v751, %v1013
      %v1092 = vadd.f32 %v754, %v1016
      %v1093 = vadd.f32 %v759, %v1021
      %v1094 = vadd.f32 %v762, %v1024
      %v1095 = vadd.f32 %v767, %v1029
      %v1096 = vadd.f32 %v770, %v1032
      %v1097 = vadd.f32 %v775, %v1037
      %v1098 = vadd.f32 %v778, %v1040
      %v1099 = vadd.f32 %v783, %v1045
      %v1100 = vadd.f32 %v786, %v1048
      %v1101 = vadd.f32 %v791, %v1053
      %v1102 = vadd.f32 %v794, %v1056
      %v1103 = vadd.f32 %v799, %v1061
      %v1104 = vadd.f32 %v802, %v1064
      %v1105 = vadd.f32 %v807, %v1069
      %v1106 = vadd.f32 %v810, %v1072
      %s1107 = sadd.s32 %s284, 1
      %s1108 = smul.u32 %s1107, 24
      %s1109 = scalar_lea.vmem %s258, %s1108
      %v1110 = vld [vmem:[%s1109] sm:$0xff]
      %v1111 = vld [vmem:[%s1109 + $0x8] sm:$0xff]
      %v1112 = vld [vmem:[%s1109 + $0x18] sm:$0xff]
      %v1113 = vld [vmem:[%s1109 + $0x20] sm:$0xff]
      %v1114 = vld [vmem:[%s1109 + $0x30] sm:$0xff]
      %v1115 = vld [vmem:[%s1109 + $0x38] sm:$0xff]
      %v1116 = vld [vmem:[%s1109 + $0x48] sm:$0xff]
      %v1117 = vld [vmem:[%s1109 + $0x50] sm:$0xff]
      %v1118 = vld [vmem:[%s1109 + $0x60] sm:$0xff]
      %v1119 = vld [vmem:[%s1109 + $0x68] sm:$0xff]
      %v1120 = vld [vmem:[%s1109 + $0x78] sm:$0xff]
      %v1121 = vld [vmem:[%s1109 + $0x80] sm:$0xff]
      %v1122 = vld [vmem:[%s1109 + $0x90] sm:$0xff]
      %v1123 = vld [vmem:[%s1109 + $0x98] sm:$0xff]
      %v1124 = vld [vmem:[%s1109 + $0xa8] sm:$0xff]
      %v1125 = vld [vmem:[%s1109 + $0xb0] sm:$0xff]
      %v1126 = vld [vmem:[%s1109 + $0xc0] sm:$0xff]
      %v1127 = vld [vmem:[%s1109 + $0xc8] sm:$0xff]
      %v1128 = vld [vmem:[%s1109 + $0xd8] sm:$0xff]
      %v1129 = vld [vmem:[%s1109 + $0xe0] sm:$0xff]
      %v1130 = vld [vmem:[%s1109 + $0xf0] sm:$0xff]
      %v1131 = vld [vmem:[%s1109 + $0xf8] sm:$0xff]
      %v1132 = vld [vmem:[%s1109 + $0x108] sm:$0xff]
      %v1133 = vld [vmem:[%s1109 + $0x110] sm:$0xff]
      %v1134 = vld [vmem:[%s1109 + $0x120] sm:$0xff]
      %v1135 = vld [vmem:[%s1109 + $0x128] sm:$0xff]
      %v1136 = vld [vmem:[%s1109 + $0x138] sm:$0xff]
      %v1137 = vld [vmem:[%s1109 + $0x140] sm:$0xff]
      %v1138 = vld [vmem:[%s1109 + $0x150] sm:$0xff]
      %v1139 = vld [vmem:[%s1109 + $0x158] sm:$0xff]
      %v1140 = vld [vmem:[%s1109 + $0x168] sm:$0xff]
      %v1141 = vld [vmem:[%s1109 + $0x170] sm:$0xff]
      %v1142 = vpack.c.bf16 %v1111, %v1110
      %v1143 = vpack.c.bf16 %v1113, %v1112
      %v1144 = vpack.c.bf16 %v1115, %v1114
      %v1145 = vpack.c.bf16 %v1117, %v1116
      %v1146 = vpack.c.bf16 %v1119, %v1118
      %v1147 = vpack.c.bf16 %v1121, %v1120
      %v1148 = vpack.c.bf16 %v1123, %v1122
      %v1149 = vpack.c.bf16 %v1125, %v1124
      %v1150 = vpack.c.bf16 %v1127, %v1126
      %v1151 = vpack.c.bf16 %v1129, %v1128
      %v1152 = vpack.c.bf16 %v1131, %v1130
      %v1153 = vpack.c.bf16 %v1133, %v1132
      %v1154 = vpack.c.bf16 %v1135, %v1134
      %v1155 = vpack.c.bf16 %v1137, %v1136
      %v1156 = vpack.c.bf16 %v1139, %v1138
      %v1157 = vpack.c.bf16 %v1141, %v1140
      %v1158 = vld [vmem:[%s262 + $0xc] sm:$0xf]
      %v1159 = vpack.c.bf16 %v1158, %v1158
      %v1161 = vsel %vm387, %v1142, 0
      %v1164 = vsel %vm387, %v1143, 0
      %v1167 = vsel %vm387, %v1144, 0
      %v1170 = vsel %vm387, %v1145, 0
      %v1173 = vsel %vm387, %v1146, 0
      %v1176 = vsel %vm387, %v1147, 0
      %v1179 = vsel %vm387, %v1148, 0
      %v1182 = vsel %vm387, %v1149, 0
      %v1185 = vsel %vm387, %v1150, 0
      %v1188 = vsel %vm387, %v1151, 0
      %v1191 = vsel %vm387, %v1152, 0
      %v1194 = vsel %vm387, %v1153, 0
      %v1197 = vsel %vm387, %v1154, 0
      %v1200 = vsel %vm387, %v1155, 0
      %v1203 = vsel %vm387, %v1156, 0
      %v1206 = vsel %vm387, %v1157, 0
      %v1209 = vsel %vm436, %v1159, 0
      %1211 = vmatprep.subr.bf16.mxu0 0
      %1212 = vmatpush1.bf16.msra.mxu0 %v1209
      %1213 = vmatprep.subr.bf16.mxu0 0
      %1214 = vmatpush1.bf16.msra.mxu0 0
      %1215 = vmatprep.subr.bf16.mxu0 0
      %1216 = vmatpush1.bf16.msra.mxu0 0
      %1217 = vmatprep.subr.bf16.mxu0 0
      %1218 = vmatpush1.bf16.msra.mxu0 0
      %1219 = vmatprep.subr.bf16.mxu0 0
      %1220 = vmatpush1.bf16.msra.mxu0 0
      %1221 = vmatprep.subr.bf16.mxu0 0
      %1222 = vmatpush1.bf16.msra.mxu0 0
      %1223 = vmatprep.subr.bf16.mxu0 0
      %1224 = vmatpush1.bf16.msra.mxu0 0
      %1225 = vmatprep.subr.bf16.mxu0 0
      %1226 = vmatpush1.bf16.msra.mxu0 0
      %1227 = vmatprep.subr.bf16.mxu0 0
      %1228 = vmatpush1.bf16.msra.mxu0 0
      %1229 = vmatprep.subr.bf16.mxu0 0
      %1230 = vmatpush1.bf16.msra.mxu0 0
      %1231 = vmatprep.subr.bf16.mxu0 0
      %1232 = vmatpush1.bf16.msra.mxu0 0
      %1233 = vmatprep.subr.bf16.mxu0 0
      %1234 = vmatpush1.bf16.msra.mxu0 0
      %1235 = vmatprep.subr.bf16.mxu0 0
      %1236 = vmatpush1.bf16.msra.mxu0 0
      %1237 = vmatprep.subr.bf16.mxu0 0
      %1238 = vmatpush1.bf16.msra.mxu0 0
      %1239 = vmatprep.subr.bf16.mxu0 0
      %1240 = vmatpush1.bf16.msra.mxu0 0
      %1241 = vmatprep.subr.bf16.mxu0 0
      %1242 = vmatpush1.bf16.msra.mxu0 0
      %1243 = vmatprep.mubr.bf16.mxu0 0
      %1244 = vmatmul.mubr.bf16.gmra.mrb[0].mxu0 %v1161
      %v1245 = vpop.f32.mrb[0].mxu0
      %v1246 = vadd.f32 0.0, %v1245
      %v1247 = vpop.f32.mrb[0].mxu0
      %v1248 = vpop.f32.mrb[0].mxu0
      %v1249 = vadd.f32 0.0, %v1248
      %v1250 = vpop.f32.mrb[0].mxu0
      %1251 = vmatprep.mubr.bf16.mxu0 0
      %1252 = vmatmul.mubr.bf16.gmra.mrb[0].mxu0 %v1164
      %v1253 = vpop.f32.mrb[0].mxu0
      %v1254 = vadd.f32 0.0, %v1253
      %v1255 = vpop.f32.mrb[0].mxu0
      %v1256 = vpop.f32.mrb[0].mxu0
      %v1257 = vadd.f32 0.0, %v1256
      %v1258 = vpop.f32.mrb[0].mxu0
      %1259 = vmatprep.mubr.bf16.mxu0 0
      %1260 = vmatmul.mubr.bf16.gmra.mrb[0].mxu0 %v1167
      %v1261 = vpop.f32.mrb[0].mxu0
      %v1262 = vadd.f32 0.0, %v1261
      %v1263 = vpop.f32.mrb[0].mxu0
      %v1264 = vpop.f32.mrb[0].mxu0
      %v1265 = vadd.f32 0.0, %v1264
      %v1266 = vpop.f32.mrb[0].mxu0
      %1267 = vmatprep.mubr.bf16.mxu0 0
      %1268 = vmatmul.mubr.bf16.gmra.mrb[0].mxu0 %v1170
      %v1269 = vpop.f32.mrb[0].mxu0
      %v1270 = vadd.f32 0.0, %v1269
      %v1271 = vpop.f32.mrb[0].mxu0
      %v1272 = vpop.f32.mrb[0].mxu0
      %v1273 = vadd.f32 0.0, %v1272
      %v1274 = vpop.f32.mrb[0].mxu0
      %1275 = vmatprep.mubr.bf16.mxu0 0
      %1276 = vmatmul.mubr.bf16.gmra.mrb[0].mxu0 %v1173
      %v1277 = vpop.f32.mrb[0].mxu0
      %v1278 = vadd.f32 0.0, %v1277
      %v1279 = vpop.f32.mrb[0].mxu0
      %v1280 = vpop.f32.mrb[0].mxu0
      %v1281 = vadd.f32 0.0, %v1280
      %v1282 = vpop.f32.mrb[0].mxu0
      %1283 = vmatprep.mubr.bf16.mxu0 0
      %1284 = vmatmul.mubr.bf16.gmra.mrb[0].mxu0 %v1176
      %v1285 = vpop.f32.mrb[0].mxu0
      %v1286 = vadd.f32 0.0, %v1285
      %v1287 = vpop.f32.mrb[0].mxu0
      %v1288 = vpop.f32.mrb[0].mxu0
      %v1289 = vadd.f32 0.0, %v1288
      %v1290 = vpop.f32.mrb[0].mxu0
      %1291 = vmatprep.mubr.bf16.mxu0 0
      %1292 = vmatmul.mubr.bf16.gmra.mrb[0].mxu0 %v1179
      %v1293 = vpop.f32.mrb[0].mxu0
      %v1294 = vadd.f32 0.0, %v1293
      %v1295 = vpop.f32.mrb[0].mxu0
      %v1296 = vpop.f32.mrb[0].mxu0
      %v1297 = vadd.f32 0.0, %v1296
      %v1298 = vpop.f32.mrb[0].mxu0
      %1299 = vmatprep.mubr.bf16.mxu0 0
      %1300 = vmatmul.mubr.bf16.gmra.mrb[0].mxu0 %v1182
      %v1301 = vpop.f32.mrb[0].mxu0
      %v1302 = vadd.f32 0.0, %v1301
      %v1303 = vpop.f32.mrb[0].mxu0
      %v1304 = vpop.f32.mrb[0].mxu0
      %v1305 = vadd.f32 0.0, %v1304
      %v1306 = vpop.f32.mrb[0].mxu0
      %1307 = vmatprep.mubr.bf16.mxu0 0
      %1308 = vmatmul.mubr.bf16.gmra.mrb[0].mxu0 %v1185
      %v1309 = vpop.f32.mrb[0].mxu0
      %v1310 = vadd.f32 0.0, %v1309
      %v1311 = vpop.f32.mrb[0].mxu0
      %v1312 = vpop.f32.mrb[0].mxu0
      %v1313 = vadd.f32 0.0, %v1312
      %v1314 = vpop.f32.mrb[0].mxu0
      %1315 = vmatprep.mubr.bf16.mxu0 0
      %1316 = vmatmul.mubr.bf16.gmra.mrb[0].mxu0 %v1188
      %v1317 = vpop.f32.mrb[0].mxu0
      %v1318 = vadd.f32 0.0, %v1317
      %v1319 = vpop.f32.mrb[0].mxu0
      %v1320 = vpop.f32.mrb[0].mxu0
      %v1321 = vadd.f32 0.0, %v1320
      %v1322 = vpop.f32.mrb[0].mxu0
      %1323 = vmatprep.mubr.bf16.mxu0 0
      %1324 = vmatmul.mubr.bf16.gmra.mrb[0].mxu0 %v1191
      %v1325 = vpop.f32.mrb[0].mxu0
      %v1326 = vadd.f32 0.0, %v1325
      %v1327 = vpop.f32.mrb[0].mxu0
      %v1328 = vpop.f32.mrb[0].mxu0
      %v1329 = vadd.f32 0.0, %v1328
      %v1330 = vpop.f32.mrb[0].mxu0
      %1331 = vmatprep.mubr.bf16.mxu0 0
      %1332 = vmatmul.mubr.bf16.gmra.mrb[0].mxu0 %v1194
      %v1333 = vpop.f32.mrb[0].mxu0
      %v1334 = vadd.f32 0.0, %v1333
      %v1335 = vpop.f32.mrb[0].mxu0
      %v1336 = vpop.f32.mrb[0].mxu0
      %v1337 = vadd.f32 0.0, %v1336
      %v1338 = vpop.f32.mrb[0].mxu0
      %1339 = vmatprep.mubr.bf16.mxu0 0
      %1340 = vmatmul.mubr.bf16.gmra.mrb[0].mxu0 %v1197
      %v1341 = vpop.f32.mrb[0].mxu0
      %v1342 = vadd.f32 0.0, %v1341
      %v1343 = vpop.f32.mrb[0].mxu0
      %v1344 = vpop.f32.mrb[0].mxu0
      %v1345 = vadd.f32 0.0, %v1344
      %v1346 = vpop.f32.mrb[0].mxu0
      %1347 = vmatprep.mubr.bf16.mxu0 0
      %1348 = vmatmul.mubr.bf16.gmra.mrb[0].mxu0 %v1200
      %v1349 = vpop.f32.mrb[0].mxu0
      %v1350 = vadd.f32 0.0, %v1349
      %v1351 = vpop.f32.mrb[0].mxu0
      %v1352 = vpop.f32.mrb[0].mxu0
      %v1353 = vadd.f32 0.0, %v1352
      %v1354 = vpop.f32.mrb[0].mxu0
      %1355 = vmatprep.mubr.bf16.mxu0 0
      %1356 = vmatmul.mubr.bf16.gmra.mrb[0].mxu0 %v1203
      %v1357 = vpop.f32.mrb[0].mxu0
      %v1358 = vadd.f32 0.0, %v1357
      %v1359 = vpop.f32.mrb[0].mxu0
      %v1360 = vpop.f32.mrb[0].mxu0
      %v1361 = vadd.f32 0.0, %v1360
      %v1362 = vpop.f32.mrb[0].mxu0
      %1363 = vmatprep.mubr.bf16.mxu0 0
      %1364 = vmatmul.mubr.bf16.gmra.mrb[0].mxu0 %v1206
      %v1365 = vpop.f32.mrb[0].mxu0
      %v1366 = vadd.f32 0.0, %v1365
      %v1367 = vpop.f32.mrb[0].mxu0
      %v1368 = vpop.f32.mrb[0].mxu0
      %v1369 = vadd.f32 0.0, %v1368
      %v1370 = vpop.f32.mrb[0].mxu0
      %1371 = vdwg.mxu0
      %v1372 = vadd.f32 %v1075, %v1246
      %v1373 = vadd.f32 %v1076, %v1249
      %v1374 = vadd.f32 %v1077, %v1254
      %v1375 = vadd.f32 %v1078, %v1257
      %v1376 = vadd.f32 %v1079, %v1262
      %v1377 = vadd.f32 %v1080, %v1265
      %v1378 = vadd.f32 %v1081, %v1270
      %v1379 = vadd.f32 %v1082, %v1273
      %v1380 = vadd.f32 %v1083, %v1278
      %v1381 = vadd.f32 %v1084, %v1281
      %v1382 = vadd.f32 %v1085, %v1286
      %v1383 = vadd.f32 %v1086, %v1289
      %v1384 = vadd.f32 %v1087, %v1294
      %v1385 = vadd.f32 %v1088, %v1297
      %v1386 = vadd.f32 %v1089, %v1302
      %v1387 = vadd.f32 %v1090, %v1305
      %v1388 = vadd.f32 %v1091, %v1310
      %v1389 = vadd.f32 %v1092, %v1313
      %v1390 = vadd.f32 %v1093, %v1318
      %v1391 = vadd.f32 %v1094, %v1321
      %v1392 = vadd.f32 %v1095, %v1326
      %v1393 = vadd.f32 %v1096, %v1329
      %v1394 = vadd.f32 %v1097, %v1334
      %v1395 = vadd.f32 %v1098, %v1337
      %v1396 = vadd.f32 %v1099, %v1342
      %v1397 = vadd.f32 %v1100, %v1345
      %v1398 = vadd.f32 %v1101, %v1350
      %v1399 = vadd.f32 %v1102, %v1353
      %v1400 = vadd.f32 %v1103, %v1358
      %v1401 = vadd.f32 %v1104, %v1361
      %v1402 = vadd.f32 %v1105, %v1366
      %v1403 = vadd.f32 %v1106, %v1369
      %v1404 = vld [vmem:[%s1109 + $0x1] sm:$0xff]
      %v1405 = vld [vmem:[%s1109 + $0x9] sm:$0xff]
      %v1406 = vld [vmem:[%s1109 + $0x19] sm:$0xff]
      %v1407 = vld [vmem:[%s1109 + $0x21] sm:$0xff]
      %v1408 = vld [vmem:[%s1109 + $0x31] sm:$0xff]
      %v1409 = vld [vmem:[%s1109 + $0x39] sm:$0xff]
      %v1410 = vld [vmem:[%s1109 + $0x49] sm:$0xff]
      %v1411 = vld [vmem:[%s1109 + $0x51] sm:$0xff]
      %v1412 = vld [vmem:[%s1109 + $0x61] sm:$0xff]
      %v1413 = vld [vmem:[%s1109 + $0x69] sm:$0xff]
      %v1414 = vld [vmem:[%s1109 + $0x79] sm:$0xff]
      %v1415 = vld [vmem:[%s1109 + $0x81] sm:$0xff]
      %v1416 = vld [vmem:[%s1109 + $0x91] sm:$0xff]
      %v1417 = vld [vmem:[%s1109 + $0x99] sm:$0xff]
      %v1418 = vld [vmem:[%s1109 + $0xa9] sm:$0xff]
      %v1419 = vld [vmem:[%s1109 + $0xb1] sm:$0xff]
      %v1420 = vld [vmem:[%s1109 + $0xc1] sm:$0xff]
      %v1421 = vld [vmem:[%s1109 + $0xc9] sm:$0xff]
      %v1422 = vld [vmem:[%s1109 + $0xd9] sm:$0xff]
      %v1423 = vld [vmem:[%s1109 + $0xe1] sm:$0xff]
      %v1424 = vld [vmem:[%s1109 + $0xf1] sm:$0xff]
      %v1425 = vld [vmem:[%s1109 + $0xf9] sm:$0xff]
      %v1426 = vld [vmem:[%s1109 + $0x109] sm:$0xff]
      %v1427 = vld [vmem:[%s1109 + $0x111] sm:$0xff]
      %v1428 = vld [vmem:[%s1109 + $0x121] sm:$0xff]
      %v1429 = vld [vmem:[%s1109 + $0x129] sm:$0xff]
      %v1430 = vld [vmem:[%s1109 + $0x139] sm:$0xff]
      %v1431 = vld [vmem:[%s1109 + $0x141] sm:$0xff]
      %v1432 = vld [vmem:[%s1109 + $0x151] sm:$0xff]
      %v1433 = vld [vmem:[%s1109 + $0x159] sm:$0xff]
      %v1434 = vld [vmem:[%s1109 + $0x169] sm:$0xff]
      %v1435 = vld [vmem:[%s1109 + $0x171] sm:$0xff]
      %v1436 = vpack.c.bf16 %v1405, %v1404
      %v1437 = vpack.c.bf16 %v1407, %v1406
      %v1438 = vpack.c.bf16 %v1409, %v1408
      %v1439 = vpack.c.bf16 %v1411, %v1410
      %v1440 = vpack.c.bf16 %v1413, %v1412
      %v1441 = vpack.c.bf16 %v1415, %v1414
      %v1442 = vpack.c.bf16 %v1417, %v1416
      %v1443 = vpack.c.bf16 %v1419, %v1418
      %v1444 = vpack.c.bf16 %v1421, %v1420
      %v1445 = vpack.c.bf16 %v1423, %v1422
      %v1446 = vpack.c.bf16 %v1425, %v1424
      %v1447 = vpack.c.bf16 %v1427, %v1426
      %v1448 = vpack.c.bf16 %v1429, %v1428
      %v1449 = vpack.c.bf16 %v1431, %v1430
      %v1450 = vpack.c.bf16 %v1433, %v1432
      %v1451 = vpack.c.bf16 %v1435, %v1434
      %v1452 = vld [vmem:[%s262 + $0x10] sm:$0xf]
      %v1453 = vpack.c.bf16 %v1452, %v1452
      %v1455 = vsel %vm387, %v1436, 0
      %v1458 = vsel %vm387, %v1437, 0
      %v1461 = vsel %vm387, %v1438, 0
      %v1464 = vsel %vm387, %v1439, 0
      %v1467 = vsel %vm387, %v1440, 0
      %v1470 = vsel %vm387, %v1441, 0
      %v1473 = vsel %vm387, %v1442, 0
      %v1476 = vsel %vm387, %v1443, 0
      %v1479 = vsel %vm387, %v1444, 0
      %v1482 = vsel %vm387, %v1445, 0
      %v1485 = vsel %vm387, %v1446, 0
      %v1488 = vsel %vm387, %v1447, 0
      %v1491 = vsel %vm387, %v1448, 0
      %v1494 = vsel %vm387, %v1449, 0
      %v1497 = vsel %vm387, %v1450, 0
      %v1500 = vsel %vm387, %v1451, 0
      %v1503 = vsel %vm436, %v1453, 0
      %1505 = vmatprep.subr.bf16.mxu0 0
      %1506 = vmatpush1.bf16.msra.mxu0 %v1503
      %1507 = vmatprep.subr.bf16.mxu0 0
      %1508 = vmatpush1.bf16.msra.mxu0 0
      %1509 = vmatprep.subr.bf16.mxu0 0
      %1510 = vmatpush1.bf16.msra.mxu0 0
      %1511 = vmatprep.subr.bf16.mxu0 0
      %1512 = vmatpush1.bf16.msra.mxu0 0
      %1513 = vmatprep.subr.bf16.mxu0 0
      %1514 = vmatpush1.bf16.msra.mxu0 0
      %1515 = vmatprep.subr.bf16.mxu0 0
      %1516 = vmatpush1.bf16.msra.mxu0 0
      %1517 = vmatprep.subr.bf16.mxu0 0
      %1518 = vmatpush1.bf16.msra.mxu0 0
      %1519 = vmatprep.subr.bf16.mxu0 0
      %1520 = vmatpush1.bf16.msra.mxu0 0
      %1521 = vmatprep.subr.bf16.mxu0 0
      %1522 = vmatpush1.bf16.msra.mxu0 0
      %1523 = vmatprep.subr.bf16.mxu0 0
      %1524 = vmatpush1.bf16.msra.mxu0 0
      %1525 = vmatprep.subr.bf16.mxu0 0
      %1526 = vmatpush1.bf16.msra.mxu0 0
      %1527 = vmatprep.subr.bf16.mxu0 0
      %1528 = vmatpush1.bf16.msra.mxu0 0
      %1529 = vmatprep.subr.bf16.mxu0 0
      %1530 = vmatpush1.bf16.msra.mxu0 0
      %1531 = vmatprep.subr.bf16.mxu0 0
      %1532 = vmatpush1.bf16.msra.mxu0 0
      %1533 = vmatprep.subr.bf16.mxu0 0
      %1534 = vmatpush1.bf16.msra.mxu0 0
      %1535 = vmatprep.subr.bf16.mxu0 0
      %1536 = vmatpush1.bf16.msra.mxu0 0
      %1537 = vmatprep.mubr.bf16.mxu0 0
      %1538 = vmatmul.mubr.bf16.gmra.mrb[0].mxu0 %v1455
      %v1539 = vpop.f32.mrb[0].mxu0
      %v1540 = vadd.f32 0.0, %v1539
      %v1541 = vpop.f32.mrb[0].mxu0
      %v1542 = vpop.f32.mrb[0].mxu0
      %v1543 = vadd.f32 0.0, %v1542
      %v1544 = vpop.f32.mrb[0].mxu0
      %1545 = vmatprep.mubr.bf16.mxu0 0
      %1546 = vmatmul.mubr.bf16.gmra.mrb[0].mxu0 %v1458
      %v1547 = vpop.f32.mrb[0].mxu0
      %v1548 = vadd.f32 0.0, %v1547
      %v1549 = vpop.f32.mrb[0].mxu0
      %v1550 = vpop.f32.mrb[0].mxu0
      %v1551 = vadd.f32 0.0, %v1550
      %v1552 = vpop.f32.mrb[0].mxu0
      %1553 = vmatprep.mubr.bf16.mxu0 0
      %1554 = vmatmul.mubr.bf16.gmra.mrb[0].mxu0 %v1461
      %v1555 = vpop.f32.mrb[0].mxu0
      %v1556 = vadd.f32 0.0, %v1555
      %v1557 = vpop.f32.mrb[0].mxu0
      %v1558 = vpop.f32.mrb[0].mxu0
      %v1559 = vadd.f32 0.0, %v1558
      %v1560 = vpop.f32.mrb[0].mxu0
      %1561 = vmatprep.mubr.bf16.mxu0 0
      %1562 = vmatmul.mubr.bf16.gmra.mrb[0].mxu0 %v1464
      %v1563 = vpop.f32.mrb[0].mxu0
      %v1564 = vadd.f32 0.0, %v1563
      %v1565 = vpop.f32.mrb[0].mxu0
      %v1566 = vpop.f32.mrb[0].mxu0
      %v1567 = vadd.f32 0.0, %v1566
      %v1568 = vpop.f32.mrb[0].mxu0
      %1569 = vmatprep.mubr.bf16.mxu0 0
      %1570 = vmatmul.mubr.bf16.gmra.mrb[0].mxu0 %v1467
      %v1571 = vpop.f32.mrb[0].mxu0
      %v1572 = vadd.f32 0.0, %v1571
      %v1573 = vpop.f32.mrb[0].mxu0
      %v1574 = vpop.f32.mrb[0].mxu0
      %v1575 = vadd.f32 0.0, %v1574
      %v1576 = vpop.f32.mrb[0].mxu0
      %1577 = vmatprep.mubr.bf16.mxu0 0
      %1578 = vmatmul.mubr.bf16.gmra.mrb[0].mxu0 %v1470
      %v1579 = vpop.f32.mrb[0].mxu0
      %v1580 = vadd.f32 0.0, %v1579
      %v1581 = vpop.f32.mrb[0].mxu0
      %v1582 = vpop.f32.mrb[0].mxu0
      %v1583 = vadd.f32 0.0, %v1582
      %v1584 = vpop.f32.mrb[0].mxu0
      %1585 = vmatprep.mubr.bf16.mxu0 0
      %1586 = vmatmul.mubr.bf16.gmra.mrb[0].mxu0 %v1473
      %v1587 = vpop.f32.mrb[0].mxu0
      %v1588 = vadd.f32 0.0, %v1587
      %v1589 = vpop.f32.mrb[0].mxu0
      %v1590 = vpop.f32.mrb[0].mxu0
      %v1591 = vadd.f32 0.0, %v1590
      %v1592 = vpop.f32.mrb[0].mxu0
      %1593 = vmatprep.mubr.bf16.mxu0 0
      %1594 = vmatmul.mubr.bf16.gmra.mrb[0].mxu0 %v1476
      %v1595 = vpop.f32.mrb[0].mxu0
      %v1596 = vadd.f32 0.0, %v1595
      %v1597 = vpop.f32.mrb[0].mxu0
      %v1598 = vpop.f32.mrb[0].mxu0
      %v1599 = vadd.f32 0.0, %v1598
      %v1600 = vpop.f32.mrb[0].mxu0
      %1601 = vmatprep.mubr.bf16.mxu0 0
      %1602 = vmatmul.mubr.bf16.gmra.mrb[0].mxu0 %v1479
      %v1603 = vpop.f32.mrb[0].mxu0
      %v1604 = vadd.f32 0.0, %v1603
      %v1605 = vpop.f32.mrb[0].mxu0
      %v1606 = vpop.f32.mrb[0].mxu0
      %v1607 = vadd.f32 0.0, %v1606
      %v1608 = vpop.f32.mrb[0].mxu0
      %1609 = vmatprep.mubr.bf16.mxu0 0
      %1610 = vmatmul.mubr.bf16.gmra.mrb[0].mxu0 %v1482
      %v1611 = vpop.f32.mrb[0].mxu0
      %v1612 = vadd.f32 0.0, %v1611
      %v1613 = vpop.f32.mrb[0].mxu0
      %v1614 = vpop.f32.mrb[0].mxu0
      %v1615 = vadd.f32 0.0, %v1614
      %v1616 = vpop.f32.mrb[0].mxu0
      %1617 = vmatprep.mubr.bf16.mxu0 0
      %1618 = vmatmul.mubr.bf16.gmra.mrb[0].mxu0 %v1485
      %v1619 = vpop.f32.mrb[0].mxu0
      %v1620 = vadd.f32 0.0, %v1619
      %v1621 = vpop.f32.mrb[0].mxu0
      %v1622 = vpop.f32.mrb[0].mxu0
      %v1623 = vadd.f32 0.0, %v1622
      %v1624 = vpop.f32.mrb[0].mxu0
      %1625 = vmatprep.mubr.bf16.mxu0 0
      %1626 = vmatmul.mubr.bf16.gmra.mrb[0].mxu0 %v1488
      %v1627 = vpop.f32.mrb[0].mxu0
      %v1628 = vadd.f32 0.0, %v1627
      %v1629 = vpop.f32.mrb[0].mxu0
      %v1630 = vpop.f32.mrb[0].mxu0
      %v1631 = vadd.f32 0.0, %v1630
      %v1632 = vpop.f32.mrb[0].mxu0
      %1633 = vmatprep.mubr.bf16.mxu0 0
      %1634 = vmatmul.mubr.bf16.gmra.mrb[0].mxu0 %v1491
      %v1635 = vpop.f32.mrb[0].mxu0
      %v1636 = vadd.f32 0.0, %v1635
      %v1637 = vpop.f32.mrb[0].mxu0
      %v1638 = vpop.f32.mrb[0].mxu0
      %v1639 = vadd.f32 0.0, %v1638
      %v1640 = vpop.f32.mrb[0].mxu0
      %1641 = vmatprep.mubr.bf16.mxu0 0
      %1642 = vmatmul.mubr.bf16.gmra.mrb[0].mxu0 %v1494
      %v1643 = vpop.f32.mrb[0].mxu0
      %v1644 = vadd.f32 0.0, %v1643
      %v1645 = vpop.f32.mrb[0].mxu0
      %v1646 = vpop.f32.mrb[0].mxu0
      %v1647 = vadd.f32 0.0, %v1646
      %v1648 = vpop.f32.mrb[0].mxu0
      %1649 = vmatprep.mubr.bf16.mxu0 0
      %1650 = vmatmul.mubr.bf16.gmra.mrb[0].mxu0 %v1497
      %v1651 = vpop.f32.mrb[0].mxu0
      %v1652 = vadd.f32 0.0, %v1651
      %v1653 = vpop.f32.mrb[0].mxu0
      %v1654 = vpop.f32.mrb[0].mxu0
      %v1655 = vadd.f32 0.0, %v1654
      %v1656 = vpop.f32.mrb[0].mxu0
      %1657 = vmatprep.mubr.bf16.mxu0 0
      %1658 = vmatmul.mubr.bf16.gmra.mrb[0].mxu0 %v1500
      %v1659 = vpop.f32.mrb[0].mxu0
      %v1660 = vadd.f32 0.0, %v1659
      %v1661 = vpop.f32.mrb[0].mxu0
      %v1662 = vpop.f32.mrb[0].mxu0
      %v1663 = vadd.f32 0.0, %v1662
      %v1664 = vpop.f32.mrb[0].mxu0
      %1665 = vdwg.mxu0
      %v1666 = vadd.f32 %v1372, %v1540
      %v1667 = vadd.f32 %v1373, %v1543
      %v1668 = vadd.f32 %v1374, %v1548
      %v1669 = vadd.f32 %v1375, %v1551
      %v1670 = vadd.f32 %v1376, %v1556
      %v1671 = vadd.f32 %v1377, %v1559
      %v1672 = vadd.f32 %v1378, %v1564
      %v1673 = vadd.f32 %v1379, %v1567
      %v1674 = vadd.f32 %v1380, %v1572
      %v1675 = vadd.f32 %v1381, %v1575
      %v1676 = vadd.f32 %v1382, %v1580
      %v1677 = vadd.f32 %v1383, %v1583
      %v1678 = vadd.f32 %v1384, %v1588
      %v1679 = vadd.f32 %v1385, %v1591
      %v1680 = vadd.f32 %v1386, %v1596
      %v1681 = vadd.f32 %v1387, %v1599
      %v1682 = vadd.f32 %v1388, %v1604
      %v1683 = vadd.f32 %v1389, %v1607
      %v1684 = vadd.f32 %v1390, %v1612
      %v1685 = vadd.f32 %v1391, %v1615
      %v1686 = vadd.f32 %v1392, %v1620
      %v1687 = vadd.f32 %v1393, %v1623
      %v1688 = vadd.f32 %v1394, %v1628
      %v1689 = vadd.f32 %v1395, %v1631
      %v1690 = vadd.f32 %v1396, %v1636
      %v1691 = vadd.f32 %v1397, %v1639
      %v1692 = vadd.f32 %v1398, %v1644
      %v1693 = vadd.f32 %v1399, %v1647
      %v1694 = vadd.f32 %v1400, %v1652
      %v1695 = vadd.f32 %v1401, %v1655
      %v1696 = vadd.f32 %v1402, %v1660
      %v1697 = vadd.f32 %v1403, %v1663
      %v1698 = vld [vmem:[%s1109 + $0x2] sm:$0xff]
      %v1699 = vld [vmem:[%s1109 + $0xa] sm:$0xff]
      %v1700 = vld [vmem:[%s1109 + $0x1a] sm:$0xff]
      %v1701 = vld [vmem:[%s1109 + $0x22] sm:$0xff]
      %v1702 = vld [vmem:[%s1109 + $0x32] sm:$0xff]
      %v1703 = vld [vmem:[%s1109 + $0x3a] sm:$0xff]
      %v1704 = vld [vmem:[%s1109 + $0x4a] sm:$0xff]
      %v1705 = vld [vmem:[%s1109 + $0x52] sm:$0xff]
      %v1706 = vld [vmem:[%s1109 + $0x62] sm:$0xff]
      %v1707 = vld [vmem:[%s1109 + $0x6a] sm:$0xff]
      %v1708 = vld [vmem:[%s1109 + $0x7a] sm:$0xff]
      %v1709 = vld [vmem:[%s1109 + $0x82] sm:$0xff]
      %v1710 = vld [vmem:[%s1109 + $0x92] sm:$0xff]
      %v1711 = vld [vmem:[%s1109 + $0x9a] sm:$0xff]
      %v1712 = vld [vmem:[%s1109 + $0xaa] sm:$0xff]
      %v1713 = vld [vmem:[%s1109 + $0xb2] sm:$0xff]
      %v1714 = vld [vmem:[%s1109 + $0xc2] sm:$0xff]
      %v1715 = vld [vmem:[%s1109 + $0xca] sm:$0xff]
      %v1716 = vld [vmem:[%s1109 + $0xda] sm:$0xff]
      %v1717 = vld [vmem:[%s1109 + $0xe2] sm:$0xff]
      %v1718 = vld [vmem:[%s1109 + $0xf2] sm:$0xff]
      %v1719 = vld [vmem:[%s1109 + $0xfa] sm:$0xff]
      %v1720 = vld [vmem:[%s1109 + $0x10a] sm:$0xff]
      %v1721 = vld [vmem:[%s1109 + $0x112] sm:$0xff]
      %v1722 = vld [vmem:[%s1109 + $0x122] sm:$0xff]
      %v1723 = vld [vmem:[%s1109 + $0x12a] sm:$0xff]
      %v1724 = vld [vmem:[%s1109 + $0x13a] sm:$0xff]
      %v1725 = vld [vmem:[%s1109 + $0x142] sm:$0xff]
      %v1726 = vld [vmem:[%s1109 + $0x152] sm:$0xff]
      %v1727 = vld [vmem:[%s1109 + $0x15a] sm:$0xff]
      %v1728 = vld [vmem:[%s1109 + $0x16a] sm:$0xff]
      %v1729 = vld [vmem:[%s1109 + $0x172] sm:$0xff]
      %v1730 = vpack.c.bf16 %v1699, %v1698
      %v1731 = vpack.c.bf16 %v1701, %v1700
      %v1732 = vpack.c.bf16 %v1703, %v1702
      %v1733 = vpack.c.bf16 %v1705, %v1704
      %v1734 = vpack.c.bf16 %v1707, %v1706
      %v1735 = vpack.c.bf16 %v1709, %v1708
      %v1736 = vpack.c.bf16 %v1711, %v1710
      %v1737 = vpack.c.bf16 %v1713, %v1712
      %v1738 = vpack.c.bf16 %v1715, %v1714
      %v1739 = vpack.c.bf16 %v1717, %v1716
      %v1740 = vpack.c.bf16 %v1719, %v1718
      %v1741 = vpack.c.bf16 %v1721, %v1720
      %v1742 = vpack.c.bf16 %v1723, %v1722
      %v1743 = vpack.c.bf16 %v1725, %v1724
      %v1744 = vpack.c.bf16 %v1727, %v1726
      %v1745 = vpack.c.bf16 %v1729, %v1728
      %v1746 = vld [vmem:[%s262 + $0x14] sm:$0xf]
      %v1747 = vpack.c.bf16 %v1746, %v1746
      %v1749 = vsel %vm387, %v1730, 0
      %v1752 = vsel %vm387, %v1731, 0
      %v1755 = vsel %vm387, %v1732, 0
      %v1758 = vsel %vm387, %v1733, 0
      %v1761 = vsel %vm387, %v1734, 0
      %v1764 = vsel %vm387, %v1735, 0
      %v1767 = vsel %vm387, %v1736, 0
      %v1770 = vsel %vm387, %v1737, 0
      %v1773 = vsel %vm387, %v1738, 0
      %v1776 = vsel %vm387, %v1739, 0
      %v1779 = vsel %vm387, %v1740, 0
      %v1782 = vsel %vm387, %v1741, 0
      %v1785 = vsel %vm387, %v1742, 0
      %v1788 = vsel %vm387, %v1743, 0
      %v1791 = vsel %vm387, %v1744, 0
      %v1794 = vsel %vm387, %v1745, 0
      %v1797 = vsel %vm436, %v1747, 0
      %1799 = vmatprep.subr.bf16.mxu0 0
      %1800 = vmatpush1.bf16.msra.mxu0 %v1797
      %1801 = vmatprep.subr.bf16.mxu0 0
      %1802 = vmatpush1.bf16.msra.mxu0 0
      %1803 = vmatprep.subr.bf16.mxu0 0
      %1804 = vmatpush1.bf16.msra.mxu0 0
      %1805 = vmatprep.subr.bf16.mxu0 0
      %1806 = vmatpush1.bf16.msra.mxu0 0
      %1807 = vmatprep.subr.bf16.mxu0 0
      %1808 = vmatpush1.bf16.msra.mxu0 0
      %1809 = vmatprep.subr.bf16.mxu0 0
      %1810 = vmatpush1.bf16.msra.mxu0 0
      %1811 = vmatprep.subr.bf16.mxu0 0
      %1812 = vmatpush1.bf16.msra.mxu0 0
      %1813 = vmatprep.subr.bf16.mxu0 0
      %1814 = vmatpush1.bf16.msra.mxu0 0
      %1815 = vmatprep.subr.bf16.mxu0 0
      %1816 = vmatpush1.bf16.msra.mxu0 0
      %1817 = vmatprep.subr.bf16.mxu0 0
      %1818 = vmatpush1.bf16.msra.mxu0 0
      %1819 = vmatprep.subr.bf16.mxu0 0
      %1820 = vmatpush1.bf16.msra.mxu0 0
      %1821 = vmatprep.subr.bf16.mxu0 0
      %1822 = vmatpush1.bf16.msra.mxu0 0
      %1823 = vmatprep.subr.bf16.mxu0 0
      %1824 = vmatpush1.bf16.msra.mxu0 0
      %1825 = vmatprep.subr.bf16.mxu0 0
      %1826 = vmatpush1.bf16.msra.mxu0 0
      %1827 = vmatprep.subr.bf16.mxu0 0
      %1828 = vmatpush1.bf16.msra.mxu0 0
      %1829 = vmatprep.subr.bf16.mxu0 0
      %1830 = vmatpush1.bf16.msra.mxu0 0
      %1831 = vmatprep.mubr.bf16.mxu0 0
      %1832 = vmatmul.mubr.bf16.gmra.mrb[0].mxu0 %v1749
      %v1833 = vpop.f32.mrb[0].mxu0
      %v1834 = vadd.f32 0.0, %v1833
      %v1835 = vpop.f32.mrb[0].mxu0
      %v1836 = vpop.f32.mrb[0].mxu0
      %v1837 = vadd.f32 0.0, %v1836
      %v1838 = vpop.f32.mrb[0].mxu0
      %1839 = vmatprep.mubr.bf16.mxu0 0
      %1840 = vmatmul.mubr.bf16.gmra.mrb[0].mxu0 %v1752
      %v1841 = vpop.f32.mrb[0].mxu0
      %v1842 = vadd.f32 0.0, %v1841
      %v1843 = vpop.f32.mrb[0].mxu0
      %v1844 = vpop.f32.mrb[0].mxu0
      %v1845 = vadd.f32 0.0, %v1844
      %v1846 = vpop.f32.mrb[0].mxu0
      %1847 = vmatprep.mubr.bf16.mxu0 0
      %1848 = vmatmul.mubr.bf16.gmra.mrb[0].mxu0 %v1755
      %v1849 = vpop.f32.mrb[0].mxu0
      %v1850 = vadd.f32 0.0, %v1849
      %v1851 = vpop.f32.mrb[0].mxu0
      %v1852 = vpop.f32.mrb[0].mxu0
      %v1853 = vadd.f32 0.0, %v1852
      %v1854 = vpop.f32.mrb[0].mxu0
      %1855 = vmatprep.mubr.bf16.mxu0 0
      %1856 = vmatmul.mubr.bf16.gmra.mrb[0].mxu0 %v1758
      %v1857 = vpop.f32.mrb[0].mxu0
      %v1858 = vadd.f32 0.0, %v1857
      %v1859 = vpop.f32.mrb[0].mxu0
      %v1860 = vpop.f32.mrb[0].mxu0
      %v1861 = vadd.f32 0.0, %v1860
      %v1862 = vpop.f32.mrb[0].mxu0
      %1863 = vmatprep.mubr.bf16.mxu0 0
      %1864 = vmatmul.mubr.bf16.gmra.mrb[0].mxu0 %v1761
      %v1865 = vpop.f32.mrb[0].mxu0
      %v1866 = vadd.f32 0.0, %v1865
      %v1867 = vpop.f32.mrb[0].mxu0
      %v1868 = vpop.f32.mrb[0].mxu0
      %v1869 = vadd.f32 0.0, %v1868
      %v1870 = vpop.f32.mrb[0].mxu0
      %1871 = vmatprep.mubr.bf16.mxu0 0
      %1872 = vmatmul.mubr.bf16.gmra.mrb[0].mxu0 %v1764
      %v1873 = vpop.f32.mrb[0].mxu0
      %v1874 = vadd.f32 0.0, %v1873
      %v1875 = vpop.f32.mrb[0].mxu0
      %v1876 = vpop.f32.mrb[0].mxu0
      %v1877 = vadd.f32 0.0, %v1876
      %v1878 = vpop.f32.mrb[0].mxu0
      %1879 = vmatprep.mubr.bf16.mxu0 0
      %1880 = vmatmul.mubr.bf16.gmra.mrb[0].mxu0 %v1767
      %v1881 = vpop.f32.mrb[0].mxu0
      %v1882 = vadd.f32 0.0, %v1881
      %v1883 = vpop.f32.mrb[0].mxu0
      %v1884 = vpop.f32.mrb[0].mxu0
      %v1885 = vadd.f32 0.0, %v1884
      %v1886 = vpop.f32.mrb[0].mxu0
      %1887 = vmatprep.mubr.bf16.mxu0 0
      %1888 = vmatmul.mubr.bf16.gmra.mrb[0].mxu0 %v1770
      %v1889 = vpop.f32.mrb[0].mxu0
      %v1890 = vadd.f32 0.0, %v1889
      %v1891 = vpop.f32.mrb[0].mxu0
      %v1892 = vpop.f32.mrb[0].mxu0
      %v1893 = vadd.f32 0.0, %v1892
      %v1894 = vpop.f32.mrb[0].mxu0
      %1895 = vmatprep.mubr.bf16.mxu0 0
      %1896 = vmatmul.mubr.bf16.gmra.mrb[0].mxu0 %v1773
      %v1897 = vpop.f32.mrb[0].mxu0
      %v1898 = vadd.f32 0.0, %v1897
      %v1899 = vpop.f32.mrb[0].mxu0
      %v1900 = vpop.f32.mrb[0].mxu0
      %v1901 = vadd.f32 0.0, %v1900
      %v1902 = vpop.f32.mrb[0].mxu0
      %1903 = vmatprep.mubr.bf16.mxu0 0
      %1904 = vmatmul.mubr.bf16.gmra.mrb[0].mxu0 %v1776
      %v1905 = vpop.f32.mrb[0].mxu0
      %v1906 = vadd.f32 0.0, %v1905
      %v1907 = vpop.f32.mrb[0].mxu0
      %v1908 = vpop.f32.mrb[0].mxu0
      %v1909 = vadd.f32 0.0, %v1908
      %v1910 = vpop.f32.mrb[0].mxu0
      %1911 = vmatprep.mubr.bf16.mxu0 0
      %1912 = vmatmul.mubr.bf16.gmra.mrb[0].mxu0 %v1779
      %v1913 = vpop.f32.mrb[0].mxu0
      %v1914 = vadd.f32 0.0, %v1913
      %v1915 = vpop.f32.mrb[0].mxu0
      %v1916 = vpop.f32.mrb[0].mxu0
      %v1917 = vadd.f32 0.0, %v1916
      %v1918 = vpop.f32.mrb[0].mxu0
      %1919 = vmatprep.mubr.bf16.mxu0 0
      %1920 = vmatmul.mubr.bf16.gmra.mrb[0].mxu0 %v1782
      %v1921 = vpop.f32.mrb[0].mxu0
      %v1922 = vadd.f32 0.0, %v1921
      %v1923 = vpop.f32.mrb[0].mxu0
      %v1924 = vpop.f32.mrb[0].mxu0
      %v1925 = vadd.f32 0.0, %v1924
      %v1926 = vpop.f32.mrb[0].mxu0
      %1927 = vmatprep.mubr.bf16.mxu0 0
      %1928 = vmatmul.mubr.bf16.gmra.mrb[0].mxu0 %v1785
      %v1929 = vpop.f32.mrb[0].mxu0
      %v1930 = vadd.f32 0.0, %v1929
      %v1931 = vpop.f32.mrb[0].mxu0
      %v1932 = vpop.f32.mrb[0].mxu0
      %v1933 = vadd.f32 0.0, %v1932
      %v1934 = vpop.f32.mrb[0].mxu0
      %1935 = vmatprep.mubr.bf16.mxu0 0
      %1936 = vmatmul.mubr.bf16.gmra.mrb[0].mxu0 %v1788
      %v1937 = vpop.f32.mrb[0].mxu0
      %v1938 = vadd.f32 0.0, %v1937
      %v1939 = vpop.f32.mrb[0].mxu0
      %v1940 = vpop.f32.mrb[0].mxu0
      %v1941 = vadd.f32 0.0, %v1940
      %v1942 = vpop.f32.mrb[0].mxu0
      %1943 = vmatprep.mubr.bf16.mxu0 0
      %1944 = vmatmul.mubr.bf16.gmra.mrb[0].mxu0 %v1791
      %v1945 = vpop.f32.mrb[0].mxu0
      %v1946 = vadd.f32 0.0, %v1945
      %v1947 = vpop.f32.mrb[0].mxu0
      %v1948 = vpop.f32.mrb[0].mxu0
      %v1949 = vadd.f32 0.0, %v1948
      %v1950 = vpop.f32.mrb[0].mxu0
      %1951 = vmatprep.mubr.bf16.mxu0 0
      %1952 = vmatmul.mubr.bf16.gmra.mrb[0].mxu0 %v1794
      %v1953 = vpop.f32.mrb[0].mxu0
      %v1954 = vadd.f32 0.0, %v1953
      %v1955 = vpop.f32.mrb[0].mxu0
      %v1956 = vpop.f32.mrb[0].mxu0
      %v1957 = vadd.f32 0.0, %v1956
      %v1958 = vpop.f32.mrb[0].mxu0
      %1959 = vdwg.mxu0
      %v1960 = vadd.f32 %v1666, %v1834
      %v1961 = vadd.f32 %v1667, %v1837
      %v1962 = vadd.f32 %v1668, %v1842
      %v1963 = vadd.f32 %v1669, %v1845
      %v1964 = vadd.f32 %v1670, %v1850
      %v1965 = vadd.f32 %v1671, %v1853
      %v1966 = vadd.f32 %v1672, %v1858
      %v1967 = vadd.f32 %v1673, %v1861
      %v1968 = vadd.f32 %v1674, %v1866
      %v1969 = vadd.f32 %v1675, %v1869
      %v1970 = vadd.f32 %v1676, %v1874
      %v1971 = vadd.f32 %v1677, %v1877
      %v1972 = vadd.f32 %v1678, %v1882
      %v1973 = vadd.f32 %v1679, %v1885
      %v1974 = vadd.f32 %v1680, %v1890
      %v1975 = vadd.f32 %v1681, %v1893
      %v1976 = vadd.f32 %v1682, %v1898
      %v1977 = vadd.f32 %v1683, %v1901
      %v1978 = vadd.f32 %v1684, %v1906
      %v1979 = vadd.f32 %v1685, %v1909
      %v1980 = vadd.f32 %v1686, %v1914
      %v1981 = vadd.f32 %v1687, %v1917
      %v1982 = vadd.f32 %v1688, %v1922
      %v1983 = vadd.f32 %v1689, %v1925
      %v1984 = vadd.f32 %v1690, %v1930
      %v1985 = vadd.f32 %v1691, %v1933
      %v1986 = vadd.f32 %v1692, %v1938
      %v1987 = vadd.f32 %v1693, %v1941
      %v1988 = vadd.f32 %v1694, %v1946
      %v1989 = vadd.f32 %v1695, %v1949
      %v1990 = vadd.f32 %v1696, %v1954
      %v1991 = vadd.f32 %v1697, %v1957
      %s1992 = sadd.s32 %s284, 2
      %s1993 = smul.u32 %s1992, 24
      %s1994 = scalar_lea.vmem %s258, %s1993
      %v1995 = vld [vmem:[%s1994] sm:$0xff]
      %v1996 = vld [vmem:[%s1994 + $0x8] sm:$0xff]
      %v1997 = vld [vmem:[%s1994 + $0x18] sm:$0xff]
      %v1998 = vld [vmem:[%s1994 + $0x20] sm:$0xff]
      %v1999 = vld [vmem:[%s1994 + $0x30] sm:$0xff]
      %v2000 = vld [vmem:[%s1994 + $0x38] sm:$0xff]
      %v2001 = vld [vmem:[%s1994 + $0x48] sm:$0xff]
      %v2002 = vld [vmem:[%s1994 + $0x50] sm:$0xff]
      %v2003 = vld [vmem:[%s1994 + $0x60] sm:$0xff]
      %v2004 = vld [vmem:[%s1994 + $0x68] sm:$0xff]
      %v2005 = vld [vmem:[%s1994 + $0x78] sm:$0xff]
      %v2006 = vld [vmem:[%s1994 + $0x80] sm:$0xff]
      %v2007 = vld [vmem:[%s1994 + $0x90] sm:$0xff]
      %v2008 = vld [vmem:[%s1994 + $0x98] sm:$0xff]
      %v2009 = vld [vmem:[%s1994 + $0xa8] sm:$0xff]
      %v2010 = vld [vmem:[%s1994 + $0xb0] sm:$0xff]
      %v2011 = vld [vmem:[%s1994 + $0xc0] sm:$0xff]
      %v2012 = vld [vmem:[%s1994 + $0xc8] sm:$0xff]
      %v2013 = vld [vmem:[%s1994 + $0xd8] sm:$0xff]
      %v2014 = vld [vmem:[%s1994 + $0xe0] sm:$0xff]
      %v2015 = vld [vmem:[%s1994 + $0xf0] sm:$0xff]
      %v2016 = vld [vmem:[%s1994 + $0xf8] sm:$0xff]
      %v2017 = vld [vmem:[%s1994 + $0x108] sm:$0xff]
      %v2018 = vld [vmem:[%s1994 + $0x110] sm:$0xff]
      %v2019 = vld [vmem:[%s1994 + $0x120] sm:$0xff]
      %v2020 = vld [vmem:[%s1994 + $0x128] sm:$0xff]
      %v2021 = vld [vmem:[%s1994 + $0x138] sm:$0xff]
      %v2022 = vld [vmem:[%s1994 + $0x140] sm:$0xff]
      %v2023 = vld [vmem:[%s1994 + $0x150] sm:$0xff]
      %v2024 = vld [vmem:[%s1994 + $0x158] sm:$0xff]
      %v2025 = vld [vmem:[%s1994 + $0x168] sm:$0xff]
      %v2026 = vld [vmem:[%s1994 + $0x170] sm:$0xff]
      %v2027 = vpack.c.bf16 %v1996, %v1995
      %v2028 = vpack.c.bf16 %v1998, %v1997
      %v2029 = vpack.c.bf16 %v2000, %v1999
      %v2030 = vpack.c.bf16 %v2002, %v2001
      %v2031 = vpack.c.bf16 %v2004, %v2003
      %v2032 = vpack.c.bf16 %v2006, %v2005
      %v2033 = vpack.c.bf16 %v2008, %v2007
      %v2034 = vpack.c.bf16 %v2010, %v2009
      %v2035 = vpack.c.bf16 %v2012, %v2011
      %v2036 = vpack.c.bf16 %v2014, %v2013
      %v2037 = vpack.c.bf16 %v2016, %v2015
      %v2038 = vpack.c.bf16 %v2018, %v2017
      %v2039 = vpack.c.bf16 %v2020, %v2019
      %v2040 = vpack.c.bf16 %v2022, %v2021
      %v2041 = vpack.c.bf16 %v2024, %v2023
      %v2042 = vpack.c.bf16 %v2026, %v2025
      %v2043 = vld [vmem:[%s262 + $0x18] sm:$0xf]
      %v2044 = vpack.c.bf16 %v2043, %v2043
      %v2046 = vsel %vm387, %v2027, 0
      %v2049 = vsel %vm387, %v2028, 0
      %v2052 = vsel %vm387, %v2029, 0
      %v2055 = vsel %vm387, %v2030, 0
      %v2058 = vsel %vm387, %v2031, 0
      %v2061 = vsel %vm387, %v2032, 0
      %v2064 = vsel %vm387, %v2033, 0
      %v2067 = vsel %vm387, %v2034, 0
      %v2070 = vsel %vm387, %v2035, 0
      %v2073 = vsel %vm387, %v2036, 0
      %v2076 = vsel %vm387, %v2037, 0
      %v2079 = vsel %vm387, %v2038, 0
      %v2082 = vsel %vm387, %v2039, 0
      %v2085 = vsel %vm387, %v2040, 0
      %v2088 = vsel %vm387, %v2041, 0
      %v2091 = vsel %vm387, %v2042, 0
      %v2094 = vsel %vm436, %v2044, 0
      %2096 = vmatprep.subr.bf16.mxu0 0
      %2097 = vmatpush1.bf16.msra.mxu0 %v2094
      %2098 = vmatprep.subr.bf16.mxu0 0
      %2099 = vmatpush1.bf16.msra.mxu0 0
      %2100 = vmatprep.subr.bf16.mxu0 0
      %2101 = vmatpush1.bf16.msra.mxu0 0
      %2102 = vmatprep.subr.bf16.mxu0 0
      %2103 = vmatpush1.bf16.msra.mxu0 0
      %2104 = vmatprep.subr.bf16.mxu0 0
      %2105 = vmatpush1.bf16.msra.mxu0 0
      %2106 = vmatprep.subr.bf16.mxu0 0
      %2107 = vmatpush1.bf16.msra.mxu0 0
      %2108 = vmatprep.subr.bf16.mxu0 0
      %2109 = vmatpush1.bf16.msra.mxu0 0
      %2110 = vmatprep.subr.bf16.mxu0 0
      %2111 = vmatpush1.bf16.msra.mxu0 0
      %2112 = vmatprep.subr.bf16.mxu0 0
      %2113 = vmatpush1.bf16.msra.mxu0 0
      %2114 = vmatprep.subr.bf16.mxu0 0
      %2115 = vmatpush1.bf16.msra.mxu0 0
      %2116 = vmatprep.subr.bf16.mxu0 0
      %2117 = vmatpush1.bf16.msra.mxu0 0
      %2118 = vmatprep.subr.bf16.mxu0 0
      %2119 = vmatpush1.bf16.msra.mxu0 0
      %2120 = vmatprep.subr.bf16.mxu0 0
      %2121 = vmatpush1.bf16.msra.mxu0 0
      %2122 = vmatprep.subr.bf16.mxu0 0
      %2123 = vmatpush1.bf16.msra.mxu0 0
      %2124 = vmatprep.subr.bf16.mxu0 0
      %2125 = vmatpush1.bf16.msra.mxu0 0
      %2126 = vmatprep.subr.bf16.mxu0 0
      %2127 = vmatpush1.bf16.msra.mxu0 0
      %2128 = vmatprep.mubr.bf16.mxu0 0
      %2129 = vmatmul.mubr.bf16.gmra.mrb[0].mxu0 %v2046
      %v2130 = vpop.f32.mrb[0].mxu0
      %v2131 = vadd.f32 0.0, %v2130
      %v2132 = vpop.f32.mrb[0].mxu0
      %v2133 = vpop.f32.mrb[0].mxu0
      %v2134 = vadd.f32 0.0, %v2133
      %v2135 = vpop.f32.mrb[0].mxu0
      %2136 = vmatprep.mubr.bf16.mxu0 0
      %2137 = vmatmul.mubr.bf16.gmra.mrb[0].mxu0 %v2049
      %v2138 = vpop.f32.mrb[0].mxu0
      %v2139 = vadd.f32 0.0, %v2138
      %v2140 = vpop.f32.mrb[0].mxu0
      %v2141 = vpop.f32.mrb[0].mxu0
      %v2142 = vadd.f32 0.0, %v2141
      %v2143 = vpop.f32.mrb[0].mxu0
      %2144 = vmatprep.mubr.bf16.mxu0 0
      %2145 = vmatmul.mubr.bf16.gmra.mrb[0].mxu0 %v2052
      %v2146 = vpop.f32.mrb[0].mxu0
      %v2147 = vadd.f32 0.0, %v2146
      %v2148 = vpop.f32.mrb[0].mxu0
      %v2149 = vpop.f32.mrb[0].mxu0
      %v2150 = vadd.f32 0.0, %v2149
      %v2151 = vpop.f32.mrb[0].mxu0
      %2152 = vmatprep.mubr.bf16.mxu0 0
      %2153 = vmatmul.mubr.bf16.gmra.mrb[0].mxu0 %v2055
      %v2154 = vpop.f32.mrb[0].mxu0
      %v2155 = vadd.f32 0.0, %v2154
      %v2156 = vpop.f32.mrb[0].mxu0
      %v2157 = vpop.f32.mrb[0].mxu0
      %v2158 = vadd.f32 0.0, %v2157
      %v2159 = vpop.f32.mrb[0].mxu0
      %2160 = vmatprep.mubr.bf16.mxu0 0
      %2161 = vmatmul.mubr.bf16.gmra.mrb[0].mxu0 %v2058
      %v2162 = vpop.f32.mrb[0].mxu0
      %v2163 = vadd.f32 0.0, %v2162
      %v2164 = vpop.f32.mrb[0].mxu0
      %v2165 = vpop.f32.mrb[0].mxu0
      %v2166 = vadd.f32 0.0, %v2165
      %v2167 = vpop.f32.mrb[0].mxu0
      %2168 = vmatprep.mubr.bf16.mxu0 0
      %2169 = vmatmul.mubr.bf16.gmra.mrb[0].mxu0 %v2061
      %v2170 = vpop.f32.mrb[0].mxu0
      %v2171 = vadd.f32 0.0, %v2170
      %v2172 = vpop.f32.mrb[0].mxu0
      %v2173 = vpop.f32.mrb[0].mxu0
      %v2174 = vadd.f32 0.0, %v2173
      %v2175 = vpop.f32.mrb[0].mxu0
      %2176 = vmatprep.mubr.bf16.mxu0 0
      %2177 = vmatmul.mubr.bf16.gmra.mrb[0].mxu0 %v2064
      %v2178 = vpop.f32.mrb[0].mxu0
      %v2179 = vadd.f32 0.0, %v2178
      %v2180 = vpop.f32.mrb[0].mxu0
      %v2181 = vpop.f32.mrb[0].mxu0
      %v2182 = vadd.f32 0.0, %v2181
      %v2183 = vpop.f32.mrb[0].mxu0
      %2184 = vmatprep.mubr.bf16.mxu0 0
      %2185 = vmatmul.mubr.bf16.gmra.mrb[0].mxu0 %v2067
      %v2186 = vpop.f32.mrb[0].mxu0
      %v2187 = vadd.f32 0.0, %v2186
      %v2188 = vpop.f32.mrb[0].mxu0
      %v2189 = vpop.f32.mrb[0].mxu0
      %v2190 = vadd.f32 0.0, %v2189
      %v2191 = vpop.f32.mrb[0].mxu0
      %2192 = vmatprep.mubr.bf16.mxu0 0
      %2193 = vmatmul.mubr.bf16.gmra.mrb[0].mxu0 %v2070
      %v2194 = vpop.f32.mrb[0].mxu0
      %v2195 = vadd.f32 0.0, %v2194
      %v2196 = vpop.f32.mrb[0].mxu0
      %v2197 = vpop.f32.mrb[0].mxu0
      %v2198 = vadd.f32 0.0, %v2197
      %v2199 = vpop.f32.mrb[0].mxu0
      %2200 = vmatprep.mubr.bf16.mxu0 0
      %2201 = vmatmul.mubr.bf16.gmra.mrb[0].mxu0 %v2073
      %v2202 = vpop.f32.mrb[0].mxu0
      %v2203 = vadd.f32 0.0, %v2202
      %v2204 = vpop.f32.mrb[0].mxu0
      %v2205 = vpop.f32.mrb[0].mxu0
      %v2206 = vadd.f32 0.0, %v2205
      %v2207 = vpop.f32.mrb[0].mxu0
      %2208 = vmatprep.mubr.bf16.mxu0 0
      %2209 = vmatmul.mubr.bf16.gmra.mrb[0].mxu0 %v2076
      %v2210 = vpop.f32.mrb[0].mxu0
      %v2211 = vadd.f32 0.0, %v2210
      %v2212 = vpop.f32.mrb[0].mxu0
      %v2213 = vpop.f32.mrb[0].mxu0
      %v2214 = vadd.f32 0.0, %v2213
      %v2215 = vpop.f32.mrb[0].mxu0
      %2216 = vmatprep.mubr.bf16.mxu0 0
      %2217 = vmatmul.mubr.bf16.gmra.mrb[0].mxu0 %v2079
      %v2218 = vpop.f32.mrb[0].mxu0
      %v2219 = vadd.f32 0.0, %v2218
      %v2220 = vpop.f32.mrb[0].mxu0
      %v2221 = vpop.f32.mrb[0].mxu0
      %v2222 = vadd.f32 0.0, %v2221
      %v2223 = vpop.f32.mrb[0].mxu0
      %2224 = vmatprep.mubr.bf16.mxu0 0
      %2225 = vmatmul.mubr.bf16.gmra.mrb[0].mxu0 %v2082
      %v2226 = vpop.f32.mrb[0].mxu0
      %v2227 = vadd.f32 0.0, %v2226
      %v2228 = vpop.f32.mrb[0].mxu0
      %v2229 = vpop.f32.mrb[0].mxu0
      %v2230 = vadd.f32 0.0, %v2229
      %v2231 = vpop.f32.mrb[0].mxu0
      %2232 = vmatprep.mubr.bf16.mxu0 0
      %2233 = vmatmul.mubr.bf16.gmra.mrb[0].mxu0 %v2085
      %v2234 = vpop.f32.mrb[0].mxu0
      %v2235 = vadd.f32 0.0, %v2234
      %v2236 = vpop.f32.mrb[0].mxu0
      %v2237 = vpop.f32.mrb[0].mxu0
      %v2238 = vadd.f32 0.0, %v2237
      %v2239 = vpop.f32.mrb[0].mxu0
      %2240 = vmatprep.mubr.bf16.mxu0 0
      %2241 = vmatmul.mubr.bf16.gmra.mrb[0].mxu0 %v2088
      %v2242 = vpop.f32.mrb[0].mxu0
      %v2243 = vadd.f32 0.0, %v2242
      %v2244 = vpop.f32.mrb[0].mxu0
      %v2245 = vpop.f32.mrb[0].mxu0
      %v2246 = vadd.f32 0.0, %v2245
      %v2247 = vpop.f32.mrb[0].mxu0
      %2248 = vmatprep.mubr.bf16.mxu0 0
      %2249 = vmatmul.mubr.bf16.gmra.mrb[0].mxu0 %v2091
      %v2250 = vpop.f32.mrb[0].mxu0
      %v2251 = vadd.f32 0.0, %v2250
      %v2252 = vpop.f32.mrb[0].mxu0
      %v2253 = vpop.f32.mrb[0].mxu0
      %v2254 = vadd.f32 0.0, %v2253
      %v2255 = vpop.f32.mrb[0].mxu0
      %2256 = vdwg.mxu0
      %v2257 = vadd.f32 %v1960, %v2131
      %v2258 = vadd.f32 %v1961, %v2134
      %v2259 = vadd.f32 %v1962, %v2139
      %v2260 = vadd.f32 %v1963, %v2142
      %v2261 = vadd.f32 %v1964, %v2147
      %v2262 = vadd.f32 %v1965, %v2150
      %v2263 = vadd.f32 %v1966, %v2155
      %v2264 = vadd.f32 %v1967, %v2158
      %v2265 = vadd.f32 %v1968, %v2163
      %v2266 = vadd.f32 %v1969, %v2166
      %v2267 = vadd.f32 %v1970, %v2171
      %v2268 = vadd.f32 %v1971, %v2174
      %v2269 = vadd.f32 %v1972, %v2179
      %v2270 = vadd.f32 %v1973, %v2182
      %v2271 = vadd.f32 %v1974, %v2187
      %v2272 = vadd.f32 %v1975, %v2190
      %v2273 = vadd.f32 %v1976, %v2195
      %v2274 = vadd.f32 %v1977, %v2198
      %v2275 = vadd.f32 %v1978, %v2203
      %v2276 = vadd.f32 %v1979, %v2206
      %v2277 = vadd.f32 %v1980, %v2211
      %v2278 = vadd.f32 %v1981, %v2214
      %v2279 = vadd.f32 %v1982, %v2219
      %v2280 = vadd.f32 %v1983, %v2222
      %v2281 = vadd.f32 %v1984, %v2227
      %v2282 = vadd.f32 %v1985, %v2230
      %v2283 = vadd.f32 %v1986, %v2235
      %v2284 = vadd.f32 %v1987, %v2238
      %v2285 = vadd.f32 %v1988, %v2243
      %v2286 = vadd.f32 %v1989, %v2246
      %v2287 = vadd.f32 %v1990, %v2251
      %v2288 = vadd.f32 %v1991, %v2254
      %v2289 = vld [vmem:[%s1994 + $0x1] sm:$0xff]
      %v2290 = vld [vmem:[%s1994 + $0x9] sm:$0xff]
      %v2291 = vld [vmem:[%s1994 + $0x19] sm:$0xff]
      %v2292 = vld [vmem:[%s1994 + $0x21] sm:$0xff]
      %v2293 = vld [vmem:[%s1994 + $0x31] sm:$0xff]
      %v2294 = vld [vmem:[%s1994 + $0x39] sm:$0xff]
      %v2295 = vld [vmem:[%s1994 + $0x49] sm:$0xff]
      %v2296 = vld [vmem:[%s1994 + $0x51] sm:$0xff]
      %v2297 = vld [vmem:[%s1994 + $0x61] sm:$0xff]
      %v2298 = vld [vmem:[%s1994 + $0x69] sm:$0xff]
      %v2299 = vld [vmem:[%s1994 + $0x79] sm:$0xff]
      %v2300 = vld [vmem:[%s1994 + $0x81] sm:$0xff]
      %v2301 = vld [vmem:[%s1994 + $0x91] sm:$0xff]
      %v2302 = vld [vmem:[%s1994 + $0x99] sm:$0xff]
      %v2303 = vld [vmem:[%s1994 + $0xa9] sm:$0xff]
      %v2304 = vld [vmem:[%s1994 + $0xb1] sm:$0xff]
      %v2305 = vld [vmem:[%s1994 + $0xc1] sm:$0xff]
      %v2306 = vld [vmem:[%s1994 + $0xc9] sm:$0xff]
      %v2307 = vld [vmem:[%s1994 + $0xd9] sm:$0xff]
      %v2308 = vld [vmem:[%s1994 + $0xe1] sm:$0xff]
      %v2309 = vld [vmem:[%s1994 + $0xf1] sm:$0xff]
      %v2310 = vld [vmem:[%s1994 + $0xf9] sm:$0xff]
      %v2311 = vld [vmem:[%s1994 + $0x109] sm:$0xff]
      %v2312 = vld [vmem:[%s1994 + $0x111] sm:$0xff]
      %v2313 = vld [vmem:[%s1994 + $0x121] sm:$0xff]
      %v2314 = vld [vmem:[%s1994 + $0x129] sm:$0xff]
      %v2315 = vld [vmem:[%s1994 + $0x139] sm:$0xff]
      %v2316 = vld [vmem:[%s1994 + $0x141] sm:$0xff]
      %v2317 = vld [vmem:[%s1994 + $0x151] sm:$0xff]
      %v2318 = vld [vmem:[%s1994 + $0x159] sm:$0xff]
      %v2319 = vld [vmem:[%s1994 + $0x169] sm:$0xff]
      %v2320 = vld [vmem:[%s1994 + $0x171] sm:$0xff]
      %v2321 = vpack.c.bf16 %v2290, %v2289
      %v2322 = vpack.c.bf16 %v2292, %v2291
      %v2323 = vpack.c.bf16 %v2294, %v2293
      %v2324 = vpack.c.bf16 %v2296, %v2295
      %v2325 = vpack.c.bf16 %v2298, %v2297
      %v2326 = vpack.c.bf16 %v2300, %v2299
      %v2327 = vpack.c.bf16 %v2302, %v2301
      %v2328 = vpack.c.bf16 %v2304, %v2303
      %v2329 = vpack.c.bf16 %v2306, %v2305
      %v2330 = vpack.c.bf16 %v2308, %v2307
      %v2331 = vpack.c.bf16 %v2310, %v2309
      %v2332 = vpack.c.bf16 %v2312, %v2311
      %v2333 = vpack.c.bf16 %v2314, %v2313
      %v2334 = vpack.c.bf16 %v2316, %v2315
      %v2335 = vpack.c.bf16 %v2318, %v2317
      %v2336 = vpack.c.bf16 %v2320, %v2319
      %v2337 = vld [vmem:[%s262 + $0x1c] sm:$0xf]
      %v2338 = vpack.c.bf16 %v2337, %v2337
      %v2340 = vsel %vm387, %v2321, 0
      %v2343 = vsel %vm387, %v2322, 0
      %v2346 = vsel %vm387, %v2323, 0
      %v2349 = vsel %vm387, %v2324, 0
      %v2352 = vsel %vm387, %v2325, 0
      %v2355 = vsel %vm387, %v2326, 0
      %v2358 = vsel %vm387, %v2327, 0
      %v2361 = vsel %vm387, %v2328, 0
      %v2364 = vsel %vm387, %v2329, 0
      %v2367 = vsel %vm387, %v2330, 0
      %v2370 = vsel %vm387, %v2331, 0
      %v2373 = vsel %vm387, %v2332, 0
      %v2376 = vsel %vm387, %v2333, 0
      %v2379 = vsel %vm387, %v2334, 0
      %v2382 = vsel %vm387, %v2335, 0
      %v2385 = vsel %vm387, %v2336, 0
      %v2388 = vsel %vm436, %v2338, 0
      %2390 = vmatprep.subr.bf16.mxu0 0
      %2391 = vmatpush1.bf16.msra.mxu0 %v2388
      %2392 = vmatprep.subr.bf16.mxu0 0
      %2393 = vmatpush1.bf16.msra.mxu0 0
      %2394 = vmatprep.subr.bf16.mxu0 0
      %2395 = vmatpush1.bf16.msra.mxu0 0
      %2396 = vmatprep.subr.bf16.mxu0 0
      %2397 = vmatpush1.bf16.msra.mxu0 0
      %2398 = vmatprep.subr.bf16.mxu0 0
      %2399 = vmatpush1.bf16.msra.mxu0 0
      %2400 = vmatprep.subr.bf16.mxu0 0
      %2401 = vmatpush1.bf16.msra.mxu0 0
      %2402 = vmatprep.subr.bf16.mxu0 0
      %2403 = vmatpush1.bf16.msra.mxu0 0
      %2404 = vmatprep.subr.bf16.mxu0 0
      %2405 = vmatpush1.bf16.msra.mxu0 0
      %2406 = vmatprep.subr.bf16.mxu0 0
      %2407 = vmatpush1.bf16.msra.mxu0 0
      %2408 = vmatprep.subr.bf16.mxu0 0
      %2409 = vmatpush1.bf16.msra.mxu0 0
      %2410 = vmatprep.subr.bf16.mxu0 0
      %2411 = vmatpush1.bf16.msra.mxu0 0
      %2412 = vmatprep.subr.bf16.mxu0 0
      %2413 = vmatpush1.bf16.msra.mxu0 0
      %2414 = vmatprep.subr.bf16.mxu0 0
      %2415 = vmatpush1.bf16.msra.mxu0 0
      %2416 = vmatprep.subr.bf16.mxu0 0
      %2417 = vmatpush1.bf16.msra.mxu0 0
      %2418 = vmatprep.subr.bf16.mxu0 0
      %2419 = vmatpush1.bf16.msra.mxu0 0
      %2420 = vmatprep.subr.bf16.mxu0 0
      %2421 = vmatpush1.bf16.msra.mxu0 0
      %2422 = vmatprep.mubr.bf16.mxu0 0
      %2423 = vmatmul.mubr.bf16.gmra.mrb[0].mxu0 %v2340
      %v2424 = vpop.f32.mrb[0].mxu0
      %v2425 = vadd.f32 0.0, %v2424
      %v2426 = vpop.f32.mrb[0].mxu0
      %v2427 = vpop.f32.mrb[0].mxu0
      %v2428 = vadd.f32 0.0, %v2427
      %v2429 = vpop.f32.mrb[0].mxu0
      %2430 = vmatprep.mubr.bf16.mxu0 0
      %2431 = vmatmul.mubr.bf16.gmra.mrb[0].mxu0 %v2343
      %v2432 = vpop.f32.mrb[0].mxu0
      %v2433 = vadd.f32 0.0, %v2432
      %v2434 = vpop.f32.mrb[0].mxu0
      %v2435 = vpop.f32.mrb[0].mxu0
      %v2436 = vadd.f32 0.0, %v2435
      %v2437 = vpop.f32.mrb[0].mxu0
      %2438 = vmatprep.mubr.bf16.mxu0 0
      %2439 = vmatmul.mubr.bf16.gmra.mrb[0].mxu0 %v2346
      %v2440 = vpop.f32.mrb[0].mxu0
      %v2441 = vadd.f32 0.0, %v2440
      %v2442 = vpop.f32.mrb[0].mxu0
      %v2443 = vpop.f32.mrb[0].mxu0
      %v2444 = vadd.f32 0.0, %v2443
      %v2445 = vpop.f32.mrb[0].mxu0
      %2446 = vmatprep.mubr.bf16.mxu0 0
      %2447 = vmatmul.mubr.bf16.gmra.mrb[0].mxu0 %v2349
      %v2448 = vpop.f32.mrb[0].mxu0
      %v2449 = vadd.f32 0.0, %v2448
      %v2450 = vpop.f32.mrb[0].mxu0
      %v2451 = vpop.f32.mrb[0].mxu0
      %v2452 = vadd.f32 0.0, %v2451
      %v2453 = vpop.f32.mrb[0].mxu0
      %2454 = vmatprep.mubr.bf16.mxu0 0
      %2455 = vmatmul.mubr.bf16.gmra.mrb[0].mxu0 %v2352
      %v2456 = vpop.f32.mrb[0].mxu0
      %v2457 = vadd.f32 0.0, %v2456
      %v2458 = vpop.f32.mrb[0].mxu0
      %v2459 = vpop.f32.mrb[0].mxu0
      %v2460 = vadd.f32 0.0, %v2459
      %v2461 = vpop.f32.mrb[0].mxu0
      %2462 = vmatprep.mubr.bf16.mxu0 0
      %2463 = vmatmul.mubr.bf16.gmra.mrb[0].mxu0 %v2355
      %v2464 = vpop.f32.mrb[0].mxu0
      %v2465 = vadd.f32 0.0, %v2464
      %v2466 = vpop.f32.mrb[0].mxu0
      %v2467 = vpop.f32.mrb[0].mxu0
      %v2468 = vadd.f32 0.0, %v2467
      %v2469 = vpop.f32.mrb[0].mxu0
      %2470 = vmatprep.mubr.bf16.mxu0 0
      %2471 = vmatmul.mubr.bf16.gmra.mrb[0].mxu0 %v2358
      %v2472 = vpop.f32.mrb[0].mxu0
      %v2473 = vadd.f32 0.0, %v2472
      %v2474 = vpop.f32.mrb[0].mxu0
      %v2475 = vpop.f32.mrb[0].mxu0
      %v2476 = vadd.f32 0.0, %v2475
      %v2477 = vpop.f32.mrb[0].mxu0
      %2478 = vmatprep.mubr.bf16.mxu0 0
      %2479 = vmatmul.mubr.bf16.gmra.mrb[0].mxu0 %v2361
      %v2480 = vpop.f32.mrb[0].mxu0
      %v2481 = vadd.f32 0.0, %v2480
      %v2482 = vpop.f32.mrb[0].mxu0
      %v2483 = vpop.f32.mrb[0].mxu0
      %v2484 = vadd.f32 0.0, %v2483
      %v2485 = vpop.f32.mrb[0].mxu0
      %2486 = vmatprep.mubr.bf16.mxu0 0
      %2487 = vmatmul.mubr.bf16.gmra.mrb[0].mxu0 %v2364
      %v2488 = vpop.f32.mrb[0].mxu0
      %v2489 = vadd.f32 0.0, %v2488
      %v2490 = vpop.f32.mrb[0].mxu0
      %v2491 = vpop.f32.mrb[0].mxu0
      %v2492 = vadd.f32 0.0, %v2491
      %v2493 = vpop.f32.mrb[0].mxu0
      %2494 = vmatprep.mubr.bf16.mxu0 0
      %2495 = vmatmul.mubr.bf16.gmra.mrb[0].mxu0 %v2367
      %v2496 = vpop.f32.mrb[0].mxu0
      %v2497 = vadd.f32 0.0, %v2496
      %v2498 = vpop.f32.mrb[0].mxu0
      %v2499 = vpop.f32.mrb[0].mxu0
      %v2500 = vadd.f32 0.0, %v2499
      %v2501 = vpop.f32.mrb[0].mxu0
      %2502 = vmatprep.mubr.bf16.mxu0 0
      %2503 = vmatmul.mubr.bf16.gmra.mrb[0].mxu0 %v2370
      %v2504 = vpop.f32.mrb[0].mxu0
      %v2505 = vadd.f32 0.0, %v2504
      %v2506 = vpop.f32.mrb[0].mxu0
      %v2507 = vpop.f32.mrb[0].mxu0
      %v2508 = vadd.f32 0.0, %v2507
      %v2509 = vpop.f32.mrb[0].mxu0
      %2510 = vmatprep.mubr.bf16.mxu0 0
      %2511 = vmatmul.mubr.bf16.gmra.mrb[0].mxu0 %v2373
      %v2512 = vpop.f32.mrb[0].mxu0
      %v2513 = vadd.f32 0.0, %v2512
      %v2514 = vpop.f32.mrb[0].mxu0
      %v2515 = vpop.f32.mrb[0].mxu0
      %v2516 = vadd.f32 0.0, %v2515
      %v2517 = vpop.f32.mrb[0].mxu0
      %2518 = vmatprep.mubr.bf16.mxu0 0
      %2519 = vmatmul.mubr.bf16.gmra.mrb[0].mxu0 %v2376
      %v2520 = vpop.f32.mrb[0].mxu0
      %v2521 = vadd.f32 0.0, %v2520
      %v2522 = vpop.f32.mrb[0].mxu0
      %v2523 = vpop.f32.mrb[0].mxu0
      %v2524 = vadd.f32 0.0, %v2523
      %v2525 = vpop.f32.mrb[0].mxu0
      %2526 = vmatprep.mubr.bf16.mxu0 0
      %2527 = vmatmul.mubr.bf16.gmra.mrb[0].mxu0 %v2379
      %v2528 = vpop.f32.mrb[0].mxu0
      %v2529 = vadd.f32 0.0, %v2528
      %v2530 = vpop.f32.mrb[0].mxu0
      %v2531 = vpop.f32.mrb[0].mxu0
      %v2532 = vadd.f32 0.0, %v2531
      %v2533 = vpop.f32.mrb[0].mxu0
      %2534 = vmatprep.mubr.bf16.mxu0 0
      %2535 = vmatmul.mubr.bf16.gmra.mrb[0].mxu0 %v2382
      %v2536 = vpop.f32.mrb[0].mxu0
      %v2537 = vadd.f32 0.0, %v2536
      %v2538 = vpop.f32.mrb[0].mxu0
      %v2539 = vpop.f32.mrb[0].mxu0
      %v2540 = vadd.f32 0.0, %v2539
      %v2541 = vpop.f32.mrb[0].mxu0
      %2542 = vmatprep.mubr.bf16.mxu0 0
      %2543 = vmatmul.mubr.bf16.gmra.mrb[0].mxu0 %v2385
      %v2544 = vpop.f32.mrb[0].mxu0
      %v2545 = vadd.f32 0.0, %v2544
      %v2546 = vpop.f32.mrb[0].mxu0
      %v2547 = vpop.f32.mrb[0].mxu0
      %v2548 = vadd.f32 0.0, %v2547
      %v2549 = vpop.f32.mrb[0].mxu0
      %2550 = vdwg.mxu0
      %v2551 = vadd.f32 %v2257, %v2425
      %v2552 = vadd.f32 %v2258, %v2428
      %v2553 = vadd.f32 %v2259, %v2433
      %v2554 = vadd.f32 %v2260, %v2436
      %v2555 = vadd.f32 %v2261, %v2441
      %v2556 = vadd.f32 %v2262, %v2444
      %v2557 = vadd.f32 %v2263, %v2449
      %v2558 = vadd.f32 %v2264, %v2452
      %v2559 = vadd.f32 %v2265, %v2457
      %v2560 = vadd.f32 %v2266, %v2460
      %v2561 = vadd.f32 %v2267, %v2465
      %v2562 = vadd.f32 %v2268, %v2468
      %v2563 = vadd.f32 %v2269, %v2473
      %v2564 = vadd.f32 %v2270, %v2476
      %v2565 = vadd.f32 %v2271, %v2481
      %v2566 = vadd.f32 %v2272, %v2484
      %v2567 = vadd.f32 %v2273, %v2489
      %v2568 = vadd.f32 %v2274, %v2492
      %v2569 = vadd.f32 %v2275, %v2497
      %v2570 = vadd.f32 %v2276, %v2500
      %v2571 = vadd.f32 %v2277, %v2505
      %v2572 = vadd.f32 %v2278, %v2508
      %v2573 = vadd.f32 %v2279, %v2513
      %v2574 = vadd.f32 %v2280, %v2516
      %v2575 = vadd.f32 %v2281, %v2521
      %v2576 = vadd.f32 %v2282, %v2524
      %v2577 = vadd.f32 %v2283, %v2529
      %v2578 = vadd.f32 %v2284, %v2532
      %v2579 = vadd.f32 %v2285, %v2537
      %v2580 = vadd.f32 %v2286, %v2540
      %v2581 = vadd.f32 %v2287, %v2545
      %v2582 = vadd.f32 %v2288, %v2548
      %v2583 = vld [vmem:[%s1994 + $0x2] sm:$0xff]
      %v2584 = vld [vmem:[%s1994 + $0xa] sm:$0xff]
      %v2585 = vld [vmem:[%s1994 + $0x1a] sm:$0xff]
      %v2586 = vld [vmem:[%s1994 + $0x22] sm:$0xff]
      %v2587 = vld [vmem:[%s1994 + $0x32] sm:$0xff]
      %v2588 = vld [vmem:[%s1994 + $0x3a] sm:$0xff]
      %v2589 = vld [vmem:[%s1994 + $0x4a] sm:$0xff]
      %v2590 = vld [vmem:[%s1994 + $0x52] sm:$0xff]
      %v2591 = vld [vmem:[%s1994 + $0x62] sm:$0xff]
      %v2592 = vld [vmem:[%s1994 + $0x6a] sm:$0xff]
      %v2593 = vld [vmem:[%s1994 + $0x7a] sm:$0xff]
      %v2594 = vld [vmem:[%s1994 + $0x82] sm:$0xff]
      %v2595 = vld [vmem:[%s1994 + $0x92] sm:$0xff]
      %v2596 = vld [vmem:[%s1994 + $0x9a] sm:$0xff]
      %v2597 = vld [vmem:[%s1994 + $0xaa] sm:$0xff]
      %v2598 = vld [vmem:[%s1994 + $0xb2] sm:$0xff]
      %v2599 = vld [vmem:[%s1994 + $0xc2] sm:$0xff]
      %v2600 = vld [vmem:[%s1994 + $0xca] sm:$0xff]
      %v2601 = vld [vmem:[%s1994 + $0xda] sm:$0xff]
      %v2602 = vld [vmem:[%s1994 + $0xe2] sm:$0xff]
      %v2603 = vld [vmem:[%s1994 + $0xf2] sm:$0xff]
      %v2604 = vld [vmem:[%s1994 + $0xfa] sm:$0xff]
      %v2605 = vld [vmem:[%s1994 + $0x10a] sm:$0xff]
      %v2606 = vld [vmem:[%s1994 + $0x112] sm:$0xff]
      %v2607 = vld [vmem:[%s1994 + $0x122] sm:$0xff]
      %v2608 = vld [vmem:[%s1994 + $0x12a] sm:$0xff]
      %v2609 = vld [vmem:[%s1994 + $0x13a] sm:$0xff]
      %v2610 = vld [vmem:[%s1994 + $0x142] sm:$0xff]
      %v2611 = vld [vmem:[%s1994 + $0x152] sm:$0xff]
      %v2612 = vld [vmem:[%s1994 + $0x15a] sm:$0xff]
      %v2613 = vld [vmem:[%s1994 + $0x16a] sm:$0xff]
      %v2614 = vld [vmem:[%s1994 + $0x172] sm:$0xff]
      %v2615 = vpack.c.bf16 %v2584, %v2583
      %v2616 = vpack.c.bf16 %v2586, %v2585
      %v2617 = vpack.c.bf16 %v2588, %v2587
      %v2618 = vpack.c.bf16 %v2590, %v2589
      %v2619 = vpack.c.bf16 %v2592, %v2591
      %v2620 = vpack.c.bf16 %v2594, %v2593
      %v2621 = vpack.c.bf16 %v2596, %v2595
      %v2622 = vpack.c.bf16 %v2598, %v2597
      %v2623 = vpack.c.bf16 %v2600, %v2599
      %v2624 = vpack.c.bf16 %v2602, %v2601
      %v2625 = vpack.c.bf16 %v2604, %v2603
      %v2626 = vpack.c.bf16 %v2606, %v2605
      %v2627 = vpack.c.bf16 %v2608, %v2607
      %v2628 = vpack.c.bf16 %v2610, %v2609
      %v2629 = vpack.c.bf16 %v2612, %v2611
      %v2630 = vpack.c.bf16 %v2614, %v2613
      %v2631 = vld [vmem:[%s262 + $0x20] sm:$0xf]
      %v2632 = vpack.c.bf16 %v2631, %v2631
      %v2634 = vsel %vm387, %v2615, 0
      %v2637 = vsel %vm387, %v2616, 0
      %v2640 = vsel %vm387, %v2617, 0
      %v2643 = vsel %vm387, %v2618, 0
      %v2646 = vsel %vm387, %v2619, 0
      %v2649 = vsel %vm387, %v2620, 0
      %v2652 = vsel %vm387, %v2621, 0
      %v2655 = vsel %vm387, %v2622, 0
      %v2658 = vsel %vm387, %v2623, 0
      %v2661 = vsel %vm387, %v2624, 0
      %v2664 = vsel %vm387, %v2625, 0
      %v2667 = vsel %vm387, %v2626, 0
      %v2670 = vsel %vm387, %v2627, 0
      %v2673 = vsel %vm387, %v2628, 0
      %v2676 = vsel %vm387, %v2629, 0
      %v2679 = vsel %vm387, %v2630, 0
      %v2682 = vsel %vm436, %v2632, 0
      %2684 = vmatprep.subr.bf16.mxu0 0
      %2685 = vmatpush1.bf16.msra.mxu0 %v2682
      %2686 = vmatprep.subr.bf16.mxu0 0
      %2687 = vmatpush1.bf16.msra.mxu0 0
      %2688 = vmatprep.subr.bf16.mxu0 0
      %2689 = vmatpush1.bf16.msra.mxu0 0
      %2690 = vmatprep.subr.bf16.mxu0 0
      %2691 = vmatpush1.bf16.msra.mxu0 0
      %2692 = vmatprep.subr.bf16.mxu0 0
      %2693 = vmatpush1.bf16.msra.mxu0 0
      %2694 = vmatprep.subr.bf16.mxu0 0
      %2695 = vmatpush1.bf16.msra.mxu0 0
      %2696 = vmatprep.subr.bf16.mxu0 0
      %2697 = vmatpush1.bf16.msra.mxu0 0
      %2698 = vmatprep.subr.bf16.mxu0 0
      %2699 = vmatpush1.bf16.msra.mxu0 0
      %2700 = vmatprep.subr.bf16.mxu0 0
      %2701 = vmatpush1.bf16.msra.mxu0 0
      %2702 = vmatprep.subr.bf16.mxu0 0
      %2703 = vmatpush1.bf16.msra.mxu0 0
      %2704 = vmatprep.subr.bf16.mxu0 0
      %2705 = vmatpush1.bf16.msra.mxu0 0
      %2706 = vmatprep.subr.bf16.mxu0 0
      %2707 = vmatpush1.bf16.msra.mxu0 0
      %2708 = vmatprep.subr.bf16.mxu0 0
      %2709 = vmatpush1.bf16.msra.mxu0 0
      %2710 = vmatprep.subr.bf16.mxu0 0
      %2711 = vmatpush1.bf16.msra.mxu0 0
      %2712 = vmatprep.subr.bf16.mxu0 0
      %2713 = vmatpush1.bf16.msra.mxu0 0
      %2714 = vmatprep.subr.bf16.mxu0 0
      %2715 = vmatpush1.bf16.msra.mxu0 0
      %2716 = vmatprep.mubr.bf16.mxu0 0
      %2717 = vmatmul.mubr.bf16.gmra.mrb[0].mxu0 %v2634
      %v2718 = vpop.f32.mrb[0].mxu0
      %v2719 = vadd.f32 0.0, %v2718
      %v2720 = vpop.f32.mrb[0].mxu0
      %v2721 = vpop.f32.mrb[0].mxu0
      %v2722 = vadd.f32 0.0, %v2721
      %v2723 = vpop.f32.mrb[0].mxu0
      %2724 = vmatprep.mubr.bf16.mxu0 0
      %2725 = vmatmul.mubr.bf16.gmra.mrb[0].mxu0 %v2637
      %v2726 = vpop.f32.mrb[0].mxu0
      %v2727 = vadd.f32 0.0, %v2726
      %v2728 = vpop.f32.mrb[0].mxu0
      %v2729 = vpop.f32.mrb[0].mxu0
      %v2730 = vadd.f32 0.0, %v2729
      %v2731 = vpop.f32.mrb[0].mxu0
      %2732 = vmatprep.mubr.bf16.mxu0 0
      %2733 = vmatmul.mubr.bf16.gmra.mrb[0].mxu0 %v2640
      %v2734 = vpop.f32.mrb[0].mxu0
      %v2735 = vadd.f32 0.0, %v2734
      %v2736 = vpop.f32.mrb[0].mxu0
      %v2737 = vpop.f32.mrb[0].mxu0
      %v2738 = vadd.f32 0.0, %v2737
      %v2739 = vpop.f32.mrb[0].mxu0
      %2740 = vmatprep.mubr.bf16.mxu0 0
      %2741 = vmatmul.mubr.bf16.gmra.mrb[0].mxu0 %v2643
      %v2742 = vpop.f32.mrb[0].mxu0
      %v2743 = vadd.f32 0.0, %v2742
      %v2744 = vpop.f32.mrb[0].mxu0
      %v2745 = vpop.f32.mrb[0].mxu0
      %v2746 = vadd.f32 0.0, %v2745
      %v2747 = vpop.f32.mrb[0].mxu0
      %2748 = vmatprep.mubr.bf16.mxu0 0
      %2749 = vmatmul.mubr.bf16.gmra.mrb[0].mxu0 %v2646
      %v2750 = vpop.f32.mrb[0].mxu0
      %v2751 = vadd.f32 0.0, %v2750
      %v2752 = vpop.f32.mrb[0].mxu0
      %v2753 = vpop.f32.mrb[0].mxu0
      %v2754 = vadd.f32 0.0, %v2753
      %v2755 = vpop.f32.mrb[0].mxu0
      %2756 = vmatprep.mubr.bf16.mxu0 0
      %2757 = vmatmul.mubr.bf16.gmra.mrb[0].mxu0 %v2649
      %v2758 = vpop.f32.mrb[0].mxu0
      %v2759 = vadd.f32 0.0, %v2758
      %v2760 = vpop.f32.mrb[0].mxu0
      %v2761 = vpop.f32.mrb[0].mxu0
      %v2762 = vadd.f32 0.0, %v2761
      %v2763 = vpop.f32.mrb[0].mxu0
      %2764 = vmatprep.mubr.bf16.mxu0 0
      %2765 = vmatmul.mubr.bf16.gmra.mrb[0].mxu0 %v2652
      %v2766 = vpop.f32.mrb[0].mxu0
      %v2767 = vadd.f32 0.0, %v2766
      %v2768 = vpop.f32.mrb[0].mxu0
      %v2769 = vpop.f32.mrb[0].mxu0
      %v2770 = vadd.f32 0.0, %v2769
      %v2771 = vpop.f32.mrb[0].mxu0
      %2772 = vmatprep.mubr.bf16.mxu0 0
      %2773 = vmatmul.mubr.bf16.gmra.mrb[0].mxu0 %v2655
      %v2774 = vpop.f32.mrb[0].mxu0
      %v2775 = vadd.f32 0.0, %v2774
      %v2776 = vpop.f32.mrb[0].mxu0
      %v2777 = vpop.f32.mrb[0].mxu0
      %v2778 = vadd.f32 0.0, %v2777
      %v2779 = vpop.f32.mrb[0].mxu0
      %2780 = vmatprep.mubr.bf16.mxu0 0
      %2781 = vmatmul.mubr.bf16.gmra.mrb[0].mxu0 %v2658
      %v2782 = vpop.f32.mrb[0].mxu0
      %v2783 = vadd.f32 0.0, %v2782
      %v2784 = vpop.f32.mrb[0].mxu0
      %v2785 = vpop.f32.mrb[0].mxu0
      %v2786 = vadd.f32 0.0, %v2785
      %v2787 = vpop.f32.mrb[0].mxu0
      %2788 = vmatprep.mubr.bf16.mxu0 0
      %2789 = vmatmul.mubr.bf16.gmra.mrb[0].mxu0 %v2661
      %v2790 = vpop.f32.mrb[0].mxu0
      %v2791 = vadd.f32 0.0, %v2790
      %v2792 = vpop.f32.mrb[0].mxu0
      %v2793 = vpop.f32.mrb[0].mxu0
      %v2794 = vadd.f32 0.0, %v2793
      %v2795 = vpop.f32.mrb[0].mxu0
      %2796 = vmatprep.mubr.bf16.mxu0 0
      %2797 = vmatmul.mubr.bf16.gmra.mrb[0].mxu0 %v2664
      %v2798 = vpop.f32.mrb[0].mxu0
      %v2799 = vadd.f32 0.0, %v2798
      %v2800 = vpop.f32.mrb[0].mxu0
      %v2801 = vpop.f32.mrb[0].mxu0
      %v2802 = vadd.f32 0.0, %v2801
      %v2803 = vpop.f32.mrb[0].mxu0
      %2804 = vmatprep.mubr.bf16.mxu0 0
      %2805 = vmatmul.mubr.bf16.gmra.mrb[0].mxu0 %v2667
      %v2806 = vpop.f32.mrb[0].mxu0
      %v2807 = vadd.f32 0.0, %v2806
      %v2808 = vpop.f32.mrb[0].mxu0
      %v2809 = vpop.f32.mrb[0].mxu0
      %v2810 = vadd.f32 0.0, %v2809
      %v2811 = vpop.f32.mrb[0].mxu0
      %2812 = vmatprep.mubr.bf16.mxu0 0
      %2813 = vmatmul.mubr.bf16.gmra.mrb[0].mxu0 %v2670
      %v2814 = vpop.f32.mrb[0].mxu0
      %v2815 = vadd.f32 0.0, %v2814
      %v2816 = vpop.f32.mrb[0].mxu0
      %v2817 = vpop.f32.mrb[0].mxu0
      %v2818 = vadd.f32 0.0, %v2817
      %v2819 = vpop.f32.mrb[0].mxu0
      %2820 = vmatprep.mubr.bf16.mxu0 0
      %2821 = vmatmul.mubr.bf16.gmra.mrb[0].mxu0 %v2673
      %v2822 = vpop.f32.mrb[0].mxu0
      %v2823 = vadd.f32 0.0, %v2822
      %v2824 = vpop.f32.mrb[0].mxu0
      %v2825 = vpop.f32.mrb[0].mxu0
      %v2826 = vadd.f32 0.0, %v2825
      %v2827 = vpop.f32.mrb[0].mxu0
      %2828 = vmatprep.mubr.bf16.mxu0 0
      %2829 = vmatmul.mubr.bf16.gmra.mrb[0].mxu0 %v2676
      %v2830 = vpop.f32.mrb[0].mxu0
      %v2831 = vadd.f32 0.0, %v2830
      %v2832 = vpop.f32.mrb[0].mxu0
      %v2833 = vpop.f32.mrb[0].mxu0
      %v2834 = vadd.f32 0.0, %v2833
      %v2835 = vpop.f32.mrb[0].mxu0
      %2836 = vmatprep.mubr.bf16.mxu0 0
      %2837 = vmatmul.mubr.bf16.gmra.mrb[0].mxu0 %v2679
      %v2838 = vpop.f32.mrb[0].mxu0
      %v2839 = vadd.f32 0.0, %v2838
      %v2840 = vpop.f32.mrb[0].mxu0
      %v2841 = vpop.f32.mrb[0].mxu0
      %v2842 = vadd.f32 0.0, %v2841
      %v2843 = vpop.f32.mrb[0].mxu0
      %2844 = vdwg.mxu0
      %v2845 = vadd.f32 %v2551, %v2719
      %v2846 = vadd.f32 %v2552, %v2722
      %v2847 = vadd.f32 %v2553, %v2727
      %v2848 = vadd.f32 %v2554, %v2730
      %v2849 = vadd.f32 %v2555, %v2735
      %v2850 = vadd.f32 %v2556, %v2738
      %v2851 = vadd.f32 %v2557, %v2743
      %v2852 = vadd.f32 %v2558, %v2746
      %v2853 = vadd.f32 %v2559, %v2751
      %v2854 = vadd.f32 %v2560, %v2754
      %v2855 = vadd.f32 %v2561, %v2759
      %v2856 = vadd.f32 %v2562, %v2762
      %v2857 = vadd.f32 %v2563, %v2767
      %v2858 = vadd.f32 %v2564, %v2770
      %v2859 = vadd.f32 %v2565, %v2775
      %v2860 = vadd.f32 %v2566, %v2778
      %v2861 = vadd.f32 %v2567, %v2783
      %v2862 = vadd.f32 %v2568, %v2786
      %v2863 = vadd.f32 %v2569, %v2791
      %v2864 = vadd.f32 %v2570, %v2794
      %v2865 = vadd.f32 %v2571, %v2799
      %v2866 = vadd.f32 %v2572, %v2802
      %v2867 = vadd.f32 %v2573, %v2807
      %v2868 = vadd.f32 %v2574, %v2810
      %v2869 = vadd.f32 %v2575, %v2815
      %v2870 = vadd.f32 %v2576, %v2818
      %v2871 = vadd.f32 %v2577, %v2823
      %v2872 = vadd.f32 %v2578, %v2826
      %v2873 = vadd.f32 %v2579, %v2831
      %v2874 = vadd.f32 %v2580, %v2834
      %v2875 = vadd.f32 %v2581, %v2839
      %v2876 = vadd.f32 %v2582, %v2842
      %v2877 = vld [vmem:[%s265] sm:$0x1]
      %v2879 = vlaneseq
      %v2880 = vshrl.u32 %v2879, 7
      %v2881 = vsub.s32 0, %v2880
      %v2882 = vrot.slane %v2877, %v2881
      %v2884 = vadd.f32 %v2845, %v2882
      %v2885 = vadd.f32 %v2846, %v2882
      %v2886 = vadd.f32 %v2847, %v2882
      %v2887 = vadd.f32 %v2848, %v2882
      %v2888 = vadd.f32 %v2849, %v2882
      %v2889 = vadd.f32 %v2850, %v2882
      %v2890 = vadd.f32 %v2851, %v2882
      %v2891 = vadd.f32 %v2852, %v2882
      %v2892 = vadd.f32 %v2853, %v2882
      %v2893 = vadd.f32 %v2854, %v2882
      %v2894 = vadd.f32 %v2855, %v2882
      %v2895 = vadd.f32 %v2856, %v2882
      %v2896 = vadd.f32 %v2857, %v2882
      %v2897 = vadd.f32 %v2858, %v2882
      %v2898 = vadd.f32 %v2859, %v2882
      %v2899 = vadd.f32 %v2860, %v2882
      %v2900 = vadd.f32 %v2861, %v2882
      %v2901 = vadd.f32 %v2862, %v2882
      %v2902 = vadd.f32 %v2863, %v2882
      %v2903 = vadd.f32 %v2864, %v2882
      %v2904 = vadd.f32 %v2865, %v2882
      %v2905 = vadd.f32 %v2866, %v2882
      %v2906 = vadd.f32 %v2867, %v2882
      %v2907 = vadd.f32 %v2868, %v2882
      %v2908 = vadd.f32 %v2869, %v2882
      %v2909 = vadd.f32 %v2870, %v2882
      %v2910 = vadd.f32 %v2871, %v2882
      %v2911 = vadd.f32 %v2872, %v2882
      %v2912 = vadd.f32 %v2873, %v2882
      %v2913 = vadd.f32 %v2874, %v2882
      %v2914 = vadd.f32 %v2875, %v2882
      %v2915 = vadd.f32 %v2876, %v2882
      %vm2916 = vcmp.ge.f32.partialorder %v2884, 0.0
      %vm2917 = vcmp.ge.f32.partialorder %v2885, 0.0
      %vm2918 = vcmp.ge.f32.partialorder %v2886, 0.0
      %vm2919 = vcmp.ge.f32.partialorder %v2887, 0.0
      %vm2920 = vcmp.ge.f32.partialorder %v2888, 0.0
      %vm2921 = vcmp.ge.f32.partialorder %v2889, 0.0
      %vm2922 = vcmp.ge.f32.partialorder %v2890, 0.0
      %vm2923 = vcmp.ge.f32.partialorder %v2891, 0.0
      %vm2924 = vcmp.ge.f32.partialorder %v2892, 0.0
      %vm2925 = vcmp.ge.f32.partialorder %v2893, 0.0
      %vm2926 = vcmp.ge.f32.partialorder %v2894, 0.0
      %vm2927 = vcmp.ge.f32.partialorder %v2895, 0.0
      %vm2928 = vcmp.ge.f32.partialorder %v2896, 0.0
      %vm2929 = vcmp.ge.f32.partialorder %v2897, 0.0
      %vm2930 = vcmp.ge.f32.partialorder %v2898, 0.0
      %vm2931 = vcmp.ge.f32.partialorder %v2899, 0.0
      %vm2932 = vcmp.ge.f32.partialorder %v2900, 0.0
      %vm2933 = vcmp.ge.f32.partialorder %v2901, 0.0
      %vm2934 = vcmp.ge.f32.partialorder %v2902, 0.0
      %vm2935 = vcmp.ge.f32.partialorder %v2903, 0.0
      %vm2936 = vcmp.ge.f32.partialorder %v2904, 0.0
      %vm2937 = vcmp.ge.f32.partialorder %v2905, 0.0
      %vm2938 = vcmp.ge.f32.partialorder %v2906, 0.0
      %vm2939 = vcmp.ge.f32.partialorder %v2907, 0.0
      %vm2940 = vcmp.ge.f32.partialorder %v2908, 0.0
      %vm2941 = vcmp.ge.f32.partialorder %v2909, 0.0
      %vm2942 = vcmp.ge.f32.partialorder %v2910, 0.0
      %vm2943 = vcmp.ge.f32.partialorder %v2911, 0.0
      %vm2944 = vcmp.ge.f32.partialorder %v2912, 0.0
      %vm2945 = vcmp.ge.f32.partialorder %v2913, 0.0
      %vm2946 = vcmp.ge.f32.partialorder %v2914, 0.0
      %vm2947 = vcmp.ge.f32.partialorder %v2915, 0.0
      %v2948 = vld [vmem:[%s268] sm:$0x1]
      %v2950 = vlaneseq
      %v2951 = vshrl.u32 %v2950, 7
      %v2952 = vsub.s32 0, %v2951
      %v2953 = vrot.slane %v2948, %v2952
      %v2955 = vmul.f32 %v2953, %v2884
      %v2956 = vmul.f32 %v2953, %v2885
      %v2957 = vmul.f32 %v2953, %v2886
      %v2958 = vmul.f32 %v2953, %v2887
      %v2959 = vmul.f32 %v2953, %v2888
      %v2960 = vmul.f32 %v2953, %v2889
      %v2961 = vmul.f32 %v2953, %v2890
      %v2962 = vmul.f32 %v2953, %v2891
      %v2963 = vmul.f32 %v2953, %v2892
      %v2964 = vmul.f32 %v2953, %v2893
      %v2965 = vmul.f32 %v2953, %v2894
      %v2966 = vmul.f32 %v2953, %v2895
      %v2967 = vmul.f32 %v2953, %v2896
      %v2968 = vmul.f32 %v2953, %v2897
      %v2969 = vmul.f32 %v2953, %v2898
      %v2970 = vmul.f32 %v2953, %v2899
      %v2971 = vmul.f32 %v2953, %v2900
      %v2972 = vmul.f32 %v2953, %v2901
      %v2973 = vmul.f32 %v2953, %v2902
      %v2974 = vmul.f32 %v2953, %v2903
      %v2975 = vmul.f32 %v2953, %v2904
      %v2976 = vmul.f32 %v2953, %v2905
      %v2977 = vmul.f32 %v2953, %v2906
      %v2978 = vmul.f32 %v2953, %v2907
      %v2979 = vmul.f32 %v2953, %v2908
      %v2980 = vmul.f32 %v2953, %v2909
      %v2981 = vmul.f32 %v2953, %v2910
      %v2982 = vmul.f32 %v2953, %v2911
      %v2983 = vmul.f32 %v2953, %v2912
      %v2984 = vmul.f32 %v2953, %v2913
      %v2985 = vmul.f32 %v2953, %v2914
      %v2986 = vmul.f32 %v2953, %v2915
      %v2987 = vsel %vm2916, %v2884, %v2955
      %v2988 = vsel %vm2917, %v2885, %v2956
      %v2989 = vsel %vm2918, %v2886, %v2957
      %v2990 = vsel %vm2919, %v2887, %v2958
      %v2991 = vsel %vm2920, %v2888, %v2959
      %v2992 = vsel %vm2921, %v2889, %v2960
      %v2993 = vsel %vm2922, %v2890, %v2961
      %v2994 = vsel %vm2923, %v2891, %v2962
      %v2995 = vsel %vm2924, %v2892, %v2963
      %v2996 = vsel %vm2925, %v2893, %v2964
      %v2997 = vsel %vm2926, %v2894, %v2965
      %v2998 = vsel %vm2927, %v2895, %v2966
      %v2999 = vsel %vm2928, %v2896, %v2967
      %v3000 = vsel %vm2929, %v2897, %v2968
      %v3001 = vsel %vm2930, %v2898, %v2969
      %v3002 = vsel %vm2931, %v2899, %v2970
      %v3003 = vsel %vm2932, %v2900, %v2971
      %v3004 = vsel %vm2933, %v2901, %v2972
      %v3005 = vsel %vm2934, %v2902, %v2973
      %v3006 = vsel %vm2935, %v2903, %v2974
      %v3007 = vsel %vm2936, %v2904, %v2975
      %v3008 = vsel %vm2937, %v2905, %v2976
      %v3009 = vsel %vm2938, %v2906, %v2977
      %v3010 = vsel %vm2939, %v2907, %v2978
      %v3011 = vsel %vm2940, %v2908, %v2979
      %v3012 = vsel %vm2941, %v2909, %v2980
      %v3013 = vsel %vm2942, %v2910, %v2981
      %v3014 = vsel %vm2943, %v2911, %v2982
      %v3015 = vsel %vm2944, %v2912, %v2983
      %v3016 = vsel %vm2945, %v2913, %v2984
      %v3017 = vsel %vm2946, %v2914, %v2985
      %v3018 = vsel %vm2947, %v2915, %v2986
      %3019 = vst [vmem:[%s281] sm:$0xff] %v2987
      %3020 = vst [vmem:[%s281 + $0x8] sm:$0xff] %v2988
      %3021 = vst [vmem:[%s281 + $0x10] sm:$0xff] %v2989
      %3022 = vst [vmem:[%s281 + $0x18] sm:$0xff] %v2990
      %3023 = vst [vmem:[%s281 + $0x20] sm:$0xff] %v2991
      %3024 = vst [vmem:[%s281 + $0x28] sm:$0xff] %v2992
      %3025 = vst [vmem:[%s281 + $0x30] sm:$0xff] %v2993
      %3026 = vst [vmem:[%s281 + $0x38] sm:$0xff] %v2994
      %3027 = vst [vmem:[%s281 + $0x40] sm:$0xff] %v2995
      %3028 = vst [vmem:[%s281 + $0x48] sm:$0xff] %v2996
      %3029 = vst [vmem:[%s281 + $0x50] sm:$0xff] %v2997
      %3030 = vst [vmem:[%s281 + $0x58] sm:$0xff] %v2998
      %3031 = vst [vmem:[%s281 + $0x60] sm:$0xff] %v2999
      %3032 = vst [vmem:[%s281 + $0x68] sm:$0xff] %v3000
      %3033 = vst [vmem:[%s281 + $0x70] sm:$0xff] %v3001
      %3034 = vst [vmem:[%s281 + $0x78] sm:$0xff] %v3002
      %3035 = vst [vmem:[%s281 + $0x80] sm:$0xff] %v3003
      %3036 = vst [vmem:[%s281 + $0x88] sm:$0xff] %v3004
      %3037 = vst [vmem:[%s281 + $0x90] sm:$0xff] %v3005
      %3038 = vst [vmem:[%s281 + $0x98] sm:$0xff] %v3006
      %3039 = vst [vmem:[%s281 + $0xa0] sm:$0xff] %v3007
      %3040 = vst [vmem:[%s281 + $0xa8] sm:$0xff] %v3008
      %3041 = vst [vmem:[%s281 + $0xb0] sm:$0xff] %v3009
      %3042 = vst [vmem:[%s281 + $0xb8] sm:$0xff] %v3010
      %3043 = vst [vmem:[%s281 + $0xc0] sm:$0xff] %v3011
      %3044 = vst [vmem:[%s281 + $0xc8] sm:$0xff] %v3012
      %3045 = vst [vmem:[%s281 + $0xd0] sm:$0xff] %v3013
      %3046 = vst [vmem:[%s281 + $0xd8] sm:$0xff] %v3014
      %3047 = vst [vmem:[%s281 + $0xe0] sm:$0xff] %v3015
      %3048 = vst [vmem:[%s281 + $0xe8] sm:$0xff] %v3016
      %3049 = vst [vmem:[%s281 + $0xf0] sm:$0xff] %v3017
      %3050 = vst [vmem:[%s281 + $0xf8] sm:$0xff] %v3018
      %s3051 = smul.u32 16, %s22
      %p3052 = scmp.lt.s32.totalorder %s20, 1
      %s3053 = scalar_select %p3052, %s20, 1
      %p3054 = scmp.lt.s32.totalorder %s3051, 15
      %s3055 = scalar_select %p3054, %s3051, 15
      %p3056 = scmp.lt.s32.totalorder %s21, 0
      %s3057 = scalar_select %p3056, %s21, 0
      %s3058 = smul.addr %s3055, 2
      %s3059 = sadd.s32 %s3057, %s3058
      %s3060 = smul.addr %s3053, 32
      %s3061 = sadd.s32 %s3059, %s3060
      %s3062 = smul.addr %s3061, 8
      %s3063 = scalar_lea.vmem %s4, %s3062
      // Predicated region
      $region37: #{_lambda_.1} parent=35 // pred_check
        %p3064 = pneg %p160
      $region38: #{_lambda_.1} parent=35 // pred_check_branch
        %3066 = sbr.rel (%p3064) target = $region40
      $region39: #{_lambda_.1} parent=35 // pred_region
        %s3067 = smul.u32 16, %s22
      $region40: #{_lambda_.1} parent=35 // pred_fallthru
        _
    $region36: #{_lambda_.1} parent=5 // pred_fallthru
      _
    %p3068 = scmp.le.s32.totalorder 2, %s10
    // Predicated region
    $region41: #{_lambda_.1} parent=5 // pred_check
      %p3069 = pneg %p3068
    $region42: #{_lambda_.1} parent=5 // pred_check_branch
      %3071 = sbr.rel (%p3069) target = $region44
    $region43: #{_lambda_.1} parent=5 // pred_region
      %s3072 = ssub.s32 %s10, 2
      // Predicated region
      $region45: #{_lambda_.1} parent=43 // pred_check
        %p3073 = pneg %p166
      $region46: #{_lambda_.1} parent=43 // pred_check_branch
        %3075 = sbr.rel (%p3073) target = $region48
      $region47: #{_lambda_.1} parent=43 // pred_region
        %s3076 = smul.u32 16, %s25
        %p3077 = scmp.lt.s32.totalorder %s23, 1
        %s3078 = scalar_select %p3077, %s23, 1
        %p3079 = scmp.lt.s32.totalorder %s3076, 15
        %s3080 = scalar_select %p3079, %s3076, 15
        %p3081 = scmp.lt.s32.totalorder %s24, 0
        %s3082 = scalar_select %p3081, %s24, 0
        %s3083 = smul.addr %s3080, 2
        %s3084 = sadd.s32 %s3082, %s3083
        %s3085 = smul.addr %s3078, 32
        %s3086 = sadd.s32 %s3084, %s3085
        %s3087 = smul.addr %s3086, 8
        %s3088 = scalar_lea.vmem %s4, %s3087
      $region48: #{_lambda_.1} parent=43 // pred_fallthru
        _
    $region44: #{_lambda_.1} parent=5 // pred_fallthru
      _
  $region6: #{_lambda_.1} parent=0 // loop_footer
    %s14 = sadd.s32 1, %s10
  $region7: #{_lambda_.1} parent=0 // loop_footer_branch
    %9 = sbr.rel target = $region3
  $region8: #{_lambda_.1} parent=0 // loop_exit
    _

</llo_original>
